<compile_context>
chip_gen: v7x
topology: tpu7x:2x2x1
jax: 0.10.0
libtpu: 0.0.40
codegen_flags: <defaults>
</compile_context>

<pallas_src>
import functools

import jax
import jax.numpy as jnp
from jax.experimental import pallas as pl
from jax.experimental.pallas import tpu as pltpu


# ------------------------------- small helpers --------------------------------
def _round_up(x, m):
    return ((x + m - 1) // m) * m


def _pick_tile(dim, candidates):
    """Largest candidate that evenly divides `dim`, else the full dim."""
    for c in candidates:
        if c <= dim and dim % c == 0:
            return c
    return dim


# -------------------- kernel 1: hoisted input projection ----------------------
def _input_proj_kernel(x_ref, w_ref, b_ref, out_ref):
    # One big MXU GEMM tile: (tm, D) @ (D, tn) + bias -> (tm, tn) in f32.
    out_ref[...] = (
        jnp.dot(x_ref[...], w_ref[...], preferred_element_type=jnp.float32)
        + b_ref[...]
    ).astype(out_ref.dtype)


def input_projection_pallas(x_flat, wih_t, bias):
    """x_flat: (M, D) in compute dtype, wih_t: (D, 4Hp), bias: (1, 4Hp) f32.
    Returns precomputed gates (M, 4Hp) f32."""
    M, D = x_flat.shape
    _, N = wih_t.shape
    tm = _pick_tile(M, (256, 128, 64, 32, 16, 8))
    tn = _pick_tile(N, (512, 256, 128))
    grid = (M // tm, N // tn)

    return pl.pallas_call(
        _input_proj_kernel,
        out_shape=jax.ShapeDtypeStruct((M, N), jnp.float32),
        grid_spec=pltpu.PrefetchScalarGridSpec(
            num_scalar_prefetch=0,
            grid=grid,
            in_specs=[
                pl.BlockSpec((tm, D), lambda i, j: (i, 0)),
                pl.BlockSpec((D, tn), lambda i, j: (0, j)),
                pl.BlockSpec((1, tn), lambda i, j: (0, j)),
            ],
            out_specs=pl.BlockSpec((tm, tn), lambda i, j: (i, j)),
        ),
        compiler_params=pltpu.CompilerParams(
            dimension_semantics=("parallel", "parallel")),
    )(x_flat, wih_t, bias)


# ----------------------- kernel 2: LSTM recurrence ----------------------------
def _lstm_recurrent_kernel(gates_ref, whh_hbm_ref,
                           out_ref, hf_ref, cf_ref,
                           whh_vmem, h_scr, c_scr):
    """Grid = (num_seq_chunks,), sequential ("arbitrary") axis.

    gates_ref : (Tc, Bp, 4Hp) precomputed X @ W_ih^T + b for this chunk (f32).
    whh_hbm_ref: (Hp, 4Hp) raw HBM ref (memory_space=pl.ANY); copied ONCE into
                 whh_vmem scratch so the constant weight is single-buffered.
    PyTorch gate order (i, f, g, o). h/c carried in VMEM scratch across chunks.
    """
    c = pl.program_id(0)
    Tc = gates_ref.shape[0]
    Hp = h_scr.shape[-1]

    @pl.when(c == 0)
    def _():
        pltpu.sync_copy(whh_hbm_ref, whh_vmem)   # one-time weight load (no 2x buffer)
        h_scr[...] = jnp.zeros_like(h_scr)
        c_scr[...] = jnp.zeros_like(c_scr)

    w = whh_vmem[...]                            # (Hp, 4Hp), compute dtype

    def step(t, carry):
        g_in = gates_ref[t]                      # (Bp, 4Hp) f32 (input proj + bias)
        h_prev = h_scr[...]
        gates = g_in + jnp.dot(h_prev.astype(w.dtype), w,
                               preferred_element_type=jnp.float32)
        i_g = jax.nn.sigmoid(gates[:, 0 * Hp:1 * Hp])
        f_g = jax.nn.sigmoid(gates[:, 1 * Hp:2 * Hp])
        g_g = jnp.tanh(gates[:, 2 * Hp:3 * Hp])
        o_g = jax.nn.sigmoid(gates[:, 3 * Hp:4 * Hp])
        c_new = f_g * c_scr[...] + i_g * g_g
        h_new = o_g * jnp.tanh(c_new)
        h_scr[...] = h_new
        c_scr[...] = c_new
        out_ref[t] = h_new.astype(out_ref.dtype)
        return carry

    # Unrolled so the LLO scheduler sees the whole chunk's instruction stream.
    jax.lax.fori_loop(0, Tc, step, 0, unroll=True)

    @pl.when(c == pl.num_programs(0) - 1)
    def _():
        hf_ref[...] = h_scr[...]
        cf_ref[...] = c_scr[...]


def lstm_recurrence_pallas(gates_seq, whh_t):
    """gates_seq: (seq, Bp, 4Hp) f32 precomputed gates; whh_t: (Hp, 4Hp)."""
    seq, Bp, N4 = gates_seq.shape
    Hp = N4 // 4
    Tc = _pick_tile(seq, (32, 16, 8, 4, 2))      # seq-chunk per grid step
    grid = (seq // Tc,)

    out_shapes = (
        jax.ShapeDtypeStruct((seq, Bp, Hp), jnp.float32),   # output sequence
        jax.ShapeDtypeStruct((Bp, Hp), jnp.float32),        # final hidden
        jax.ShapeDtypeStruct((Bp, Hp), jnp.float32),        # final cell
    )

    grid_spec = pltpu.PrefetchScalarGridSpec(
        num_scalar_prefetch=0,
        grid=grid,
        in_specs=[
            pl.BlockSpec((Tc, Bp, N4), lambda c: (c, 0, 0)),   # pipelined gate chunks
            pl.BlockSpec(memory_space=pl.ANY),                 # W_hh^T stays in HBM
        ],
        out_specs=[
            pl.BlockSpec((Tc, Bp, Hp), lambda c: (c, 0, 0)),
            pl.BlockSpec((Bp, Hp), lambda c: (0, 0)),
            pl.BlockSpec((Bp, Hp), lambda c: (0, 0)),
        ],
        scratch_shapes=[
            pltpu.VMEM((Hp, N4), whh_t.dtype),   # resident, single-buffered W_hh^T
            pltpu.VMEM((Bp, Hp), jnp.float32),   # h carry
            pltpu.VMEM((Bp, Hp), jnp.float32),   # c carry
        ],
    )

    return pl.pallas_call(
        _lstm_recurrent_kernel,
        out_shape=out_shapes,
        grid_spec=grid_spec,
        compiler_params=pltpu.CompilerParams(
            dimension_semantics=("arbitrary",),
            # explicit scoped-VMEM budget: above the 32 MiB default, below v7x's
            # 64 MiB physical capacity.
            vmem_limit_bytes=48 * 1024 * 1024,
        ),
    )(gates_seq, whh_t)


# ----------------------------- weight preparation ------------------------------
def _prep_layer_weights(w_ih, w_hh, b_ih, b_hh, Dp, Hp, dtype):
    """Pad PyTorch-layout LSTM weights per-gate to (Dp, 4Hp)/(Hp, 4Hp)/(1, 4Hp)
    and transpose for row-major matmuls. Zero padding keeps padded gate columns
    at exactly 0 pre-activation, so padded h/c columns stay exactly 0."""
    H4, D = w_ih.shape
    H = w_hh.shape[1]

    w_ih4 = w_ih.reshape(4, H, D)
    w_ih4 = jnp.pad(w_ih4, ((0, 0), (0, Hp - H), (0, Dp - D)))
    wih_t = w_ih4.reshape(4 * Hp, Dp).T                     # (Dp, 4Hp)

    w_hh4 = w_hh.reshape(4, H, H)
    w_hh4 = jnp.pad(w_hh4, ((0, 0), (0, Hp - H), (0, Hp - H)))
    whh_t = w_hh4.reshape(4 * Hp, Hp).T                     # (Hp, 4Hp)

    b = (b_ih + b_hh).reshape(4, H)
    b = jnp.pad(b, ((0, 0), (0, Hp - H))).reshape(1, 4 * Hp)

    return wih_t.astype(dtype), whh_t.astype(dtype), b.astype(jnp.float32)


# ------------------------------ Encoder module ---------------------------------
def init_encoder_params(key, vocab_size, embed_size, hidden_size, num_layers):
    k, k_emb = jax.random.split(key)
    params = {"embedding": jax.random.normal(k_emb, (vocab_size, embed_size),
                                             jnp.float32)}
    bound = 1.0 / (hidden_size ** 0.5)
    layers = []
    in_dim = embed_size
    for _ in range(num_layers):
        k, k1, k2, k3, k4 = jax.random.split(k, 5)
        w_ih = jax.random.uniform(k1, (4 * hidden_size, in_dim), jnp.float32,
                                  -bound, bound)
        w_hh = jax.random.uniform(k2, (4 * hidden_size, hidden_size), jnp.float32,
                                  -bound, bound)
        b_ih = jax.random.uniform(k3, (4 * hidden_size,), jnp.float32, -bound, bound)
        b_hh = jax.random.uniform(k4, (4 * hidden_size,), jnp.float32, -bound, bound)
        layers.append((w_ih, w_hh, b_ih, b_hh))
        in_dim = hidden_size
    params["lstm"] = layers
    return params


def encoder_forward(params, x, *, compute_dtype=jnp.float32):
    """x: (seq_len, batch) int32 -> (hidden, cell), each (num_layers, batch, H).

    compute_dtype controls the matmul-operand dtype (weights / LHS); carries,
    gate non-linearities and accumulation stay f32. Use jnp.bfloat16 for large
    H on v6e/v7x to halve weight VMEM and double MXU rate.
    """
    # Embedding gather kept as JAX glue; dropout = identity (eval mode).
    emb = jnp.take(params["embedding"], x, axis=0)          # (seq, B, E)
    seq, B, E = emb.shape
    H = params["lstm"][0][1].shape[1]
    Bp = _round_up(B, 8)                                    # f32 sublane multiple
    Hp = _round_up(H, 128)                                  # lane multiple

    inp = jnp.pad(emb, ((0, 0), (0, Bp - B), (0, 0))).astype(jnp.float32)
    Din = E
    h_list, c_list = [], []
    for (w_ih, w_hh, b_ih, b_hh) in params["lstm"]:
        wih_t, whh_t, b = _prep_layer_weights(w_ih, w_hh, b_ih, b_hh,
                                              Din, Hp, compute_dtype)
        # (1) non-recurrent projection for the whole sequence: one big GEMM.
        x_flat = inp.reshape(seq * Bp, Din).astype(compute_dtype)
        gates = input_projection_pallas(x_flat, wih_t, b)   # (seq*Bp, 4Hp) f32
        gates = gates.reshape(seq, Bp, 4 * Hp)
        # (2) thin sequential recurrence.
        out_seq, h_f, c_f = lstm_recurrence_pallas(gates, whh_t)
        h_list.append(h_f[:B, :H])
        c_list.append(c_f[:B, :H])
        inp = out_seq                                       # inter-layer dropout: identity
        Din = Hp
    return jnp.stack(h_list, axis=0), jnp.stack(c_list, axis=0)


# ------------------------------- JAX reference ---------------------------------
def _lstm_layer_ref(x_seq, w_ih, w_hh, b_ih, b_hh):
    H = w_hh.shape[1]
    batch = x_seq.shape[1]

    def step(carry, x_t):
        h, c = carry
        gates = x_t @ w_ih.T + h @ w_hh.T + b_ih + b_hh
        i = jax.nn.sigmoid(gates[:, :H])
        f = jax.nn.sigmoid(gates[:, H:2 * H])
        g = jnp.tanh(gates[:, 2 * H:3 * H])
        o = jax.nn.sigmoid(gates[:, 3 * H:4 * H])
        c = f * c + i * g
        h = o * jnp.tanh(c)
        return (h, c), h

    init = (jnp.zeros((batch, H), jnp.float32), jnp.zeros((batch, H), jnp.float32))
    (h, c), outs = jax.lax.scan(step, init, x_seq)
    return outs, h, c


def encoder_forward_ref(params, x):
    emb = jnp.take(params["embedding"], x, axis=0)
    inp = emb
    h_list, c_list = [], []
    for (w_ih, w_hh, b_ih, b_hh) in params["lstm"]:
        out_seq, h_f, c_f = _lstm_layer_ref(inp, w_ih, w_hh, b_ih, b_hh)
        h_list.append(h_f)
        c_list.append(c_f)
        inp = out_seq
    return jnp.stack(h_list, axis=0), jnp.stack(c_list, axis=0)


# ------------------------------------ main --------------------------------------
if __name__ == "__main__":
    # Small shapes consistent with the module's forward.
    vocab_size = 50
    embed_size = 32       # stands in for embedding_size=300
    hidden_size = 32      # stands in for hidden_size=1024
    num_layers = 2
    seq_len, batch = 8, 2
    p_dropout = 0.1       # eval mode -> identity

    key = jax.random.PRNGKey(0)
    k_params, k_x = jax.random.split(key)
    params = init_encoder_params(k_params, vocab_size, embed_size,
                                 hidden_size, num_layers)
    x = jax.random.randint(k_x, (seq_len, batch), 0, vocab_size, dtype=jnp.int32)

    # f32 path: exact match against the pure-JAX reference.
    fwd = jax.jit(functools.partial(encoder_forward, params))
    hidden, cell = fwd(x)
    hidden = jax.block_until_ready(hidden)
    cell = jax.block_until_ready(cell)

    hidden_ref, cell_ref = encoder_forward_ref(params, x)

    assert hidden.shape == (num_layers, batch, hidden_size)
    assert cell.shape == (num_layers, batch, hidden_size)
    assert jnp.allclose(hidden, hidden_ref, atol=1e-5, rtol=1e-5)
    assert jnp.allclose(cell, cell_ref, atol=1e-5, rtol=1e-5)

    # bf16-weight fast path (recommended for realistic H=1024 on v6e/v7x):
    # matmul operands bf16, f32 accumulation / gate math. Loose smoke-test check.
    fwd_bf16 = jax.jit(functools.partial(encoder_forward, params,
                                         compute_dtype=jnp.bfloat16))
    hidden_bf, cell_bf = fwd_bf16(x)
    hidden_bf = jax.block_until_ready(hidden_bf)
    cell_bf = jax.block_until_ready(cell_bf)
    assert hidden_bf.shape == (num_layers, batch, hidden_size)
    assert jnp.allclose(hidden_bf, hidden_ref, atol=2e-1, rtol=2e-1)

    print("KERNEL_OK")
</pallas_src>

<mosaic_0001>
module attributes {stable_mosaic.version = 11 : i64} {
  func.func @_input_proj_kernel(%arg0: i32, %arg1: i32, %arg2: memref<64x32xf32, #tpu.memory_space<vmem>>, %arg3: memref<32x512xf32, #tpu.memory_space<vmem>>, %arg4: memref<1x512xf32, #tpu.memory_space<vmem>>, %arg5: memref<64x512xf32, #tpu.memory_space<vmem>>) attributes {dimension_semantics = [#tpu.dimension_semantics<parallel>, #tpu.dimension_semantics<parallel>], iteration_bounds = array<i64: 1, 1>, scalar_prefetch = 0 : i64, scratch_operands = 0 : i64, tpu.core_type = #tpu.core_type<tc>, window_params = [{transform_indices = @transform_0, window_bounds = array<i64: 64, 32>}, {transform_indices = @transform_1, window_bounds = array<i64: 32, 512>}, {transform_indices = @transform_2, window_bounds = array<i64: 1, 512>}, {transform_indices = @transform_3, window_bounds = array<i64: 64, 512>}]} {
    %c0 = arith.constant 0 : index
    %c0_0 = arith.constant 0 : index
    %0 = vector.load %arg2[%c0, %c0_0] : memref<64x32xf32, #tpu.memory_space<vmem>>, vector<64x32xf32>
    %c0_1 = arith.constant 0 : index
    %c0_2 = arith.constant 0 : index
    %1 = vector.load %arg3[%c0_1, %c0_2] : memref<32x512xf32, #tpu.memory_space<vmem>>, vector<32x512xf32>
    %cst = arith.constant dense<0.000000e+00> : vector<64x512xf32>
    %2 = tpu.matmul %0, %1, %cst {dimension_numbers = #tpu.dot_dimension_numbers<[1], [0], [0], [1], [0, 0, 1, 1], [], []>} : vector<64x32xf32>, vector<32x512xf32>, vector<64x512xf32> -> vector<64x512xf32>
    %c0_3 = arith.constant 0 : index
    %c0_4 = arith.constant 0 : index
    %3 = vector.load %arg4[%c0_3, %c0_4] : memref<1x512xf32, #tpu.memory_space<vmem>>, vector<1x512xf32>
    %4 = vector.broadcast %3 : vector<1x512xf32> to vector<64x512xf32>
    %5 = arith.addf %2, %4 : vector<64x512xf32>
    %c0_5 = arith.constant 0 : index
    %c0_6 = arith.constant 0 : index
    %6 = vector.load %arg5[%c0_5, %c0_6] : memref<64x512xf32, #tpu.memory_space<vmem>>, vector<64x512xf32>
    tpu.vector_store %arg5[%c0_5, %c0_6], %5 {strides = array<i32>} : memref<64x512xf32, #tpu.memory_space<vmem>>, vector<64x512xf32>,
    return
  }
  func.func @transform_0(%arg0: i32, %arg1: i32) -> (i32, i32) {
    %c0_i32 = arith.constant 0 : i32
    %c0_i32_0 = arith.constant 0 : i32
    return %arg0, %c0_i32 : i32, i32
  }
  func.func @transform_1(%arg0: i32, %arg1: i32) -> (i32, i32) {
    %c0_i32 = arith.constant 0 : i32
    %c0_i32_0 = arith.constant 0 : i32
    return %c0_i32, %arg1 : i32, i32
  }
  func.func @transform_2(%arg0: i32, %arg1: i32) -> (i32, i32) {
    %c0_i32 = arith.constant 0 : i32
    %c0_i32_0 = arith.constant 0 : i32
    return %c0_i32, %arg1 : i32, i32
  }
  func.func @transform_3(%arg0: i32, %arg1: i32) -> (i32, i32) {
    %c0_i32 = arith.constant 0 : i32
    return %arg0, %arg1 : i32, i32
  }
}

module attributes {stable_mosaic.version = 11 : i64} {
  func.func @_input_proj_kernel(%arg0: i32, %arg1: i32, %arg2: memref<64x128xf32, #tpu.memory_space<vmem>>, %arg3: memref<128x512xf32, #tpu.memory_space<vmem>>, %arg4: memref<1x512xf32, #tpu.memory_space<vmem>>, %arg5: memref<64x512xf32, #tpu.memory_space<vmem>>) attributes {dimension_semantics = [#tpu.dimension_semantics<parallel>, #tpu.dimension_semantics<parallel>], iteration_bounds = array<i64: 1, 1>, scalar_prefetch = 0 : i64, scratch_operands = 0 : i64, tpu.core_type = #tpu.core_type<tc>, window_params = [{transform_indices = @transform_0, window_bounds = array<i64: 64, 128>}, {transform_indices = @transform_1, window_bounds = array<i64: 128, 512>}, {transform_indices = @transform_2, window_bounds = array<i64: 1, 512>}, {transform_indices = @transform_3, window_bounds = array<i64: 64, 512>}]} {
    %c0 = arith.constant 0 : index
    %c0_0 = arith.constant 0 : index
    %0 = vector.load %arg2[%c0, %c0_0] : memref<64x128xf32, #tpu.memory_space<vmem>>, vector<64x128xf32>
    %c0_1 = arith.constant 0 : index
    %c0_2 = arith.constant 0 : index
    %1 = vector.load %arg3[%c0_1, %c0_2] : memref<128x512xf32, #tpu.memory_space<vmem>>, vector<128x512xf32>
    %cst = arith.constant dense<0.000000e+00> : vector<64x512xf32>
    %2 = tpu.matmul %0, %1, %cst {dimension_numbers = #tpu.dot_dimension_numbers<[1], [0], [0], [1], [0, 0, 1, 1], [], []>} : vector<64x128xf32>, vector<128x512xf32>, vector<64x512xf32> -> vector<64x512xf32>
    %c0_3 = arith.constant 0 : index
    %c0_4 = arith.constant 0 : index
    %3 = vector.load %arg4[%c0_3, %c0_4] : memref<1x512xf32, #tpu.memory_space<vmem>>, vector<1x512xf32>
    %4 = vector.broadcast %3 : vector<1x512xf32> to vector<64x512xf32>
    %5 = arith.addf %2, %4 : vector<64x512xf32>
    %c0_5 = arith.constant 0 : index
    %c0_6 = arith.constant 0 : index
    %6 = vector.load %arg5[%c0_5, %c0_6] : memref<64x512xf32, #tpu.memory_space<vmem>>, vector<64x512xf32>
    tpu.vector_store %arg5[%c0_5, %c0_6], %5 {strides = array<i32>} : memref<64x512xf32, #tpu.memory_space<vmem>>, vector<64x512xf32>,
    return
  }
  func.func @transform_0(%arg0: i32, %arg1: i32) -> (i32, i32) {
    %c0_i32 = arith.constant 0 : i32
    %c0_i32_0 = arith.constant 0 : i32
    return %arg0, %c0_i32 : i32, i32
  }
  func.func @transform_1(%arg0: i32, %arg1: i32) -> (i32, i32) {
    %c0_i32 = arith.constant 0 : i32
    %c0_i32_0 = arith.constant 0 : i32
    return %c0_i32, %arg1 : i32, i32
  }
  func.func @transform_2(%arg0: i32, %arg1: i32) -> (i32, i32) {
    %c0_i32 = arith.constant 0 : i32
    %c0_i32_0 = arith.constant 0 : i32
    return %c0_i32, %arg1 : i32, i32
  }
  func.func @transform_3(%arg0: i32, %arg1: i32) -> (i32, i32) {
    %c0_i32 = arith.constant 0 : i32
    return %arg0, %arg1 : i32, i32
  }
}

module attributes {stable_mosaic.version = 11 : i64} {
  func.func @_lstm_recurrent_kernel(%arg0: i32, %arg1: memref<8x8x512xf32, #tpu.memory_space<vmem>>, %arg2: memref<128x512xf32, #tpu.memory_space<any>>, %arg3: memref<8x8x128xf32, #tpu.memory_space<vmem>>, %arg4: memref<8x128xf32, #tpu.memory_space<vmem>>, %arg5: memref<8x128xf32, #tpu.memory_space<vmem>>, %arg6: memref<128x512xf32, #tpu.memory_space<vmem>>, %arg7: memref<8x128xf32, #tpu.memory_space<vmem>>, %arg8: memref<8x128xf32, #tpu.memory_space<vmem>>) attributes {dimension_semantics = [#tpu.dimension_semantics<arbitrary>], iteration_bounds = array<i64: 1>, scalar_prefetch = 0 : i64, scratch_operands = 3 : i64, tpu.core_type = #tpu.core_type<tc>, window_params = [{transform_indices = @transform_0, window_bounds = array<i64: 8, 8, 512>}, {}, {transform_indices = @transform_2, window_bounds = array<i64: 8, 8, 128>}, {pipeline_mode = #tpu.pipeline_mode<synchronous>, transform_indices = @transform_3, window_bounds = array<i64: 8, 128>}, {pipeline_mode = #tpu.pipeline_mode<synchronous>, transform_indices = @transform_4, window_bounds = array<i64: 8, 128>}]} {
    %c0_i32 = arith.constant 0 : i32
    %0 = arith.cmpi eq, %arg0, %c0_i32 : i32
    %1 = arith.extui %0 : i1 to i32
    %c0_i32_0 = arith.constant 0 : i32
    %2 = arith.cmpi ne, %1, %c0_i32_0 : i32
    scf.if %2 {
      "tpu.region"() ({
        %315 = tpu.sem_alloc : memref<!tpu.dma_semaphore, #tpu.memory_space<semaphore_mem>>
        tpu.enqueue_dma source(%arg2 : memref<128x512xf32, #tpu.memory_space<any>>) target(%arg6 : memref<128x512xf32, #tpu.memory_space<vmem>>) target_semaphore(%315 : memref<!tpu.dma_semaphore, #tpu.memory_space<semaphore_mem>>)
        tpu.wait_dma2 semaphore(%315 : memref<!tpu.dma_semaphore, #tpu.memory_space<semaphore_mem>>) src(%arg2 : memref<128x512xf32, #tpu.memory_space<any>>) dst(%arg6 : memref<128x512xf32, #tpu.memory_space<vmem>>)
        tpu.yield
      }) : () -> ()
      %cst_132 = arith.constant 0.000000e+00 : f32
      %311 = vector.broadcast %cst_132 : f32 to vector<8x128xf32>
      %c0_133 = arith.constant 0 : index
      %c0_134 = arith.constant 0 : index
      %312 = vector.load %arg7[%c0_133, %c0_134] : memref<8x128xf32, #tpu.memory_space<vmem>>, vector<8x128xf32>
      tpu.vector_store %arg7[%c0_133, %c0_134], %311 {strides = array<i32>} : memref<8x128xf32, #tpu.memory_space<vmem>>, vector<8x128xf32>,
      %cst_135 = arith.constant 0.000000e+00 : f32
      %313 = vector.broadcast %cst_135 : f32 to vector<8x128xf32>
      %c0_136 = arith.constant 0 : index
      %c0_137 = arith.constant 0 : index
      %314 = vector.load %arg8[%c0_136, %c0_137] : memref<8x128xf32, #tpu.memory_space<vmem>>, vector<8x128xf32>
      tpu.vector_store %arg8[%c0_136, %c0_137], %313 {strides = array<i32>} : memref<8x128xf32, #tpu.memory_space<vmem>>, vector<8x128xf32>,
    } else {
    }
    %c0 = arith.constant 0 : index
    %c0_1 = arith.constant 0 : index
    %3 = vector.load %arg6[%c0, %c0_1] : memref<128x512xf32, #tpu.memory_space<vmem>>, vector<128x512xf32>
    %c0_i32_2 = arith.constant 0 : i32
    %4 = arith.index_cast %c0_i32_2 : i32 to index
    %c0_3 = arith.constant 0 : index
    %c0_4 = arith.constant 0 : index
    %5 = vector.load %arg1[%4, %c0_3, %c0_4] : memref<8x8x512xf32, #tpu.memory_space<vmem>>, vector<1x8x512xf32>
    %6 = vector.shape_cast %5 : vector<1x8x512xf32> to vector<8x512xf32>
    %c0_5 = arith.constant 0 : index
    %c0_6 = arith.constant 0 : index
    %7 = vector.load %arg7[%c0_5, %c0_6] : memref<8x128xf32, #tpu.memory_space<vmem>>, vector<8x128xf32>
    %cst = arith.constant dense<0.000000e+00> : vector<8x512xf32>
    %8 = tpu.matmul %7, %3, %cst {dimension_numbers = #tpu.dot_dimension_numbers<[1], [0], [0], [1], [0, 0, 1, 1], [], []>} : vector<8x128xf32>, vector<128x512xf32>, vector<8x512xf32> -> vector<8x512xf32>
    %9 = arith.addf %6, %8 : vector<8x512xf32>
    %10 = vector.extract_strided_slice %9 {offsets = [0, 0], sizes = [8, 128], strides = [1, 1]} : vector<8x512xf32> to vector<8x128xf32>
    %11 = arith.negf %10 : vector<8x128xf32>
    %12 = math.exp %11 : vector<8x128xf32>
    %cst_7 = arith.constant 1.000000e+00 : f32
    %13 = vector.broadcast %cst_7 : f32 to vector<8x128xf32>
    %14 = arith.addf %13, %12 : vector<8x128xf32>
    %15 = arith.divf %13, %14 : vector<8x128xf32>
    %16 = vector.extract_strided_slice %9 {offsets = [0, 128], sizes = [8, 128], strides = [1, 1]} : vector<8x512xf32> to vector<8x128xf32>
    %17 = arith.negf %16 : vector<8x128xf32>
    %18 = math.exp %17 : vector<8x128xf32>
    %cst_8 = arith.constant 1.000000e+00 : f32
    %19 = vector.broadcast %cst_8 : f32 to vector<8x128xf32>
    %20 = arith.addf %19, %18 : vector<8x128xf32>
    %21 = arith.divf %19, %20 : vector<8x128xf32>
    %22 = vector.extract_strided_slice %9 {offsets = [0, 256], sizes = [8, 128], strides = [1, 1]} : vector<8x512xf32> to vector<8x128xf32>
    %23 = math.tanh %22 : vector<8x128xf32>
    %24 = vector.extract_strided_slice %9 {offsets = [0, 384], sizes = [8, 128], strides = [1, 1]} : vector<8x512xf32> to vector<8x128xf32>
    %25 = arith.negf %24 : vector<8x128xf32>
    %26 = math.exp %25 : vector<8x128xf32>
    %cst_9 = arith.constant 1.000000e+00 : f32
    %27 = vector.broadcast %cst_9 : f32 to vector<8x128xf32>
    %28 = arith.addf %27, %26 : vector<8x128xf32>
    %29 = arith.divf %27, %28 : vector<8x128xf32>
    %c0_10 = arith.constant 0 : index
    %c0_11 = arith.constant 0 : index
    %30 = vector.load %arg8[%c0_10, %c0_11] : memref<8x128xf32, #tpu.memory_space<vmem>>, vector<8x128xf32>
    %31 = arith.mulf %21, %30 : vector<8x128xf32>
    %32 = arith.mulf %15, %23 : vector<8x128xf32>
    %33 = arith.addf %31, %32 : vector<8x128xf32>
    %34 = math.tanh %33 : vector<8x128xf32>
    %35 = arith.mulf %29, %34 : vector<8x128xf32>
    %c0_12 = arith.constant 0 : index
    %c0_13 = arith.constant 0 : index
    %36 = vector.load %arg7[%c0_12, %c0_13] : memref<8x128xf32, #tpu.memory_space<vmem>>, vector<8x128xf32>
    tpu.vector_store %arg7[%c0_12, %c0_13], %35 {strides = array<i32>} : memref<8x128xf32, #tpu.memory_space<vmem>>, vector<8x128xf32>,
    %c0_14 = arith.constant 0 : index
    %c0_15 = arith.constant 0 : index
    %37 = vector.load %arg8[%c0_14, %c0_15] : memref<8x128xf32, #tpu.memory_space<vmem>>, vector<8x128xf32>
    tpu.vector_store %arg8[%c0_14, %c0_15], %33 {strides = array<i32>} : memref<8x128xf32, #tpu.memory_space<vmem>>, vector<8x128xf32>,
    %38 = arith.index_cast %c0_i32_2 : i32 to index
    %c0_16 = arith.constant 0 : index
    %c0_17 = arith.constant 0 : index
    %39 = vector.load %arg3[%38, %c0_16, %c0_17] : memref<8x8x128xf32, #tpu.memory_space<vmem>>, vector<1x8x128xf32>
    %40 = vector.shape_cast %39 : vector<1x8x128xf32> to vector<8x128xf32>
    %41 = vector.shape_cast %35 : vector<8x128xf32> to vector<1x8x128xf32>
    tpu.vector_store %arg3[%38, %c0_16, %c0_17], %41 {strides = array<i32>} : memref<8x8x128xf32, #tpu.memory_space<vmem>>, vector<1x8x128xf32>,
    %c1_i32 = arith.constant 1 : i32
    %42 = arith.index_cast %c1_i32 : i32 to index
    %c0_18 = arith.constant 0 : index
    %c0_19 = arith.constant 0 : index
    %43 = vector.load %arg1[%42, %c0_18, %c0_19] : memref<8x8x512xf32, #tpu.memory_space<vmem>>, vector<1x8x512xf32>
    %44 = vector.shape_cast %43 : vector<1x8x512xf32> to vector<8x512xf32>
    %c0_20 = arith.constant 0 : index
    %c0_21 = arith.constant 0 : index
    %45 = vector.load %arg7[%c0_20, %c0_21] : memref<8x128xf32, #tpu.memory_space<vmem>>, vector<8x128xf32>
    %cst_22 = arith.constant dense<0.000000e+00> : vector<8x512xf32>
    %46 = tpu.matmul %45, %3, %cst_22 {dimension_numbers = #tpu.dot_dimension_numbers<[1], [0], [0], [1], [0, 0, 1, 1], [], []>} : vector<8x128xf32>, vector<128x512xf32>, vector<8x512xf32> -> vector<8x512xf32>
    %47 = arith.addf %44, %46 : vector<8x512xf32>
    %48 = vector.extract_strided_slice %47 {offsets = [0, 0], sizes = [8, 128], strides = [1, 1]} : vector<8x512xf32> to vector<8x128xf32>
    %49 = arith.negf %48 : vector<8x128xf32>
    %50 = math.exp %49 : vector<8x128xf32>
    %cst_23 = arith.constant 1.000000e+00 : f32
    %51 = vector.broadcast %cst_23 : f32 to vector<8x128xf32>
    %52 = arith.addf %51, %50 : vector<8x128xf32>
    %53 = arith.divf %51, %52 : vector<8x128xf32>
    %54 = vector.extract_strided_slice %47 {offsets = [0, 128], sizes = [8, 128], strides = [1, 1]} : vector<8x512xf32> to vector<8x128xf32>
    %55 = arith.negf %54 : vector<8x128xf32>
    %56 = math.exp %55 : vector<8x128xf32>
    %cst_24 = arith.constant 1.000000e+00 : f32
    %57 = vector.broadcast %cst_24 : f32 to vector<8x128xf32>
    %58 = arith.addf %57, %56 : vector<8x128xf32>
    %59 = arith.divf %57, %58 : vector<8x128xf32>
    %60 = vector.extract_strided_slice %47 {offsets = [0, 256], sizes = [8, 128], strides = [1, 1]} : vector<8x512xf32> to vector<8x128xf32>
    %61 = math.tanh %60 : vector<8x128xf32>
    %62 = vector.extract_strided_slice %47 {offsets = [0, 384], sizes = [8, 128], strides = [1, 1]} : vector<8x512xf32> to vector<8x128xf32>
    %63 = arith.negf %62 : vector<8x128xf32>
    %64 = math.exp %63 : vector<8x128xf32>
    %cst_25 = arith.constant 1.000000e+00 : f32
    %65 = vector.broadcast %cst_25 : f32 to vector<8x128xf32>
    %66 = arith.addf %65, %64 : vector<8x128xf32>
    %67 = arith.divf %65, %66 : vector<8x128xf32>
    %c0_26 = arith.constant 0 : index
    %c0_27 = arith.constant 0 : index
    %68 = vector.load %arg8[%c0_26, %c0_27] : memref<8x128xf32, #tpu.memory_space<vmem>>, vector<8x128xf32>
    %69 = arith.mulf %59, %68 : vector<8x128xf32>
    %70 = arith.mulf %53, %61 : vector<8x128xf32>
    %71 = arith.addf %69, %70 : vector<8x128xf32>
    %72 = math.tanh %71 : vector<8x128xf32>
    %73 = arith.mulf %67, %72 : vector<8x128xf32>
    %c0_28 = arith.constant 0 : index
    %c0_29 = arith.constant 0 : index
    %74 = vector.load %arg7[%c0_28, %c0_29] : memref<8x128xf32, #tpu.memory_space<vmem>>, vector<8x128xf32>
    tpu.vector_store %arg7[%c0_28, %c0_29], %73 {strides = array<i32>} : memref<8x128xf32, #tpu.memory_space<vmem>>, vector<8x128xf32>,
    %c0_30 = arith.constant 0 : index
    %c0_31 = arith.constant 0 : index
    %75 = vector.load %arg8[%c0_30, %c0_31] : memref<8x128xf32, #tpu.memory_space<vmem>>, vector<8x128xf32>
    tpu.vector_store %arg8[%c0_30, %c0_31], %71 {strides = array<i32>} : memref<8x128xf32, #tpu.memory_space<vmem>>, vector<8x128xf32>,
    %76 = arith.index_cast %c1_i32 : i32 to index
    %c0_32 = arith.constant 0 : index
    %c0_33 = arith.constant 0 : index
    %77 = vector.load %arg3[%76, %c0_32, %c0_33] : memref<8x8x128xf32, #tpu.memory_space<vmem>>, vector<1x8x128xf32>
    %78 = vector.shape_cast %77 : vector<1x8x128xf32> to vector<8x128xf32>
    %79 = vector.shape_cast %73 : vector<8x128xf32> to vector<1x8x128xf32>
    tpu.vector_store %arg3[%76, %c0_32, %c0_33], %79 {strides = array<i32>} : memref<8x8x128xf32, #tpu.memory_space<vmem>>, vector<1x8x128xf32>,
    %c2_i32 = arith.constant 2 : i32
    %80 = arith.index_cast %c2_i32 : i32 to index
    %c0_34 = arith.constant 0 : index
    %c0_35 = arith.constant 0 : index
    %81 = vector.load %arg1[%80, %c0_34, %c0_35] : memref<8x8x512xf32, #tpu.memory_space<vmem>>, vector<1x8x512xf32>
    %82 = vector.shape_cast %81 : vector<1x8x512xf32> to vector<8x512xf32>
    %c0_36 = arith.constant 0 : index
    %c0_37 = arith.constant 0 : index
    %83 = vector.load %arg7[%c0_36, %c0_37] : memref<8x128xf32, #tpu.memory_space<vmem>>, vector<8x128xf32>
    %cst_38 = arith.constant dense<0.000000e+00> : vector<8x512xf32>
    %84 = tpu.matmul %83, %3, %cst_38 {dimension_numbers = #tpu.dot_dimension_numbers<[1], [0], [0], [1], [0, 0, 1, 1], [], []>} : vector<8x128xf32>, vector<128x512xf32>, vector<8x512xf32> -> vector<8x512xf32>
    %85 = arith.addf %82, %84 : vector<8x512xf32>
    %86 = vector.extract_strided_slice %85 {offsets = [0, 0], sizes = [8, 128], strides = [1, 1]} : vector<8x512xf32> to vector<8x128xf32>
    %87 = arith.negf %86 : vector<8x128xf32>
    %88 = math.exp %87 : vector<8x128xf32>
    %cst_39 = arith.constant 1.000000e+00 : f32
    %89 = vector.broadcast %cst_39 : f32 to vector<8x128xf32>
    %90 = arith.addf %89, %88 : vector<8x128xf32>
    %91 = arith.divf %89, %90 : vector<8x128xf32>
    %92 = vector.extract_strided_slice %85 {offsets = [0, 128], sizes = [8, 128], strides = [1, 1]} : vector<8x512xf32> to vector<8x128xf32>
    %93 = arith.negf %92 : vector<8x128xf32>
    %94 = math.exp %93 : vector<8x128xf32>
    %cst_40 = arith.constant 1.000000e+00 : f32
    %95 = vector.broadcast %cst_40 : f32 to vector<8x128xf32>
    %96 = arith.addf %95, %94 : vector<8x128xf32>
    %97 = arith.divf %95, %96 : vector<8x128xf32>
    %98 = vector.extract_strided_slice %85 {offsets = [0, 256], sizes = [8, 128], strides = [1, 1]} : vector<8x512xf32> to vector<8x128xf32>
    %99 = math.tanh %98 : vector<8x128xf32>
    %100 = vector.extract_strided_slice %85 {offsets = [0, 384], sizes = [8, 128], strides = [1, 1]} : vector<8x512xf32> to vector<8x128xf32>
    %101 = arith.negf %100 : vector<8x128xf32>
    %102 = math.exp %101 : vector<8x128xf32>
    %cst_41 = arith.constant 1.000000e+00 : f32
    %103 = vector.broadcast %cst_41 : f32 to vector<8x128xf32>
    %104 = arith.addf %103, %102 : vector<8x128xf32>
    %105 = arith.divf %103, %104 : vector<8x128xf32>
    %c0_42 = arith.constant 0 : index
    %c0_43 = arith.constant 0 : index
    %106 = vector.load %arg8[%c0_42, %c0_43] : memref<8x128xf32, #tpu.memory_space<vmem>>, vector<8x128xf32>
    %107 = arith.mulf %97, %106 : vector<8x128xf32>
    %108 = arith.mulf %91, %99 : vector<8x128xf32>
    %109 = arith.addf %107, %108 : vector<8x128xf32>
    %110 = math.tanh %109 : vector<8x128xf32>
    %111 = arith.mulf %105, %110 : vector<8x128xf32>
    %c0_44 = arith.constant 0 : index
    %c0_45 = arith.constant 0 : index
    %112 = vector.load %arg7[%c0_44, %c0_45] : memref<8x128xf32, #tpu.memory_space<vmem>>, vector<8x128xf32>
    tpu.vector_store %arg7[%c0_44, %c0_45], %111 {strides = array<i32>} : memref<8x128xf32, #tpu.memory_space<vmem>>, vector<8x128xf32>,
    %c0_46 = arith.constant 0 : index
    %c0_47 = arith.constant 0 : index
    %113 = vector.load %arg8[%c0_46, %c0_47] : memref<8x128xf32, #tpu.memory_space<vmem>>, vector<8x128xf32>
    tpu.vector_store %arg8[%c0_46, %c0_47], %109 {strides = array<i32>} : memref<8x128xf32, #tpu.memory_space<vmem>>, vector<8x128xf32>,
    %114 = arith.index_cast %c2_i32 : i32 to index
    %c0_48 = arith.constant 0 : index
    %c0_49 = arith.constant 0 : index
    %115 = vector.load %arg3[%114, %c0_48, %c0_49] : memref<8x8x128xf32, #tpu.memory_space<vmem>>, vector<1x8x128xf32>
    %116 = vector.shape_cast %115 : vector<1x8x128xf32> to vector<8x128xf32>
    %117 = vector.shape_cast %111 : vector<8x128xf32> to vector<1x8x128xf32>
    tpu.vector_store %arg3[%114, %c0_48, %c0_49], %117 {strides = array<i32>} : memref<8x8x128xf32, #tpu.memory_space<vmem>>, vector<1x8x128xf32>,
    %c3_i32 = arith.constant 3 : i32
    %118 = arith.index_cast %c3_i32 : i32 to index
    %c0_50 = arith.constant 0 : index
    %c0_51 = arith.constant 0 : index
    %119 = vector.load %arg1[%118, %c0_50, %c0_51] : memref<8x8x512xf32, #tpu.memory_space<vmem>>, vector<1x8x512xf32>
    %120 = vector.shape_cast %119 : vector<1x8x512xf32> to vector<8x512xf32>
    %c0_52 = arith.constant 0 : index
    %c0_53 = arith.constant 0 : index
    %121 = vector.load %arg7[%c0_52, %c0_53] : memref<8x128xf32, #tpu.memory_space<vmem>>, vector<8x128xf32>
    %cst_54 = arith.constant dense<0.000000e+00> : vector<8x512xf32>
    %122 = tpu.matmul %121, %3, %cst_54 {dimension_numbers = #tpu.dot_dimension_numbers<[1], [0], [0], [1], [0, 0, 1, 1], [], []>} : vector<8x128xf32>, vector<128x512xf32>, vector<8x512xf32> -> vector<8x512xf32>
    %123 = arith.addf %120, %122 : vector<8x512xf32>
    %124 = vector.extract_strided_slice %123 {offsets = [0, 0], sizes = [8, 128], strides = [1, 1]} : vector<8x512xf32> to vector<8x128xf32>
    %125 = arith.negf %124 : vector<8x128xf32>
    %126 = math.exp %125 : vector<8x128xf32>
    %cst_55 = arith.constant 1.000000e+00 : f32
    %127 = vector.broadcast %cst_55 : f32 to vector<8x128xf32>
    %128 = arith.addf %127, %126 : vector<8x128xf32>
    %129 = arith.divf %127, %128 : vector<8x128xf32>
    %130 = vector.extract_strided_slice %123 {offsets = [0, 128], sizes = [8, 128], strides = [1, 1]} : vector<8x512xf32> to vector<8x128xf32>
    %131 = arith.negf %130 : vector<8x128xf32>
    %132 = math.exp %131 : vector<8x128xf32>
    %cst_56 = arith.constant 1.000000e+00 : f32
    %133 = vector.broadcast %cst_56 : f32 to vector<8x128xf32>
    %134 = arith.addf %133, %132 : vector<8x128xf32>
    %135 = arith.divf %133, %134 : vector<8x128xf32>
    %136 = vector.extract_strided_slice %123 {offsets = [0, 256], sizes = [8, 128], strides = [1, 1]} : vector<8x512xf32> to vector<8x128xf32>
    %137 = math.tanh %136 : vector<8x128xf32>
    %138 = vector.extract_strided_slice %123 {offsets = [0, 384], sizes = [8, 128], strides = [1, 1]} : vector<8x512xf32> to vector<8x128xf32>
    %139 = arith.negf %138 : vector<8x128xf32>
    %140 = math.exp %139 : vector<8x128xf32>
    %cst_57 = arith.constant 1.000000e+00 : f32
    %141 = vector.broadcast %cst_57 : f32 to vector<8x128xf32>
    %142 = arith.addf %141, %140 : vector<8x128xf32>
    %143 = arith.divf %141, %142 : vector<8x128xf32>
    %c0_58 = arith.constant 0 : index
    %c0_59 = arith.constant 0 : index
    %144 = vector.load %arg8[%c0_58, %c0_59] : memref<8x128xf32, #tpu.memory_space<vmem>>, vector<8x128xf32>
    %145 = arith.mulf %135, %144 : vector<8x128xf32>
    %146 = arith.mulf %129, %137 : vector<8x128xf32>
    %147 = arith.addf %145, %146 : vector<8x128xf32>
    %148 = math.tanh %147 : vector<8x128xf32>
    %149 = arith.mulf %143, %148 : vector<8x128xf32>
    %c0_60 = arith.constant 0 : index
    %c0_61 = arith.constant 0 : index
    %150 = vector.load %arg7[%c0_60, %c0_61] : memref<8x128xf32, #tpu.memory_space<vmem>>, vector<8x128xf32>
    tpu.vector_store %arg7[%c0_60, %c0_61], %149 {strides = array<i32>} : memref<8x128xf32, #tpu.memory_space<vmem>>, vector<8x128xf32>,
    %c0_62 = arith.constant 0 : index
    %c0_63 = arith.constant 0 : index
    %151 = vector.load %arg8[%c0_62, %c0_63] : memref<8x128xf32, #tpu.memory_space<vmem>>, vector<8x128xf32>
    tpu.vector_store %arg8[%c0_62, %c0_63], %147 {strides = array<i32>} : memref<8x128xf32, #tpu.memory_space<vmem>>, vector<8x128xf32>,
    %152 = arith.index_cast %c3_i32 : i32 to index
    %c0_64 = arith.constant 0 : index
    %c0_65 = arith.constant 0 : index
    %153 = vector.load %arg3[%152, %c0_64, %c0_65] : memref<8x8x128xf32, #tpu.memory_space<vmem>>, vector<1x8x128xf32>
    %154 = vector.shape_cast %153 : vector<1x8x128xf32> to vector<8x128xf32>
    %155 = vector.shape_cast %149 : vector<8x128xf32> to vector<1x8x128xf32>
    tpu.vector_store %arg3[%152, %c0_64, %c0_65], %155 {strides = array<i32>} : memref<8x8x128xf32, #tpu.memory_space<vmem>>, vector<1x8x128xf32>,
    %c4_i32 = arith.constant 4 : i32
    %156 = arith.index_cast %c4_i32 : i32 to index
    %c0_66 = arith.constant 0 : index
    %c0_67 = arith.constant 0 : index
    %157 = vector.load %arg1[%156, %c0_66, %c0_67] : memref<8x8x512xf32, #tpu.memory_space<vmem>>, vector<1x8x512xf32>
    %158 = vector.shape_cast %157 : vector<1x8x512xf32> to vector<8x512xf32>
    %c0_68 = arith.constant 0 : index
    %c0_69 = arith.constant 0 : index
    %159 = vector.load %arg7[%c0_68, %c0_69] : memref<8x128xf32, #tpu.memory_space<vmem>>, vector<8x128xf32>
    %cst_70 = arith.constant dense<0.000000e+00> : vector<8x512xf32>
    %160 = tpu.matmul %159, %3, %cst_70 {dimension_numbers = #tpu.dot_dimension_numbers<[1], [0], [0], [1], [0, 0, 1, 1], [], []>} : vector<8x128xf32>, vector<128x512xf32>, vector<8x512xf32> -> vector<8x512xf32>
    %161 = arith.addf %158, %160 : vector<8x512xf32>
    %162 = vector.extract_strided_slice %161 {offsets = [0, 0], sizes = [8, 128], strides = [1, 1]} : vector<8x512xf32> to vector<8x128xf32>
    %163 = arith.negf %162 : vector<8x128xf32>
    %164 = math.exp %163 : vector<8x128xf32>
    %cst_71 = arith.constant 1.000000e+00 : f32
    %165 = vector.broadcast %cst_71 : f32 to vector<8x128xf32>
    %166 = arith.addf %165, %164 : vector<8x128xf32>
    %167 = arith.divf %165, %166 : vector<8x128xf32>
    %168 = vector.extract_strided_slice %161 {offsets = [0, 128], sizes = [8, 128], strides = [1, 1]} : vector<8x512xf32> to vector<8x128xf32>
    %169 = arith.negf %168 : vector<8x128xf32>
    %170 = math.exp %169 : vector<8x128xf32>
    %cst_72 = arith.constant 1.000000e+00 : f32
    %171 = vector.broadcast %cst_72 : f32 to vector<8x128xf32>
    %172 = arith.addf %171, %170 : vector<8x128xf32>
    %173 = arith.divf %171, %172 : vector<8x128xf32>
    %174 = vector.extract_strided_slice %161 {offsets = [0, 256], sizes = [8, 128], strides = [1, 1]} : vector<8x512xf32> to vector<8x128xf32>
    %175 = math.tanh %174 : vector<8x128xf32>
    %176 = vector.extract_strided_slice %161 {offsets = [0, 384], sizes = [8, 128], strides = [1, 1]} : vector<8x512xf32> to vector<8x128xf32>
    %177 = arith.negf %176 : vector<8x128xf32>
    %178 = math.exp %177 : vector<8x128xf32>
    %cst_73 = arith.constant 1.000000e+00 : f32
    %179 = vector.broadcast %cst_73 : f32 to vector<8x128xf32>
    %180 = arith.addf %179, %178 : vector<8x128xf32>
    %181 = arith.divf %179, %180 : vector<8x128xf32>
    %c0_74 = arith.constant 0 : index
    %c0_75 = arith.constant 0 : index
    %182 = vector.load %arg8[%c0_74, %c0_75] : memref<8x128xf32, #tpu.memory_space<vmem>>, vector<8x128xf32>
    %183 = arith.mulf %173, %182 : vector<8x128xf32>
    %184 = arith.mulf %167, %175 : vector<8x128xf32>
    %185 = arith.addf %183, %184 : vector<8x128xf32>
    %186 = math.tanh %185 : vector<8x128xf32>
    %187 = arith.mulf %181, %186 : vector<8x128xf32>
    %c0_76 = arith.constant 0 : index
    %c0_77 = arith.constant 0 : index
    %188 = vector.load %arg7[%c0_76, %c0_77] : memref<8x128xf32, #tpu.memory_space<vmem>>, vector<8x128xf32>
    tpu.vector_store %arg7[%c0_76, %c0_77], %187 {strides = array<i32>} : memref<8x128xf32, #tpu.memory_space<vmem>>, vector<8x128xf32>,
    %c0_78 = arith.constant 0 : index
    %c0_79 = arith.constant 0 : index
    %189 = vector.load %arg8[%c0_78, %c0_79] : memref<8x128xf32, #tpu.memory_space<vmem>>, vector<8x128xf32>
    tpu.vector_store %arg8[%c0_78, %c0_79], %185 {strides = array<i32>} : memref<8x128xf32, #tpu.memory_space<vmem>>, vector<8x128xf32>,
    %190 = arith.index_cast %c4_i32 : i32 to index
    %c0_80 = arith.constant 0 : index
    %c0_81 = arith.constant 0 : index
    %191 = vector.load %arg3[%190, %c0_80, %c0_81] : memref<8x8x128xf32, #tpu.memory_space<vmem>>, vector<1x8x128xf32>
    %192 = vector.shape_cast %191 : vector<1x8x128xf32> to vector<8x128xf32>
    %193 = vector.shape_cast %187 : vector<8x128xf32> to vector<1x8x128xf32>
    tpu.vector_store %arg3[%190, %c0_80, %c0_81], %193 {strides = array<i32>} : memref<8x8x128xf32, #tpu.memory_space<vmem>>, vector<1x8x128xf32>,
    %c5_i32 = arith.constant 5 : i32
    %194 = arith.index_cast %c5_i32 : i32 to index
    %c0_82 = arith.constant 0 : index
    %c0_83 = arith.constant 0 : index
    %195 = vector.load %arg1[%194, %c0_82, %c0_83] : memref<8x8x512xf32, #tpu.memory_space<vmem>>, vector<1x8x512xf32>
    %196 = vector.shape_cast %195 : vector<1x8x512xf32> to vector<8x512xf32>
    %c0_84 = arith.constant 0 : index
    %c0_85 = arith.constant 0 : index
    %197 = vector.load %arg7[%c0_84, %c0_85] : memref<8x128xf32, #tpu.memory_space<vmem>>, vector<8x128xf32>
    %cst_86 = arith.constant dense<0.000000e+00> : vector<8x512xf32>
    %198 = tpu.matmul %197, %3, %cst_86 {dimension_numbers = #tpu.dot_dimension_numbers<[1], [0], [0], [1], [0, 0, 1, 1], [], []>} : vector<8x128xf32>, vector<128x512xf32>, vector<8x512xf32> -> vector<8x512xf32>
    %199 = arith.addf %196, %198 : vector<8x512xf32>
    %200 = vector.extract_strided_slice %199 {offsets = [0, 0], sizes = [8, 128], strides = [1, 1]} : vector<8x512xf32> to vector<8x128xf32>
    %201 = arith.negf %200 : vector<8x128xf32>
    %202 = math.exp %201 : vector<8x128xf32>
    %cst_87 = arith.constant 1.000000e+00 : f32
    %203 = vector.broadcast %cst_87 : f32 to vector<8x128xf32>
    %204 = arith.addf %203, %202 : vector<8x128xf32>
    %205 = arith.divf %203, %204 : vector<8x128xf32>
    %206 = vector.extract_strided_slice %199 {offsets = [0, 128], sizes = [8, 128], strides = [1, 1]} : vector<8x512xf32> to vector<8x128xf32>
    %207 = arith.negf %206 : vector<8x128xf32>
    %208 = math.exp %207 : vector<8x128xf32>
    %cst_88 = arith.constant 1.000000e+00 : f32
    %209 = vector.broadcast %cst_88 : f32 to vector<8x128xf32>
    %210 = arith.addf %209, %208 : vector<8x128xf32>
    %211 = arith.divf %209, %210 : vector<8x128xf32>
    %212 = vector.extract_strided_slice %199 {offsets = [0, 256], sizes = [8, 128], strides = [1, 1]} : vector<8x512xf32> to vector<8x128xf32>
    %213 = math.tanh %212 : vector<8x128xf32>
    %214 = vector.extract_strided_slice %199 {offsets = [0, 384], sizes = [8, 128], strides = [1, 1]} : vector<8x512xf32> to vector<8x128xf32>
    %215 = arith.negf %214 : vector<8x128xf32>
    %216 = math.exp %215 : vector<8x128xf32>
    %cst_89 = arith.constant 1.000000e+00 : f32
    %217 = vector.broadcast %cst_89 : f32 to vector<8x128xf32>
    %218 = arith.addf %217, %216 : vector<8x128xf32>
    %219 = arith.divf %217, %218 : vector<8x128xf32>
    %c0_90 = arith.constant 0 : index
    %c0_91 = arith.constant 0 : index
    %220 = vector.load %arg8[%c0_90, %c0_91] : memref<8x128xf32, #tpu.memory_space<vmem>>, vector<8x128xf32>
    %221 = arith.mulf %211, %220 : vector<8x128xf32>
    %222 = arith.mulf %205, %213 : vector<8x128xf32>
    %223 = arith.addf %221, %222 : vector<8x128xf32>
    %224 = math.tanh %223 : vector<8x128xf32>
    %225 = arith.mulf %219, %224 : vector<8x128xf32>
    %c0_92 = arith.constant 0 : index
    %c0_93 = arith.constant 0 : index
    %226 = vector.load %arg7[%c0_92, %c0_93] : memref<8x128xf32, #tpu.memory_space<vmem>>, vector<8x128xf32>
    tpu.vector_store %arg7[%c0_92, %c0_93], %225 {strides = array<i32>} : memref<8x128xf32, #tpu.memory_space<vmem>>, vector<8x128xf32>,
    %c0_94 = arith.constant 0 : index
    %c0_95 = arith.constant 0 : index
    %227 = vector.load %arg8[%c0_94, %c0_95] : memref<8x128xf32, #tpu.memory_space<vmem>>, vector<8x128xf32>
    tpu.vector_store %arg8[%c0_94, %c0_95], %223 {strides = array<i32>} : memref<8x128xf32, #tpu.memory_space<vmem>>, vector<8x128xf32>,
    %228 = arith.index_cast %c5_i32 : i32 to index
    %c0_96 = arith.constant 0 : index
    %c0_97 = arith.constant 0 : index
    %229 = vector.load %arg3[%228, %c0_96, %c0_97] : memref<8x8x128xf32, #tpu.memory_space<vmem>>, vector<1x8x128xf32>
    %230 = vector.shape_cast %229 : vector<1x8x128xf32> to vector<8x128xf32>
    %231 = vector.shape_cast %225 : vector<8x128xf32> to vector<1x8x128xf32>
    tpu.vector_store %arg3[%228, %c0_96, %c0_97], %231 {strides = array<i32>} : memref<8x8x128xf32, #tpu.memory_space<vmem>>, vector<1x8x128xf32>,
    %c6_i32 = arith.constant 6 : i32
    %232 = arith.index_cast %c6_i32 : i32 to index
    %c0_98 = arith.constant 0 : index
    %c0_99 = arith.constant 0 : index
    %233 = vector.load %arg1[%232, %c0_98, %c0_99] : memref<8x8x512xf32, #tpu.memory_space<vmem>>, vector<1x8x512xf32>
    %234 = vector.shape_cast %233 : vector<1x8x512xf32> to vector<8x512xf32>
    %c0_100 = arith.constant 0 : index
    %c0_101 = arith.constant 0 : index
    %235 = vector.load %arg7[%c0_100, %c0_101] : memref<8x128xf32, #tpu.memory_space<vmem>>, vector<8x128xf32>
    %cst_102 = arith.constant dense<0.000000e+00> : vector<8x512xf32>
    %236 = tpu.matmul %235, %3, %cst_102 {dimension_numbers = #tpu.dot_dimension_numbers<[1], [0], [0], [1], [0, 0, 1, 1], [], []>} : vector<8x128xf32>, vector<128x512xf32>, vector<8x512xf32> -> vector<8x512xf32>
    %237 = arith.addf %234, %236 : vector<8x512xf32>
    %238 = vector.extract_strided_slice %237 {offsets = [0, 0], sizes = [8, 128], strides = [1, 1]} : vector<8x512xf32> to vector<8x128xf32>
    %239 = arith.negf %238 : vector<8x128xf32>
    %240 = math.exp %239 : vector<8x128xf32>
    %cst_103 = arith.constant 1.000000e+00 : f32
    %241 = vector.broadcast %cst_103 : f32 to vector<8x128xf32>
    %242 = arith.addf %241, %240 : vector<8x128xf32>
    %243 = arith.divf %241, %242 : vector<8x128xf32>
    %244 = vector.extract_strided_slice %237 {offsets = [0, 128], sizes = [8, 128], strides = [1, 1]} : vector<8x512xf32> to vector<8x128xf32>
    %245 = arith.negf %244 : vector<8x128xf32>
    %246 = math.exp %245 : vector<8x128xf32>
    %cst_104 = arith.constant 1.000000e+00 : f32
    %247 = vector.broadcast %cst_104 : f32 to vector<8x128xf32>
    %248 = arith.addf %247, %246 : vector<8x128xf32>
    %249 = arith.divf %247, %248 : vector<8x128xf32>
    %250 = vector.extract_strided_slice %237 {offsets = [0, 256], sizes = [8, 128], strides = [1, 1]} : vector<8x512xf32> to vector<8x128xf32>
    %251 = math.tanh %250 : vector<8x128xf32>
    %252 = vector.extract_strided_slice %237 {offsets = [0, 384], sizes = [8, 128], strides = [1, 1]} : vector<8x512xf32> to vector<8x128xf32>
    %253 = arith.negf %252 : vector<8x128xf32>
    %254 = math.exp %253 : vector<8x128xf32>
    %cst_105 = arith.constant 1.000000e+00 : f32
    %255 = vector.broadcast %cst_105 : f32 to vector<8x128xf32>
    %256 = arith.addf %255, %254 : vector<8x128xf32>
    %257 = arith.divf %255, %256 : vector<8x128xf32>
    %c0_106 = arith.constant 0 : index
    %c0_107 = arith.constant 0 : index
    %258 = vector.load %arg8[%c0_106, %c0_107] : memref<8x128xf32, #tpu.memory_space<vmem>>, vector<8x128xf32>
    %259 = arith.mulf %249, %258 : vector<8x128xf32>
    %260 = arith.mulf %243, %251 : vector<8x128xf32>
    %261 = arith.addf %259, %260 : vector<8x128xf32>
    %262 = math.tanh %261 : vector<8x128xf32>
    %263 = arith.mulf %257, %262 : vector<8x128xf32>
    %c0_108 = arith.constant 0 : index
    %c0_109 = arith.constant 0 : index
    %264 = vector.load %arg7[%c0_108, %c0_109] : memref<8x128xf32, #tpu.memory_space<vmem>>, vector<8x128xf32>
    tpu.vector_store %arg7[%c0_108, %c0_109], %263 {strides = array<i32>} : memref<8x128xf32, #tpu.memory_space<vmem>>, vector<8x128xf32>,
    %c0_110 = arith.constant 0 : index
    %c0_111 = arith.constant 0 : index
    %265 = vector.load %arg8[%c0_110, %c0_111] : memref<8x128xf32, #tpu.memory_space<vmem>>, vector<8x128xf32>
    tpu.vector_store %arg8[%c0_110, %c0_111], %261 {strides = array<i32>} : memref<8x128xf32, #tpu.memory_space<vmem>>, vector<8x128xf32>,
    %266 = arith.index_cast %c6_i32 : i32 to index
    %c0_112 = arith.constant 0 : index
    %c0_113 = arith.constant 0 : index
    %267 = vector.load %arg3[%266, %c0_112, %c0_113] : memref<8x8x128xf32, #tpu.memory_space<vmem>>, vector<1x8x128xf32>
    %268 = vector.shape_cast %267 : vector<1x8x128xf32> to vector<8x128xf32>
    %269 = vector.shape_cast %263 : vector<8x128xf32> to vector<1x8x128xf32>
    tpu.vector_store %arg3[%266, %c0_112, %c0_113], %269 {strides = array<i32>} : memref<8x8x128xf32, #tpu.memory_space<vmem>>, vector<1x8x128xf32>,
    %c7_i32 = arith.constant 7 : i32
    %270 = arith.index_cast %c7_i32 : i32 to index
    %c0_114 = arith.constant 0 : index
    %c0_115 = arith.constant 0 : index
    %271 = vector.load %arg1[%270, %c0_114, %c0_115] : memref<8x8x512xf32, #tpu.memory_space<vmem>>, vector<1x8x512xf32>
    %272 = vector.shape_cast %271 : vector<1x8x512xf32> to vector<8x512xf32>
    %c0_116 = arith.constant 0 : index
    %c0_117 = arith.constant 0 : index
    %273 = vector.load %arg7[%c0_116, %c0_117] : memref<8x128xf32, #tpu.memory_space<vmem>>, vector<8x128xf32>
    %cst_118 = arith.constant dense<0.000000e+00> : vector<8x512xf32>
    %274 = tpu.matmul %273, %3, %cst_118 {dimension_numbers = #tpu.dot_dimension_numbers<[1], [0], [0], [1], [0, 0, 1, 1], [], []>} : vector<8x128xf32>, vector<128x512xf32>, vector<8x512xf32> -> vector<8x512xf32>
    %275 = arith.addf %272, %274 : vector<8x512xf32>
    %276 = vector.extract_strided_slice %275 {offsets = [0, 0], sizes = [8, 128], strides = [1, 1]} : vector<8x512xf32> to vector<8x128xf32>
    %277 = arith.negf %276 : vector<8x128xf32>
    %278 = math.exp %277 : vector<8x128xf32>
    %cst_119 = arith.constant 1.000000e+00 : f32
    %279 = vector.broadcast %cst_119 : f32 to vector<8x128xf32>
    %280 = arith.addf %279, %278 : vector<8x128xf32>
    %281 = arith.divf %279, %280 : vector<8x128xf32>
    %282 = vector.extract_strided_slice %275 {offsets = [0, 128], sizes = [8, 128], strides = [1, 1]} : vector<8x512xf32> to vector<8x128xf32>
    %283 = arith.negf %282 : vector<8x128xf32>
    %284 = math.exp %283 : vector<8x128xf32>
    %cst_120 = arith.constant 1.000000e+00 : f32
    %285 = vector.broadcast %cst_120 : f32 to vector<8x128xf32>
    %286 = arith.addf %285, %284 : vector<8x128xf32>
    %287 = arith.divf %285, %286 : vector<8x128xf32>
    %288 = vector.extract_strided_slice %275 {offsets = [0, 256], sizes = [8, 128], strides = [1, 1]} : vector<8x512xf32> to vector<8x128xf32>
    %289 = math.tanh %288 : vector<8x128xf32>
    %290 = vector.extract_strided_slice %275 {offsets = [0, 384], sizes = [8, 128], strides = [1, 1]} : vector<8x512xf32> to vector<8x128xf32>
    %291 = arith.negf %290 : vector<8x128xf32>
    %292 = math.exp %291 : vector<8x128xf32>
    %cst_121 = arith.constant 1.000000e+00 : f32
    %293 = vector.broadcast %cst_121 : f32 to vector<8x128xf32>
    %294 = arith.addf %293, %292 : vector<8x128xf32>
    %295 = arith.divf %293, %294 : vector<8x128xf32>
    %c0_122 = arith.constant 0 : index
    %c0_123 = arith.constant 0 : index
    %296 = vector.load %arg8[%c0_122, %c0_123] : memref<8x128xf32, #tpu.memory_space<vmem>>, vector<8x128xf32>
    %297 = arith.mulf %287, %296 : vector<8x128xf32>
    %298 = arith.mulf %281, %289 : vector<8x128xf32>
    %299 = arith.addf %297, %298 : vector<8x128xf32>
    %300 = math.tanh %299 : vector<8x128xf32>
    %301 = arith.mulf %295, %300 : vector<8x128xf32>
    %c0_124 = arith.constant 0 : index
    %c0_125 = arith.constant 0 : index
    %302 = vector.load %arg7[%c0_124, %c0_125] : memref<8x128xf32, #tpu.memory_space<vmem>>, vector<8x128xf32>
    tpu.vector_store %arg7[%c0_124, %c0_125], %301 {strides = array<i32>} : memref<8x128xf32, #tpu.memory_space<vmem>>, vector<8x128xf32>,
    %c0_126 = arith.constant 0 : index
    %c0_127 = arith.constant 0 : index
    %303 = vector.load %arg8[%c0_126, %c0_127] : memref<8x128xf32, #tpu.memory_space<vmem>>, vector<8x128xf32>
    tpu.vector_store %arg8[%c0_126, %c0_127], %299 {strides = array<i32>} : memref<8x128xf32, #tpu.memory_space<vmem>>, vector<8x128xf32>,
    %304 = arith.index_cast %c7_i32 : i32 to index
    %c0_128 = arith.constant 0 : index
    %c0_129 = arith.constant 0 : index
    %305 = vector.load %arg3[%304, %c0_128, %c0_129] : memref<8x8x128xf32, #tpu.memory_space<vmem>>, vector<1x8x128xf32>
    %306 = vector.shape_cast %305 : vector<1x8x128xf32> to vector<8x128xf32>
    %307 = vector.shape_cast %301 : vector<8x128xf32> to vector<1x8x128xf32>
    tpu.vector_store %arg3[%304, %c0_128, %c0_129], %307 {strides = array<i32>} : memref<8x8x128xf32, #tpu.memory_space<vmem>>, vector<1x8x128xf32>,
    %c8_i32 = arith.constant 8 : i32
    %c0_i32_130 = arith.constant 0 : i32
    %308 = arith.cmpi eq, %arg0, %c0_i32_130 : i32
    %309 = arith.extui %308 : i1 to i32
    %c0_i32_131 = arith.constant 0 : i32
    %310 = arith.cmpi ne, %309, %c0_i32_131 : i32
    scf.if %310 {
      %c0_132 = arith.constant 0 : index
      %c0_133 = arith.constant 0 : index
      %311 = vector.load %arg7[%c0_132, %c0_133] : memref<8x128xf32, #tpu.memory_space<vmem>>, vector<8x128xf32>
      %c0_134 = arith.constant 0 : index
      %c0_135 = arith.constant 0 : index
      %312 = vector.load %arg4[%c0_134, %c0_135] : memref<8x128xf32, #tpu.memory_space<vmem>>, vector<8x128xf32>
      tpu.vector_store %arg4[%c0_134, %c0_135], %311 {strides = array<i32>} : memref<8x128xf32, #tpu.memory_space<vmem>>, vector<8x128xf32>,
      %c0_136 = arith.constant 0 : index
      %c0_137 = arith.constant 0 : index
      %313 = vector.load %arg8[%c0_136, %c0_137] : memref<8x128xf32, #tpu.memory_space<vmem>>, vector<8x128xf32>
      %c0_138 = arith.constant 0 : index
      %c0_139 = arith.constant 0 : index
      %314 = vector.load %arg5[%c0_138, %c0_139] : memref<8x128xf32, #tpu.memory_space<vmem>>, vector<8x128xf32>
      tpu.vector_store %arg5[%c0_138, %c0_139], %313 {strides = array<i32>} : memref<8x128xf32, #tpu.memory_space<vmem>>, vector<8x128xf32>,
    } else {
    }
    return
  }
  func.func @transform_0(%arg0: i32) -> (i32, i32, i32) {
    %c0_i32 = arith.constant 0 : i32
    %c0_i32_0 = arith.constant 0 : i32
    %c0_i32_1 = arith.constant 0 : i32
    return %arg0, %c0_i32, %c0_i32_0 : i32, i32, i32
  }
  func.func @transform_2(%arg0: i32) -> (i32, i32, i32) {
    %c0_i32 = arith.constant 0 : i32
    %c0_i32_0 = arith.constant 0 : i32
    %c0_i32_1 = arith.constant 0 : i32
    return %arg0, %c0_i32, %c0_i32_0 : i32, i32, i32
  }
  func.func @transform_3(%arg0: i32) -> (i32, i32) {
    %c0_i32 = arith.constant 0 : i32
    %c0_i32_0 = arith.constant 0 : i32
    %c0_i32_1 = arith.constant 0 : i32
    return %c0_i32, %c0_i32_0 : i32, i32
  }
  func.func @transform_4(%arg0: i32) -> (i32, i32) {
    %c0_i32 = arith.constant 0 : i32
    %c0_i32_0 = arith.constant 0 : i32
    %c0_i32_1 = arith.constant 0 : i32
    return %c0_i32, %c0_i32_0 : i32, i32
  }
}

module attributes {stable_mosaic.version = 11 : i64} {
  func.func @_lstm_recurrent_kernel(%arg0: i32, %arg1: memref<8x8x512xf32, #tpu.memory_space<vmem>>, %arg2: memref<128x512xf32, #tpu.memory_space<any>>, %arg3: memref<8x8x128xf32, #tpu.memory_space<vmem>>, %arg4: memref<8x128xf32, #tpu.memory_space<vmem>>, %arg5: memref<8x128xf32, #tpu.memory_space<vmem>>, %arg6: memref<128x512xf32, #tpu.memory_space<vmem>>, %arg7: memref<8x128xf32, #tpu.memory_space<vmem>>, %arg8: memref<8x128xf32, #tpu.memory_space<vmem>>) attributes {dimension_semantics = [#tpu.dimension_semantics<arbitrary>], iteration_bounds = array<i64: 1>, scalar_prefetch = 0 : i64, scratch_operands = 3 : i64, tpu.core_type = #tpu.core_type<tc>, window_params = [{transform_indices = @transform_0, window_bounds = array<i64: 8, 8, 512>}, {}, {transform_indices = @transform_2, window_bounds = array<i64: 8, 8, 128>}, {pipeline_mode = #tpu.pipeline_mode<synchronous>, transform_indices = @transform_3, window_bounds = array<i64: 8, 128>}, {pipeline_mode = #tpu.pipeline_mode<synchronous>, transform_indices = @transform_4, window_bounds = array<i64: 8, 128>}]} {
    %c0_i32 = arith.constant 0 : i32
    %0 = arith.cmpi eq, %arg0, %c0_i32 : i32
    %1 = arith.extui %0 : i1 to i32
    %c0_i32_0 = arith.constant 0 : i32
    %2 = arith.cmpi ne, %1, %c0_i32_0 : i32
    scf.if %2 {
      "tpu.region"() ({
        %315 = tpu.sem_alloc : memref<!tpu.dma_semaphore, #tpu.memory_space<semaphore_mem>>
        tpu.enqueue_dma source(%arg2 : memref<128x512xf32, #tpu.memory_space<any>>) target(%arg6 : memref<128x512xf32, #tpu.memory_space<vmem>>) target_semaphore(%315 : memref<!tpu.dma_semaphore, #tpu.memory_space<semaphore_mem>>)
        tpu.wait_dma2 semaphore(%315 : memref<!tpu.dma_semaphore, #tpu.memory_space<semaphore_mem>>) src(%arg2 : memref<128x512xf32, #tpu.memory_space<any>>) dst(%arg6 : memref<128x512xf32, #tpu.memory_space<vmem>>)
        tpu.yield
      }) : () -> ()
      %cst_132 = arith.constant 0.000000e+00 : f32
      %311 = vector.broadcast %cst_132 : f32 to vector<8x128xf32>
      %c0_133 = arith.constant 0 : index
      %c0_134 = arith.constant 0 : index
      %312 = vector.load %arg7[%c0_133, %c0_134] : memref<8x128xf32, #tpu.memory_space<vmem>>, vector<8x128xf32>
      tpu.vector_store %arg7[%c0_133, %c0_134], %311 {strides = array<i32>} : memref<8x128xf32, #tpu.memory_space<vmem>>, vector<8x128xf32>,
      %cst_135 = arith.constant 0.000000e+00 : f32
      %313 = vector.broadcast %cst_135 : f32 to vector<8x128xf32>
      %c0_136 = arith.constant 0 : index
      %c0_137 = arith.constant 0 : index
      %314 = vector.load %arg8[%c0_136, %c0_137] : memref<8x128xf32, #tpu.memory_space<vmem>>, vector<8x128xf32>
      tpu.vector_store %arg8[%c0_136, %c0_137], %313 {strides = array<i32>} : memref<8x128xf32, #tpu.memory_space<vmem>>, vector<8x128xf32>,
    } else {
    }
    %c0 = arith.constant 0 : index
    %c0_1 = arith.constant 0 : index
    %3 = vector.load %arg6[%c0, %c0_1] : memref<128x512xf32, #tpu.memory_space<vmem>>, vector<128x512xf32>
    %c0_i32_2 = arith.constant 0 : i32
    %4 = arith.index_cast %c0_i32_2 : i32 to index
    %c0_3 = arith.constant 0 : index
    %c0_4 = arith.constant 0 : index
    %5 = vector.load %arg1[%4, %c0_3, %c0_4] : memref<8x8x512xf32, #tpu.memory_space<vmem>>, vector<1x8x512xf32>
    %6 = vector.shape_cast %5 : vector<1x8x512xf32> to vector<8x512xf32>
    %c0_5 = arith.constant 0 : index
    %c0_6 = arith.constant 0 : index
    %7 = vector.load %arg7[%c0_5, %c0_6] : memref<8x128xf32, #tpu.memory_space<vmem>>, vector<8x128xf32>
    %cst = arith.constant dense<0.000000e+00> : vector<8x512xf32>
    %8 = tpu.matmul %7, %3, %cst {dimension_numbers = #tpu.dot_dimension_numbers<[1], [0], [0], [1], [0, 0, 1, 1], [], []>} : vector<8x128xf32>, vector<128x512xf32>, vector<8x512xf32> -> vector<8x512xf32>
    %9 = arith.addf %6, %8 : vector<8x512xf32>
    %10 = vector.extract_strided_slice %9 {offsets = [0, 0], sizes = [8, 128], strides = [1, 1]} : vector<8x512xf32> to vector<8x128xf32>
    %11 = arith.negf %10 : vector<8x128xf32>
    %12 = math.exp %11 : vector<8x128xf32>
    %cst_7 = arith.constant 1.000000e+00 : f32
    %13 = vector.broadcast %cst_7 : f32 to vector<8x128xf32>
    %14 = arith.addf %13, %12 : vector<8x128xf32>
    %15 = arith.divf %13, %14 : vector<8x128xf32>
    %16 = vector.extract_strided_slice %9 {offsets = [0, 128], sizes = [8, 128], strides = [1, 1]} : vector<8x512xf32> to vector<8x128xf32>
    %17 = arith.negf %16 : vector<8x128xf32>
    %18 = math.exp %17 : vector<8x128xf32>
    %cst_8 = arith.constant 1.000000e+00 : f32
    %19 = vector.broadcast %cst_8 : f32 to vector<8x128xf32>
    %20 = arith.addf %19, %18 : vector<8x128xf32>
    %21 = arith.divf %19, %20 : vector<8x128xf32>
    %22 = vector.extract_strided_slice %9 {offsets = [0, 256], sizes = [8, 128], strides = [1, 1]} : vector<8x512xf32> to vector<8x128xf32>
    %23 = math.tanh %22 : vector<8x128xf32>
    %24 = vector.extract_strided_slice %9 {offsets = [0, 384], sizes = [8, 128], strides = [1, 1]} : vector<8x512xf32> to vector<8x128xf32>
    %25 = arith.negf %24 : vector<8x128xf32>
    %26 = math.exp %25 : vector<8x128xf32>
    %cst_9 = arith.constant 1.000000e+00 : f32
    %27 = vector.broadcast %cst_9 : f32 to vector<8x128xf32>
    %28 = arith.addf %27, %26 : vector<8x128xf32>
    %29 = arith.divf %27, %28 : vector<8x128xf32>
    %c0_10 = arith.constant 0 : index
    %c0_11 = arith.constant 0 : index
    %30 = vector.load %arg8[%c0_10, %c0_11] : memref<8x128xf32, #tpu.memory_space<vmem>>, vector<8x128xf32>
    %31 = arith.mulf %21, %30 : vector<8x128xf32>
    %32 = arith.mulf %15, %23 : vector<8x128xf32>
    %33 = arith.addf %31, %32 : vector<8x128xf32>
    %34 = math.tanh %33 : vector<8x128xf32>
    %35 = arith.mulf %29, %34 : vector<8x128xf32>
    %c0_12 = arith.constant 0 : index
    %c0_13 = arith.constant 0 : index
    %36 = vector.load %arg7[%c0_12, %c0_13] : memref<8x128xf32, #tpu.memory_space<vmem>>, vector<8x128xf32>
    tpu.vector_store %arg7[%c0_12, %c0_13], %35 {strides = array<i32>} : memref<8x128xf32, #tpu.memory_space<vmem>>, vector<8x128xf32>,
    %c0_14 = arith.constant 0 : index
    %c0_15 = arith.constant 0 : index
    %37 = vector.load %arg8[%c0_14, %c0_15] : memref<8x128xf32, #tpu.memory_space<vmem>>, vector<8x128xf32>
    tpu.vector_store %arg8[%c0_14, %c0_15], %33 {strides = array<i32>} : memref<8x128xf32, #tpu.memory_space<vmem>>, vector<8x128xf32>,
    %38 = arith.index_cast %c0_i32_2 : i32 to index
    %c0_16 = arith.constant 0 : index
    %c0_17 = arith.constant 0 : index
    %39 = vector.load %arg3[%38, %c0_16, %c0_17] : memref<8x8x128xf32, #tpu.memory_space<vmem>>, vector<1x8x128xf32>
    %40 = vector.shape_cast %39 : vector<1x8x128xf32> to vector<8x128xf32>
    %41 = vector.shape_cast %35 : vector<8x128xf32> to vector<1x8x128xf32>
    tpu.vector_store %arg3[%38, %c0_16, %c0_17], %41 {strides = array<i32>} : memref<8x8x128xf32, #tpu.memory_space<vmem>>, vector<1x8x128xf32>,
    %c1_i32 = arith.constant 1 : i32
    %42 = arith.index_cast %c1_i32 : i32 to index
    %c0_18 = arith.constant 0 : index
    %c0_19 = arith.constant 0 : index
    %43 = vector.load %arg1[%42, %c0_18, %c0_19] : memref<8x8x512xf32, #tpu.memory_space<vmem>>, vector<1x8x512xf32>
    %44 = vector.shape_cast %43 : vector<1x8x512xf32> to vector<8x512xf32>
    %c0_20 = arith.constant 0 : index
    %c0_21 = arith.constant 0 : index
    %45 = vector.load %arg7[%c0_20, %c0_21] : memref<8x128xf32, #tpu.memory_space<vmem>>, vector<8x128xf32>
    %cst_22 = arith.constant dense<0.000000e+00> : vector<8x512xf32>
    %46 = tpu.matmul %45, %3, %cst_22 {dimension_numbers = #tpu.dot_dimension_numbers<[1], [0], [0], [1], [0, 0, 1, 1], [], []>} : vector<8x128xf32>, vector<128x512xf32>, vector<8x512xf32> -> vector<8x512xf32>
    %47 = arith.addf %44, %46 : vector<8x512xf32>
    %48 = vector.extract_strided_slice %47 {offsets = [0, 0], sizes = [8, 128], strides = [1, 1]} : vector<8x512xf32> to vector<8x128xf32>
    %49 = arith.negf %48 : vector<8x128xf32>
    %50 = math.exp %49 : vector<8x128xf32>
    %cst_23 = arith.constant 1.000000e+00 : f32
    %51 = vector.broadcast %cst_23 : f32 to vector<8x128xf32>
    %52 = arith.addf %51, %50 : vector<8x128xf32>
    %53 = arith.divf %51, %52 : vector<8x128xf32>
    %54 = vector.extract_strided_slice %47 {offsets = [0, 128], sizes = [8, 128], strides = [1, 1]} : vector<8x512xf32> to vector<8x128xf32>
    %55 = arith.negf %54 : vector<8x128xf32>
    %56 = math.exp %55 : vector<8x128xf32>
    %cst_24 = arith.constant 1.000000e+00 : f32
    %57 = vector.broadcast %cst_24 : f32 to vector<8x128xf32>
    %58 = arith.addf %57, %56 : vector<8x128xf32>
    %59 = arith.divf %57, %58 : vector<8x128xf32>
    %60 = vector.extract_strided_slice %47 {offsets = [0, 256], sizes = [8, 128], strides = [1, 1]} : vector<8x512xf32> to vector<8x128xf32>
    %61 = math.tanh %60 : vector<8x128xf32>
    %62 = vector.extract_strided_slice %47 {offsets = [0, 384], sizes = [8, 128], strides = [1, 1]} : vector<8x512xf32> to vector<8x128xf32>
    %63 = arith.negf %62 : vector<8x128xf32>
    %64 = math.exp %63 : vector<8x128xf32>
    %cst_25 = arith.constant 1.000000e+00 : f32
    %65 = vector.broadcast %cst_25 : f32 to vector<8x128xf32>
    %66 = arith.addf %65, %64 : vector<8x128xf32>
    %67 = arith.divf %65, %66 : vector<8x128xf32>
    %c0_26 = arith.constant 0 : index
    %c0_27 = arith.constant 0 : index
    %68 = vector.load %arg8[%c0_26, %c0_27] : memref<8x128xf32, #tpu.memory_space<vmem>>, vector<8x128xf32>
    %69 = arith.mulf %59, %68 : vector<8x128xf32>
    %70 = arith.mulf %53, %61 : vector<8x128xf32>
    %71 = arith.addf %69, %70 : vector<8x128xf32>
    %72 = math.tanh %71 : vector<8x128xf32>
    %73 = arith.mulf %67, %72 : vector<8x128xf32>
    %c0_28 = arith.constant 0 : index
    %c0_29 = arith.constant 0 : index
    %74 = vector.load %arg7[%c0_28, %c0_29] : memref<8x128xf32, #tpu.memory_space<vmem>>, vector<8x128xf32>
    tpu.vector_store %arg7[%c0_28, %c0_29], %73 {strides = array<i32>} : memref<8x128xf32, #tpu.memory_space<vmem>>, vector<8x128xf32>,
    %c0_30 = arith.constant 0 : index
    %c0_31 = arith.constant 0 : index
    %75 = vector.load %arg8[%c0_30, %c0_31] : memref<8x128xf32, #tpu.memory_space<vmem>>, vector<8x128xf32>
    tpu.vector_store %arg8[%c0_30, %c0_31], %71 {strides = array<i32>} : memref<8x128xf32, #tpu.memory_space<vmem>>, vector<8x128xf32>,
    %76 = arith.index_cast %c1_i32 : i32 to index
    %c0_32 = arith.constant 0 : index
    %c0_33 = arith.constant 0 : index
    %77 = vector.load %arg3[%76, %c0_32, %c0_33] : memref<8x8x128xf32, #tpu.memory_space<vmem>>, vector<1x8x128xf32>
    %78 = vector.shape_cast %77 : vector<1x8x128xf32> to vector<8x128xf32>
    %79 = vector.shape_cast %73 : vector<8x128xf32> to vector<1x8x128xf32>
    tpu.vector_store %arg3[%76, %c0_32, %c0_33], %79 {strides = array<i32>} : memref<8x8x128xf32, #tpu.memory_space<vmem>>, vector<1x8x128xf32>,
    %c2_i32 = arith.constant 2 : i32
    %80 = arith.index_cast %c2_i32 : i32 to index
    %c0_34 = arith.constant 0 : index
    %c0_35 = arith.constant 0 : index
    %81 = vector.load %arg1[%80, %c0_34, %c0_35] : memref<8x8x512xf32, #tpu.memory_space<vmem>>, vector<1x8x512xf32>
    %82 = vector.shape_cast %81 : vector<1x8x512xf32> to vector<8x512xf32>
    %c0_36 = arith.constant 0 : index
    %c0_37 = arith.constant 0 : index
    %83 = vector.load %arg7[%c0_36, %c0_37] : memref<8x128xf32, #tpu.memory_space<vmem>>, vector<8x128xf32>
    %cst_38 = arith.constant dense<0.000000e+00> : vector<8x512xf32>
    %84 = tpu.matmul %83, %3, %cst_38 {dimension_numbers = #tpu.dot_dimension_numbers<[1], [0], [0], [1], [0, 0, 1, 1], [], []>} : vector<8x128xf32>, vector<128x512xf32>, vector<8x512xf32> -> vector<8x512xf32>
    %85 = arith.addf %82, %84 : vector<8x512xf32>
    %86 = vector.extract_strided_slice %85 {offsets = [0, 0], sizes = [8, 128], strides = [1, 1]} : vector<8x512xf32> to vector<8x128xf32>
    %87 = arith.negf %86 : vector<8x128xf32>
    %88 = math.exp %87 : vector<8x128xf32>
    %cst_39 = arith.constant 1.000000e+00 : f32
    %89 = vector.broadcast %cst_39 : f32 to vector<8x128xf32>
    %90 = arith.addf %89, %88 : vector<8x128xf32>
    %91 = arith.divf %89, %90 : vector<8x128xf32>
    %92 = vector.extract_strided_slice %85 {offsets = [0, 128], sizes = [8, 128], strides = [1, 1]} : vector<8x512xf32> to vector<8x128xf32>
    %93 = arith.negf %92 : vector<8x128xf32>
    %94 = math.exp %93 : vector<8x128xf32>
    %cst_40 = arith.constant 1.000000e+00 : f32
    %95 = vector.broadcast %cst_40 : f32 to vector<8x128xf32>
    %96 = arith.addf %95, %94 : vector<8x128xf32>
    %97 = arith.divf %95, %96 : vector<8x128xf32>
    %98 = vector.extract_strided_slice %85 {offsets = [0, 256], sizes = [8, 128], strides = [1, 1]} : vector<8x512xf32> to vector<8x128xf32>
    %99 = math.tanh %98 : vector<8x128xf32>
    %100 = vector.extract_strided_slice %85 {offsets = [0, 384], sizes = [8, 128], strides = [1, 1]} : vector<8x512xf32> to vector<8x128xf32>
    %101 = arith.negf %100 : vector<8x128xf32>
    %102 = math.exp %101 : vector<8x128xf32>
    %cst_41 = arith.constant 1.000000e+00 : f32
    %103 = vector.broadcast %cst_41 : f32 to vector<8x128xf32>
    %104 = arith.addf %103, %102 : vector<8x128xf32>
    %105 = arith.divf %103, %104 : vector<8x128xf32>
    %c0_42 = arith.constant 0 : index
    %c0_43 = arith.constant 0 : index
    %106 = vector.load %arg8[%c0_42, %c0_43] : memref<8x128xf32, #tpu.memory_space<vmem>>, vector<8x128xf32>
    %107 = arith.mulf %97, %106 : vector<8x128xf32>
    %108 = arith.mulf %91, %99 : vector<8x128xf32>
    %109 = arith.addf %107, %108 : vector<8x128xf32>
    %110 = math.tanh %109 : vector<8x128xf32>
    %111 = arith.mulf %105, %110 : vector<8x128xf32>
    %c0_44 = arith.constant 0 : index
    %c0_45 = arith.constant 0 : index
    %112 = vector.load %arg7[%c0_44, %c0_45] : memref<8x128xf32, #tpu.memory_space<vmem>>, vector<8x128xf32>
    tpu.vector_store %arg7[%c0_44, %c0_45], %111 {strides = array<i32>} : memref<8x128xf32, #tpu.memory_space<vmem>>, vector<8x128xf32>,
    %c0_46 = arith.constant 0 : index
    %c0_47 = arith.constant 0 : index
    %113 = vector.load %arg8[%c0_46, %c0_47] : memref<8x128xf32, #tpu.memory_space<vmem>>, vector<8x128xf32>
    tpu.vector_store %arg8[%c0_46, %c0_47], %109 {strides = array<i32>} : memref<8x128xf32, #tpu.memory_space<vmem>>, vector<8x128xf32>,
    %114 = arith.index_cast %c2_i32 : i32 to index
    %c0_48 = arith.constant 0 : index
    %c0_49 = arith.constant 0 : index
    %115 = vector.load %arg3[%114, %c0_48, %c0_49] : memref<8x8x128xf32, #tpu.memory_space<vmem>>, vector<1x8x128xf32>
    %116 = vector.shape_cast %115 : vector<1x8x128xf32> to vector<8x128xf32>
    %117 = vector.shape_cast %111 : vector<8x128xf32> to vector<1x8x128xf32>
    tpu.vector_store %arg3[%114, %c0_48, %c0_49], %117 {strides = array<i32>} : memref<8x8x128xf32, #tpu.memory_space<vmem>>, vector<1x8x128xf32>,
    %c3_i32 = arith.constant 3 : i32
    %118 = arith.index_cast %c3_i32 : i32 to index
    %c0_50 = arith.constant 0 : index
    %c0_51 = arith.constant 0 : index
    %119 = vector.load %arg1[%118, %c0_50, %c0_51] : memref<8x8x512xf32, #tpu.memory_space<vmem>>, vector<1x8x512xf32>
    %120 = vector.shape_cast %119 : vector<1x8x512xf32> to vector<8x512xf32>
    %c0_52 = arith.constant 0 : index
    %c0_53 = arith.constant 0 : index
    %121 = vector.load %arg7[%c0_52, %c0_53] : memref<8x128xf32, #tpu.memory_space<vmem>>, vector<8x128xf32>
    %cst_54 = arith.constant dense<0.000000e+00> : vector<8x512xf32>
    %122 = tpu.matmul %121, %3, %cst_54 {dimension_numbers = #tpu.dot_dimension_numbers<[1], [0], [0], [1], [0, 0, 1, 1], [], []>} : vector<8x128xf32>, vector<128x512xf32>, vector<8x512xf32> -> vector<8x512xf32>
    %123 = arith.addf %120, %122 : vector<8x512xf32>
    %124 = vector.extract_strided_slice %123 {offsets = [0, 0], sizes = [8, 128], strides = [1, 1]} : vector<8x512xf32> to vector<8x128xf32>
    %125 = arith.negf %124 : vector<8x128xf32>
    %126 = math.exp %125 : vector<8x128xf32>
    %cst_55 = arith.constant 1.000000e+00 : f32
    %127 = vector.broadcast %cst_55 : f32 to vector<8x128xf32>
    %128 = arith.addf %127, %126 : vector<8x128xf32>
    %129 = arith.divf %127, %128 : vector<8x128xf32>
    %130 = vector.extract_strided_slice %123 {offsets = [0, 128], sizes = [8, 128], strides = [1, 1]} : vector<8x512xf32> to vector<8x128xf32>
    %131 = arith.negf %130 : vector<8x128xf32>
    %132 = math.exp %131 : vector<8x128xf32>
    %cst_56 = arith.constant 1.000000e+00 : f32
    %133 = vector.broadcast %cst_56 : f32 to vector<8x128xf32>
    %134 = arith.addf %133, %132 : vector<8x128xf32>
    %135 = arith.divf %133, %134 : vector<8x128xf32>
    %136 = vector.extract_strided_slice %123 {offsets = [0, 256], sizes = [8, 128], strides = [1, 1]} : vector<8x512xf32> to vector<8x128xf32>
    %137 = math.tanh %136 : vector<8x128xf32>
    %138 = vector.extract_strided_slice %123 {offsets = [0, 384], sizes = [8, 128], strides = [1, 1]} : vector<8x512xf32> to vector<8x128xf32>
    %139 = arith.negf %138 : vector<8x128xf32>
    %140 = math.exp %139 : vector<8x128xf32>
    %cst_57 = arith.constant 1.000000e+00 : f32
    %141 = vector.broadcast %cst_57 : f32 to vector<8x128xf32>
    %142 = arith.addf %141, %140 : vector<8x128xf32>
    %143 = arith.divf %141, %142 : vector<8x128xf32>
    %c0_58 = arith.constant 0 : index
    %c0_59 = arith.constant 0 : index
    %144 = vector.load %arg8[%c0_58, %c0_59] : memref<8x128xf32, #tpu.memory_space<vmem>>, vector<8x128xf32>
    %145 = arith.mulf %135, %144 : vector<8x128xf32>
    %146 = arith.mulf %129, %137 : vector<8x128xf32>
    %147 = arith.addf %145, %146 : vector<8x128xf32>
    %148 = math.tanh %147 : vector<8x128xf32>
    %149 = arith.mulf %143, %148 : vector<8x128xf32>
    %c0_60 = arith.constant 0 : index
    %c0_61 = arith.constant 0 : index
    %150 = vector.load %arg7[%c0_60, %c0_61] : memref<8x128xf32, #tpu.memory_space<vmem>>, vector<8x128xf32>
    tpu.vector_store %arg7[%c0_60, %c0_61], %149 {strides = array<i32>} : memref<8x128xf32, #tpu.memory_space<vmem>>, vector<8x128xf32>,
    %c0_62 = arith.constant 0 : index
    %c0_63 = arith.constant 0 : index
    %151 = vector.load %arg8[%c0_62, %c0_63] : memref<8x128xf32, #tpu.memory_space<vmem>>, vector<8x128xf32>
    tpu.vector_store %arg8[%c0_62, %c0_63], %147 {strides = array<i32>} : memref<8x128xf32, #tpu.memory_space<vmem>>, vector<8x128xf32>,
    %152 = arith.index_cast %c3_i32 : i32 to index
    %c0_64 = arith.constant 0 : index
    %c0_65 = arith.constant 0 : index
    %153 = vector.load %arg3[%152, %c0_64, %c0_65] : memref<8x8x128xf32, #tpu.memory_space<vmem>>, vector<1x8x128xf32>
    %154 = vector.shape_cast %153 : vector<1x8x128xf32> to vector<8x128xf32>
    %155 = vector.shape_cast %149 : vector<8x128xf32> to vector<1x8x128xf32>
    tpu.vector_store %arg3[%152, %c0_64, %c0_65], %155 {strides = array<i32>} : memref<8x8x128xf32, #tpu.memory_space<vmem>>, vector<1x8x128xf32>,
    %c4_i32 = arith.constant 4 : i32
    %156 = arith.index_cast %c4_i32 : i32 to index
    %c0_66 = arith.constant 0 : index
    %c0_67 = arith.constant 0 : index
    %157 = vector.load %arg1[%156, %c0_66, %c0_67] : memref<8x8x512xf32, #tpu.memory_space<vmem>>, vector<1x8x512xf32>
    %158 = vector.shape_cast %157 : vector<1x8x512xf32> to vector<8x512xf32>
    %c0_68 = arith.constant 0 : index
    %c0_69 = arith.constant 0 : index
    %159 = vector.load %arg7[%c0_68, %c0_69] : memref<8x128xf32, #tpu.memory_space<vmem>>, vector<8x128xf32>
    %cst_70 = arith.constant dense<0.000000e+00> : vector<8x512xf32>
    %160 = tpu.matmul %159, %3, %cst_70 {dimension_numbers = #tpu.dot_dimension_numbers<[1], [0], [0], [1], [0, 0, 1, 1], [], []>} : vector<8x128xf32>, vector<128x512xf32>, vector<8x512xf32> -> vector<8x512xf32>
    %161 = arith.addf %158, %160 : vector<8x512xf32>
    %162 = vector.extract_strided_slice %161 {offsets = [0, 0], sizes = [8, 128], strides = [1, 1]} : vector<8x512xf32> to vector<8x128xf32>
    %163 = arith.negf %162 : vector<8x128xf32>
    %164 = math.exp %163 : vector<8x128xf32>
    %cst_71 = arith.constant 1.000000e+00 : f32
    %165 = vector.broadcast %cst_71 : f32 to vector<8x128xf32>
    %166 = arith.addf %165, %164 : vector<8x128xf32>
    %167 = arith.divf %165, %166 : vector<8x128xf32>
    %168 = vector.extract_strided_slice %161 {offsets = [0, 128], sizes = [8, 128], strides = [1, 1]} : vector<8x512xf32> to vector<8x128xf32>
    %169 = arith.negf %168 : vector<8x128xf32>
    %170 = math.exp %169 : vector<8x128xf32>
    %cst_72 = arith.constant 1.000000e+00 : f32
    %171 = vector.broadcast %cst_72 : f32 to vector<8x128xf32>
    %172 = arith.addf %171, %170 : vector<8x128xf32>
    %173 = arith.divf %171, %172 : vector<8x128xf32>
    %174 = vector.extract_strided_slice %161 {offsets = [0, 256], sizes = [8, 128], strides = [1, 1]} : vector<8x512xf32> to vector<8x128xf32>
    %175 = math.tanh %174 : vector<8x128xf32>
    %176 = vector.extract_strided_slice %161 {offsets = [0, 384], sizes = [8, 128], strides = [1, 1]} : vector<8x512xf32> to vector<8x128xf32>
    %177 = arith.negf %176 : vector<8x128xf32>
    %178 = math.exp %177 : vector<8x128xf32>
    %cst_73 = arith.constant 1.000000e+00 : f32
    %179 = vector.broadcast %cst_73 : f32 to vector<8x128xf32>
    %180 = arith.addf %179, %178 : vector<8x128xf32>
    %181 = arith.divf %179, %180 : vector<8x128xf32>
    %c0_74 = arith.constant 0 : index
    %c0_75 = arith.constant 0 : index
    %182 = vector.load %arg8[%c0_74, %c0_75] : memref<8x128xf32, #tpu.memory_space<vmem>>, vector<8x128xf32>
    %183 = arith.mulf %173, %182 : vector<8x128xf32>
    %184 = arith.mulf %167, %175 : vector<8x128xf32>
    %185 = arith.addf %183, %184 : vector<8x128xf32>
    %186 = math.tanh %185 : vector<8x128xf32>
    %187 = arith.mulf %181, %186 : vector<8x128xf32>
    %c0_76 = arith.constant 0 : index
    %c0_77 = arith.constant 0 : index
    %188 = vector.load %arg7[%c0_76, %c0_77] : memref<8x128xf32, #tpu.memory_space<vmem>>, vector<8x128xf32>
    tpu.vector_store %arg7[%c0_76, %c0_77], %187 {strides = array<i32>} : memref<8x128xf32, #tpu.memory_space<vmem>>, vector<8x128xf32>,
    %c0_78 = arith.constant 0 : index
    %c0_79 = arith.constant 0 : index
    %189 = vector.load %arg8[%c0_78, %c0_79] : memref<8x128xf32, #tpu.memory_space<vmem>>, vector<8x128xf32>
    tpu.vector_store %arg8[%c0_78, %c0_79], %185 {strides = array<i32>} : memref<8x128xf32, #tpu.memory_space<vmem>>, vector<8x128xf32>,
    %190 = arith.index_cast %c4_i32 : i32 to index
    %c0_80 = arith.constant 0 : index
    %c0_81 = arith.constant 0 : index
    %191 = vector.load %arg3[%190, %c0_80, %c0_81] : memref<8x8x128xf32, #tpu.memory_space<vmem>>, vector<1x8x128xf32>
    %192 = vector.shape_cast %191 : vector<1x8x128xf32> to vector<8x128xf32>
    %193 = vector.shape_cast %187 : vector<8x128xf32> to vector<1x8x128xf32>
    tpu.vector_store %arg3[%190, %c0_80, %c0_81], %193 {strides = array<i32>} : memref<8x8x128xf32, #tpu.memory_space<vmem>>, vector<1x8x128xf32>,
    %c5_i32 = arith.constant 5 : i32
    %194 = arith.index_cast %c5_i32 : i32 to index
    %c0_82 = arith.constant 0 : index
    %c0_83 = arith.constant 0 : index
    %195 = vector.load %arg1[%194, %c0_82, %c0_83] : memref<8x8x512xf32, #tpu.memory_space<vmem>>, vector<1x8x512xf32>
    %196 = vector.shape_cast %195 : vector<1x8x512xf32> to vector<8x512xf32>
    %c0_84 = arith.constant 0 : index
    %c0_85 = arith.constant 0 : index
    %197 = vector.load %arg7[%c0_84, %c0_85] : memref<8x128xf32, #tpu.memory_space<vmem>>, vector<8x128xf32>
    %cst_86 = arith.constant dense<0.000000e+00> : vector<8x512xf32>
    %198 = tpu.matmul %197, %3, %cst_86 {dimension_numbers = #tpu.dot_dimension_numbers<[1], [0], [0], [1], [0, 0, 1, 1], [], []>} : vector<8x128xf32>, vector<128x512xf32>, vector<8x512xf32> -> vector<8x512xf32>
    %199 = arith.addf %196, %198 : vector<8x512xf32>
    %200 = vector.extract_strided_slice %199 {offsets = [0, 0], sizes = [8, 128], strides = [1, 1]} : vector<8x512xf32> to vector<8x128xf32>
    %201 = arith.negf %200 : vector<8x128xf32>
    %202 = math.exp %201 : vector<8x128xf32>
    %cst_87 = arith.constant 1.000000e+00 : f32
    %203 = vector.broadcast %cst_87 : f32 to vector<8x128xf32>
    %204 = arith.addf %203, %202 : vector<8x128xf32>
    %205 = arith.divf %203, %204 : vector<8x128xf32>
    %206 = vector.extract_strided_slice %199 {offsets = [0, 128], sizes = [8, 128], strides = [1, 1]} : vector<8x512xf32> to vector<8x128xf32>
    %207 = arith.negf %206 : vector<8x128xf32>
    %208 = math.exp %207 : vector<8x128xf32>
    %cst_88 = arith.constant 1.000000e+00 : f32
    %209 = vector.broadcast %cst_88 : f32 to vector<8x128xf32>
    %210 = arith.addf %209, %208 : vector<8x128xf32>
    %211 = arith.divf %209, %210 : vector<8x128xf32>
    %212 = vector.extract_strided_slice %199 {offsets = [0, 256], sizes = [8, 128], strides = [1, 1]} : vector<8x512xf32> to vector<8x128xf32>
    %213 = math.tanh %212 : vector<8x128xf32>
    %214 = vector.extract_strided_slice %199 {offsets = [0, 384], sizes = [8, 128], strides = [1, 1]} : vector<8x512xf32> to vector<8x128xf32>
    %215 = arith.negf %214 : vector<8x128xf32>
    %216 = math.exp %215 : vector<8x128xf32>
    %cst_89 = arith.constant 1.000000e+00 : f32
    %217 = vector.broadcast %cst_89 : f32 to vector<8x128xf32>
    %218 = arith.addf %217, %216 : vector<8x128xf32>
    %219 = arith.divf %217, %218 : vector<8x128xf32>
    %c0_90 = arith.constant 0 : index
    %c0_91 = arith.constant 0 : index
    %220 = vector.load %arg8[%c0_90, %c0_91] : memref<8x128xf32, #tpu.memory_space<vmem>>, vector<8x128xf32>
    %221 = arith.mulf %211, %220 : vector<8x128xf32>
    %222 = arith.mulf %205, %213 : vector<8x128xf32>
    %223 = arith.addf %221, %222 : vector<8x128xf32>
    %224 = math.tanh %223 : vector<8x128xf32>
    %225 = arith.mulf %219, %224 : vector<8x128xf32>
    %c0_92 = arith.constant 0 : index
    %c0_93 = arith.constant 0 : index
    %226 = vector.load %arg7[%c0_92, %c0_93] : memref<8x128xf32, #tpu.memory_space<vmem>>, vector<8x128xf32>
    tpu.vector_store %arg7[%c0_92, %c0_93], %225 {strides = array<i32>} : memref<8x128xf32, #tpu.memory_space<vmem>>, vector<8x128xf32>,
    %c0_94 = arith.constant 0 : index
    %c0_95 = arith.constant 0 : index
    %227 = vector.load %arg8[%c0_94, %c0_95] : memref<8x128xf32, #tpu.memory_space<vmem>>, vector<8x128xf32>
    tpu.vector_store %arg8[%c0_94, %c0_95], %223 {strides = array<i32>} : memref<8x128xf32, #tpu.memory_space<vmem>>, vector<8x128xf32>,
    %228 = arith.index_cast %c5_i32 : i32 to index
    %c0_96 = arith.constant 0 : index
    %c0_97 = arith.constant 0 : index
    %229 = vector.load %arg3[%228, %c0_96, %c0_97] : memref<8x8x128xf32, #tpu.memory_space<vmem>>, vector<1x8x128xf32>
    %230 = vector.shape_cast %229 : vector<1x8x128xf32> to vector<8x128xf32>
    %231 = vector.shape_cast %225 : vector<8x128xf32> to vector<1x8x128xf32>
    tpu.vector_store %arg3[%228, %c0_96, %c0_97], %231 {strides = array<i32>} : memref<8x8x128xf32, #tpu.memory_space<vmem>>, vector<1x8x128xf32>,
    %c6_i32 = arith.constant 6 : i32
    %232 = arith.index_cast %c6_i32 : i32 to index
    %c0_98 = arith.constant 0 : index
    %c0_99 = arith.constant 0 : index
    %233 = vector.load %arg1[%232, %c0_98, %c0_99] : memref<8x8x512xf32, #tpu.memory_space<vmem>>, vector<1x8x512xf32>
    %234 = vector.shape_cast %233 : vector<1x8x512xf32> to vector<8x512xf32>
    %c0_100 = arith.constant 0 : index
    %c0_101 = arith.constant 0 : index
    %235 = vector.load %arg7[%c0_100, %c0_101] : memref<8x128xf32, #tpu.memory_space<vmem>>, vector<8x128xf32>
    %cst_102 = arith.constant dense<0.000000e+00> : vector<8x512xf32>
    %236 = tpu.matmul %235, %3, %cst_102 {dimension_numbers = #tpu.dot_dimension_numbers<[1], [0], [0], [1], [0, 0, 1, 1], [], []>} : vector<8x128xf32>, vector<128x512xf32>, vector<8x512xf32> -> vector<8x512xf32>
    %237 = arith.addf %234, %236 : vector<8x512xf32>
    %238 = vector.extract_strided_slice %237 {offsets = [0, 0], sizes = [8, 128], strides = [1, 1]} : vector<8x512xf32> to vector<8x128xf32>
    %239 = arith.negf %238 : vector<8x128xf32>
    %240 = math.exp %239 : vector<8x128xf32>
    %cst_103 = arith.constant 1.000000e+00 : f32
    %241 = vector.broadcast %cst_103 : f32 to vector<8x128xf32>
    %242 = arith.addf %241, %240 : vector<8x128xf32>
    %243 = arith.divf %241, %242 : vector<8x128xf32>
    %244 = vector.extract_strided_slice %237 {offsets = [0, 128], sizes = [8, 128], strides = [1, 1]} : vector<8x512xf32> to vector<8x128xf32>
    %245 = arith.negf %244 : vector<8x128xf32>
    %246 = math.exp %245 : vector<8x128xf32>
    %cst_104 = arith.constant 1.000000e+00 : f32
    %247 = vector.broadcast %cst_104 : f32 to vector<8x128xf32>
    %248 = arith.addf %247, %246 : vector<8x128xf32>
    %249 = arith.divf %247, %248 : vector<8x128xf32>
    %250 = vector.extract_strided_slice %237 {offsets = [0, 256], sizes = [8, 128], strides = [1, 1]} : vector<8x512xf32> to vector<8x128xf32>
    %251 = math.tanh %250 : vector<8x128xf32>
    %252 = vector.extract_strided_slice %237 {offsets = [0, 384], sizes = [8, 128], strides = [1, 1]} : vector<8x512xf32> to vector<8x128xf32>
    %253 = arith.negf %252 : vector<8x128xf32>
    %254 = math.exp %253 : vector<8x128xf32>
    %cst_105 = arith.constant 1.000000e+00 : f32
    %255 = vector.broadcast %cst_105 : f32 to vector<8x128xf32>
    %256 = arith.addf %255, %254 : vector<8x128xf32>
    %257 = arith.divf %255, %256 : vector<8x128xf32>
    %c0_106 = arith.constant 0 : index
    %c0_107 = arith.constant 0 : index
    %258 = vector.load %arg8[%c0_106, %c0_107] : memref<8x128xf32, #tpu.memory_space<vmem>>, vector<8x128xf32>
    %259 = arith.mulf %249, %258 : vector<8x128xf32>
    %260 = arith.mulf %243, %251 : vector<8x128xf32>
    %261 = arith.addf %259, %260 : vector<8x128xf32>
    %262 = math.tanh %261 : vector<8x128xf32>
    %263 = arith.mulf %257, %262 : vector<8x128xf32>
    %c0_108 = arith.constant 0 : index
    %c0_109 = arith.constant 0 : index
    %264 = vector.load %arg7[%c0_108, %c0_109] : memref<8x128xf32, #tpu.memory_space<vmem>>, vector<8x128xf32>
    tpu.vector_store %arg7[%c0_108, %c0_109], %263 {strides = array<i32>} : memref<8x128xf32, #tpu.memory_space<vmem>>, vector<8x128xf32>,
    %c0_110 = arith.constant 0 : index
    %c0_111 = arith.constant 0 : index
    %265 = vector.load %arg8[%c0_110, %c0_111] : memref<8x128xf32, #tpu.memory_space<vmem>>, vector<8x128xf32>
    tpu.vector_store %arg8[%c0_110, %c0_111], %261 {strides = array<i32>} : memref<8x128xf32, #tpu.memory_space<vmem>>, vector<8x128xf32>,
    %266 = arith.index_cast %c6_i32 : i32 to index
    %c0_112 = arith.constant 0 : index
    %c0_113 = arith.constant 0 : index
    %267 = vector.load %arg3[%266, %c0_112, %c0_113] : memref<8x8x128xf32, #tpu.memory_space<vmem>>, vector<1x8x128xf32>
    %268 = vector.shape_cast %267 : vector<1x8x128xf32> to vector<8x128xf32>
    %269 = vector.shape_cast %263 : vector<8x128xf32> to vector<1x8x128xf32>
    tpu.vector_store %arg3[%266, %c0_112, %c0_113], %269 {strides = array<i32>} : memref<8x8x128xf32, #tpu.memory_space<vmem>>, vector<1x8x128xf32>,
    %c7_i32 = arith.constant 7 : i32
    %270 = arith.index_cast %c7_i32 : i32 to index
    %c0_114 = arith.constant 0 : index
    %c0_115 = arith.constant 0 : index
    %271 = vector.load %arg1[%270, %c0_114, %c0_115] : memref<8x8x512xf32, #tpu.memory_space<vmem>>, vector<1x8x512xf32>
    %272 = vector.shape_cast %271 : vector<1x8x512xf32> to vector<8x512xf32>
    %c0_116 = arith.constant 0 : index
    %c0_117 = arith.constant 0 : index
    %273 = vector.load %arg7[%c0_116, %c0_117] : memref<8x128xf32, #tpu.memory_space<vmem>>, vector<8x128xf32>
    %cst_118 = arith.constant dense<0.000000e+00> : vector<8x512xf32>
    %274 = tpu.matmul %273, %3, %cst_118 {dimension_numbers = #tpu.dot_dimension_numbers<[1], [0], [0], [1], [0, 0, 1, 1], [], []>} : vector<8x128xf32>, vector<128x512xf32>, vector<8x512xf32> -> vector<8x512xf32>
    %275 = arith.addf %272, %274 : vector<8x512xf32>
    %276 = vector.extract_strided_slice %275 {offsets = [0, 0], sizes = [8, 128], strides = [1, 1]} : vector<8x512xf32> to vector<8x128xf32>
    %277 = arith.negf %276 : vector<8x128xf32>
    %278 = math.exp %277 : vector<8x128xf32>
    %cst_119 = arith.constant 1.000000e+00 : f32
    %279 = vector.broadcast %cst_119 : f32 to vector<8x128xf32>
    %280 = arith.addf %279, %278 : vector<8x128xf32>
    %281 = arith.divf %279, %280 : vector<8x128xf32>
    %282 = vector.extract_strided_slice %275 {offsets = [0, 128], sizes = [8, 128], strides = [1, 1]} : vector<8x512xf32> to vector<8x128xf32>
    %283 = arith.negf %282 : vector<8x128xf32>
    %284 = math.exp %283 : vector<8x128xf32>
    %cst_120 = arith.constant 1.000000e+00 : f32
    %285 = vector.broadcast %cst_120 : f32 to vector<8x128xf32>
    %286 = arith.addf %285, %284 : vector<8x128xf32>
    %287 = arith.divf %285, %286 : vector<8x128xf32>
    %288 = vector.extract_strided_slice %275 {offsets = [0, 256], sizes = [8, 128], strides = [1, 1]} : vector<8x512xf32> to vector<8x128xf32>
    %289 = math.tanh %288 : vector<8x128xf32>
    %290 = vector.extract_strided_slice %275 {offsets = [0, 384], sizes = [8, 128], strides = [1, 1]} : vector<8x512xf32> to vector<8x128xf32>
    %291 = arith.negf %290 : vector<8x128xf32>
    %292 = math.exp %291 : vector<8x128xf32>
    %cst_121 = arith.constant 1.000000e+00 : f32
    %293 = vector.broadcast %cst_121 : f32 to vector<8x128xf32>
    %294 = arith.addf %293, %292 : vector<8x128xf32>
    %295 = arith.divf %293, %294 : vector<8x128xf32>
    %c0_122 = arith.constant 0 : index
    %c0_123 = arith.constant 0 : index
    %296 = vector.load %arg8[%c0_122, %c0_123] : memref<8x128xf32, #tpu.memory_space<vmem>>, vector<8x128xf32>
    %297 = arith.mulf %287, %296 : vector<8x128xf32>
    %298 = arith.mulf %281, %289 : vector<8x128xf32>
    %299 = arith.addf %297, %298 : vector<8x128xf32>
    %300 = math.tanh %299 : vector<8x128xf32>
    %301 = arith.mulf %295, %300 : vector<8x128xf32>
    %c0_124 = arith.constant 0 : index
    %c0_125 = arith.constant 0 : index
    %302 = vector.load %arg7[%c0_124, %c0_125] : memref<8x128xf32, #tpu.memory_space<vmem>>, vector<8x128xf32>
    tpu.vector_store %arg7[%c0_124, %c0_125], %301 {strides = array<i32>} : memref<8x128xf32, #tpu.memory_space<vmem>>, vector<8x128xf32>,
    %c0_126 = arith.constant 0 : index
    %c0_127 = arith.constant 0 : index
    %303 = vector.load %arg8[%c0_126, %c0_127] : memref<8x128xf32, #tpu.memory_space<vmem>>, vector<8x128xf32>
    tpu.vector_store %arg8[%c0_126, %c0_127], %299 {strides = array<i32>} : memref<8x128xf32, #tpu.memory_space<vmem>>, vector<8x128xf32>,
    %304 = arith.index_cast %c7_i32 : i32 to index
    %c0_128 = arith.constant 0 : index
    %c0_129 = arith.constant 0 : index
    %305 = vector.load %arg3[%304, %c0_128, %c0_129] : memref<8x8x128xf32, #tpu.memory_space<vmem>>, vector<1x8x128xf32>
    %306 = vector.shape_cast %305 : vector<1x8x128xf32> to vector<8x128xf32>
    %307 = vector.shape_cast %301 : vector<8x128xf32> to vector<1x8x128xf32>
    tpu.vector_store %arg3[%304, %c0_128, %c0_129], %307 {strides = array<i32>} : memref<8x8x128xf32, #tpu.memory_space<vmem>>, vector<1x8x128xf32>,
    %c8_i32 = arith.constant 8 : i32
    %c0_i32_130 = arith.constant 0 : i32
    %308 = arith.cmpi eq, %arg0, %c0_i32_130 : i32
    %309 = arith.extui %308 : i1 to i32
    %c0_i32_131 = arith.constant 0 : i32
    %310 = arith.cmpi ne, %309, %c0_i32_131 : i32
    scf.if %310 {
      %c0_132 = arith.constant 0 : index
      %c0_133 = arith.constant 0 : index
      %311 = vector.load %arg7[%c0_132, %c0_133] : memref<8x128xf32, #tpu.memory_space<vmem>>, vector<8x128xf32>
      %c0_134 = arith.constant 0 : index
      %c0_135 = arith.constant 0 : index
      %312 = vector.load %arg4[%c0_134, %c0_135] : memref<8x128xf32, #tpu.memory_space<vmem>>, vector<8x128xf32>
      tpu.vector_store %arg4[%c0_134, %c0_135], %311 {strides = array<i32>} : memref<8x128xf32, #tpu.memory_space<vmem>>, vector<8x128xf32>,
      %c0_136 = arith.constant 0 : index
      %c0_137 = arith.constant 0 : index
      %313 = vector.load %arg8[%c0_136, %c0_137] : memref<8x128xf32, #tpu.memory_space<vmem>>, vector<8x128xf32>
      %c0_138 = arith.constant 0 : index
      %c0_139 = arith.constant 0 : index
      %314 = vector.load %arg5[%c0_138, %c0_139] : memref<8x128xf32, #tpu.memory_space<vmem>>, vector<8x128xf32>
      tpu.vector_store %arg5[%c0_138, %c0_139], %313 {strides = array<i32>} : memref<8x128xf32, #tpu.memory_space<vmem>>, vector<8x128xf32>,
    } else {
    }
    return
  }
  func.func @transform_0(%arg0: i32) -> (i32, i32, i32) {
    %c0_i32 = arith.constant 0 : i32
    %c0_i32_0 = arith.constant 0 : i32
    %c0_i32_1 = arith.constant 0 : i32
    return %arg0, %c0_i32, %c0_i32_0 : i32, i32, i32
  }
  func.func @transform_2(%arg0: i32) -> (i32, i32, i32) {
    %c0_i32 = arith.constant 0 : i32
    %c0_i32_0 = arith.constant 0 : i32
    %c0_i32_1 = arith.constant 0 : i32
    return %arg0, %c0_i32, %c0_i32_0 : i32, i32, i32
  }
  func.func @transform_3(%arg0: i32) -> (i32, i32) {
    %c0_i32 = arith.constant 0 : i32
    %c0_i32_0 = arith.constant 0 : i32
    %c0_i32_1 = arith.constant 0 : i32
    return %c0_i32, %c0_i32_0 : i32, i32
  }
  func.func @transform_4(%arg0: i32) -> (i32, i32) {
    %c0_i32 = arith.constant 0 : i32
    %c0_i32_0 = arith.constant 0 : i32
    %c0_i32_1 = arith.constant 0 : i32
    return %c0_i32, %c0_i32_0 : i32, i32
  }
}

</mosaic_0001>

<llo_original>
// kernel: encoder_forward.4
$region0: #{encoder_forward.4}
  #allocation0 [shape = 'u32[]', space=smem, size = 0x4, offset = 0x4, fixed_abs, tag = 'smem constant byte address 0x4 - core index']
  #allocation1 [shape = 'u32[144,128]{1,0:T(1,128)}', space=vmem, size = 0x12000, scoped, tag = 'internal scratch']
  %s0 = inlined_call_operand.vmem [shape: f32[64,32], index: 0, kind: input, shape index: {}]
  %s1 = inlined_call_operand.vmem [shape: f32[32,512], index: 1, kind: input, shape index: {}]
  %s2 = inlined_call_operand.vmem [shape: f32[1,512], index: 2, kind: input, shape index: {}]
  %s3 = inlined_call_operand.vmem [shape: f32[64,512], index: 3, kind: output, shape index: {}]
  %s4 = sld [smem:[#allocation0]]
  $region22: #{encoder_forward.4} parent=0
    _
  %s6 = ssub.s32 1, %s4
  %s7 = scalar_select 0, %s6, %s4
  // Predicated region
  $region2: #{encoder_forward.4} parent=0 // pred_check
    _
  $region3: #{encoder_forward.4} parent=0 // pred_check_branch
    %9 = sbr.rel (0) target = $region5
  $region4: #{encoder_forward.4} parent=0 // pred_region
    _
  $region5: #{encoder_forward.4} parent=0 // pred_fallthru
    _
  // Predicated region
  $region6: #{encoder_forward.4} parent=0 // pred_check
    _
  $region7: #{encoder_forward.4} parent=0 // pred_check_branch
    %11 = sbr.rel (0) target = $region9
  $region8: #{encoder_forward.4} parent=0 // pred_region
    _
  $region9: #{encoder_forward.4} parent=0 // pred_fallthru
    _
  // Predicated region
  $region10: #{encoder_forward.4} parent=0 // pred_check
    _
  $region11: #{encoder_forward.4} parent=0 // pred_check_branch
    %13 = sbr.rel (0) target = $region13
  $region12: #{encoder_forward.4} parent=0 // pred_region
    _
  $region13: #{encoder_forward.4} parent=0 // pred_fallthru
    _
  %v14 = vld [vmem:[%s0] sm:$0xff]
  %v15 = vld [vmem:[%s0 + $0x8] sm:$0xff]
  %v16 = vld [vmem:[%s0 + $0x10] sm:$0xff]
  %v17 = vld [vmem:[%s0 + $0x18] sm:$0xff]
  %v18 = vld [vmem:[%s0 + $0x20] sm:$0xff]
  %v19 = vld [vmem:[%s0 + $0x28] sm:$0xff]
  %v20 = vld [vmem:[%s0 + $0x30] sm:$0xff]
  %v21 = vld [vmem:[%s0 + $0x38] sm:$0xff]
  %v22 = vld [vmem:[%s1] sm:$0xff]
  %v23 = vld [vmem:[%s1 + $0x8] sm:$0xff]
  %v24 = vld [vmem:[%s1 + $0x10] sm:$0xff]
  %v25 = vld [vmem:[%s1 + $0x18] sm:$0xff]
  %v26 = vld [vmem:[%s1 + $0x20] sm:$0xff]
  %v27 = vld [vmem:[%s1 + $0x28] sm:$0xff]
  %v28 = vld [vmem:[%s1 + $0x30] sm:$0xff]
  %v29 = vld [vmem:[%s1 + $0x38] sm:$0xff]
  %v30 = vld [vmem:[%s1 + $0x40] sm:$0xff]
  %v31 = vld [vmem:[%s1 + $0x48] sm:$0xff]
  %v32 = vld [vmem:[%s1 + $0x50] sm:$0xff]
  %v33 = vld [vmem:[%s1 + $0x58] sm:$0xff]
  %v34 = vld [vmem:[%s1 + $0x60] sm:$0xff]
  %v35 = vld [vmem:[%s1 + $0x68] sm:$0xff]
  %v36 = vld [vmem:[%s1 + $0x70] sm:$0xff]
  %v37 = vld [vmem:[%s1 + $0x78] sm:$0xff]
  %v38 = vld [vmem:[%s2] sm:$0xf]
  %v40 = vlaneseq
  %v41 = vshrl.u32 %v40, 7
  %v42 = vsub.s32 0, %v41
  %v43 = vrot.slane %v38, %v42
  %v44 = vlaneseq
  %v45 = vshrl.u32 %v44, 7
  %v46 = vsub.s32 1, %v45
  %v47 = vrot.slane %v38, %v46
  %v48 = vlaneseq
  %v49 = vshrl.u32 %v48, 7
  %v50 = vsub.s32 2, %v49
  %v51 = vrot.slane %v38, %v50
  %v52 = vlaneseq
  %v53 = vshrl.u32 %v52, 7
  %v54 = vsub.s32 3, %v53
  %v55 = vrot.slane %v38, %v54
  %vm60 = vcmask 261120
  %v62 = vsel %vm60, %v14, 0
  %v65 = vsel %vm60, %v15, 0
  %v68 = vsel %vm60, %v16, 0
  %v71 = vsel %vm60, %v17, 0
  %v74 = vsel %vm60, %v18, 0
  %v77 = vsel %vm60, %v19, 0
  %v80 = vsel %vm60, %v20, 0
  %v83 = vsel %vm60, %v21, 0
  %85 = vmatprep.subr.mxu0 %v23
  %86 = vmatpush1.msra.mxu0 %v22
  %87 = vmatprep.subr.mxu0 %v27
  %88 = vmatpush1.msra.mxu0 %v26
  %89 = vmatprep.subr.mxu0 %v31
  %90 = vmatpush1.msra.mxu0 %v30
  %91 = vmatprep.subr.mxu0 %v35
  %92 = vmatpush1.msra.mxu0 %v34
  %93 = vmatprep.subr.mxu0 0.0
  %94 = vmatpush1.msra.mxu0 0.0
  %95 = vmatprep.subr.mxu0 0.0
  %96 = vmatpush1.msra.mxu0 0.0
  %97 = vmatprep.subr.mxu0 0.0
  %98 = vmatpush1.msra.mxu0 0.0
  %99 = vmatprep.subr.mxu0 0.0
  %100 = vmatpush1.msra.mxu0 0.0
  %101 = vmatprep.subr.mxu0 0.0
  %102 = vmatpush1.msra.mxu0 0.0
  %103 = vmatprep.subr.mxu0 0.0
  %104 = vmatpush1.msra.mxu0 0.0
  %105 = vmatprep.subr.mxu0 0.0
  %106 = vmatpush1.msra.mxu0 0.0
  %107 = vmatprep.subr.mxu0 0.0
  %108 = vmatpush1.msra.mxu0 0.0
  %109 = vmatprep.subr.mxu0 0.0
  %110 = vmatpush1.msra.mxu0 0.0
  %111 = vmatprep.subr.mxu0 0.0
  %112 = vmatpush1.msra.mxu0 0.0
  %113 = vmatprep.subr.mxu0 0.0
  %114 = vmatpush1.msra.mxu0 0.0
  %115 = vmatprep.subr.mxu0 0.0
  %116 = vmatpush1.msra.mxu0 0.0
  %117 = vmatprep.subr.mxu0 0.0
  %118 = vmatpush1.msra.mxu0 0.0
  %119 = vmatprep.subr.mxu0 0.0
  %120 = vmatpush1.msra.mxu0 0.0
  %121 = vmatprep.subr.mxu0 0.0
  %122 = vmatpush1.msra.mxu0 0.0
  %123 = vmatprep.subr.mxu0 0.0
  %124 = vmatpush1.msra.mxu0 0.0
  %125 = vmatprep.subr.mxu0 0.0
  %126 = vmatpush1.msra.mxu0 0.0
  %127 = vmatprep.subr.mxu0 0.0
  %128 = vmatpush1.msra.mxu0 0.0
  %129 = vmatprep.subr.mxu0 0.0
  %130 = vmatpush1.msra.mxu0 0.0
  %131 = vmatprep.subr.mxu0 0.0
  %132 = vmatpush1.msra.mxu0 0.0
  %133 = vmatprep.subr.mxu0 0.0
  %134 = vmatpush1.msra.mxu0 0.0
  %135 = vmatprep.subr.mxu0 0.0
  %136 = vmatpush1.msra.mxu0 0.0
  %137 = vmatprep.subr.mxu0 0.0
  %138 = vmatpush1.msra.mxu0 0.0
  %139 = vmatprep.subr.mxu0 0.0
  %140 = vmatpush1.msra.mxu0 0.0
  %141 = vmatprep.subr.mxu0 0.0
  %142 = vmatpush1.msra.mxu0 0.0
  %143 = vmatprep.subr.mxu0 0.0
  %144 = vmatpush1.msra.mxu0 0.0
  %145 = vmatprep.subr.mxu0 0.0
  %146 = vmatpush1.msra.mxu0 0.0
  %147 = vmatprep.subr.mxu0 0.0
  %148 = vmatpush1.msra.mxu0 0.0
  %149 = vmatprep.mubr.f32.mxu0 0.0
  %150 = vmatmul.mubr.f32.gmra.mrb[0].mxu0 %v62
  %v151 = vpop.f32.mrb[0].mxu0
  %v152 = vadd.f32 %v43, %v151
  %v153 = vpop.f32.mrb[0].mxu0
  %v154 = vadd.f32 %v47, %v153
  %155 = vmatprep.mubr.f32.mxu0 0.0
  %156 = vmatmul.mubr.f32.gmra.mrb[0].mxu0 %v65
  %v157 = vpop.f32.mrb[0].mxu0
  %v158 = vadd.f32 %v43, %v157
  %v159 = vpop.f32.mrb[0].mxu0
  %v160 = vadd.f32 %v47, %v159
  %161 = vmatprep.mubr.f32.mxu0 0.0
  %162 = vmatmul.mubr.f32.gmra.mrb[0].mxu0 %v68
  %v163 = vpop.f32.mrb[0].mxu0
  %v164 = vadd.f32 %v43, %v163
  %v165 = vpop.f32.mrb[0].mxu0
  %v166 = vadd.f32 %v47, %v165
  %167 = vmatprep.mubr.f32.mxu0 0.0
  %168 = vmatmul.mubr.f32.gmra.mrb[0].mxu0 %v71
  %v169 = vpop.f32.mrb[0].mxu0
  %v170 = vadd.f32 %v43, %v169
  %v171 = vpop.f32.mrb[0].mxu0
  %v172 = vadd.f32 %v47, %v171
  %173 = vmatprep.mubr.f32.mxu0 0.0
  %174 = vmatmul.mubr.f32.gmra.mrb[0].mxu0 %v74
  %v175 = vpop.f32.mrb[0].mxu0
  %v176 = vadd.f32 %v43, %v175
  %v177 = vpop.f32.mrb[0].mxu0
  %v178 = vadd.f32 %v47, %v177
  %179 = vmatprep.mubr.f32.mxu0 0.0
  %180 = vmatmul.mubr.f32.gmra.mrb[0].mxu0 %v77
  %v181 = vpop.f32.mrb[0].mxu0
  %v182 = vadd.f32 %v43, %v181
  %v183 = vpop.f32.mrb[0].mxu0
  %v184 = vadd.f32 %v47, %v183
  %185 = vmatprep.mubr.f32.mxu0 0.0
  %186 = vmatmul.mubr.f32.gmra.mrb[0].mxu0 %v80
  %v187 = vpop.f32.mrb[0].mxu0
  %v188 = vadd.f32 %v43, %v187
  %v189 = vpop.f32.mrb[0].mxu0
  %v190 = vadd.f32 %v47, %v189
  %191 = vmatprep.mubr.f32.mxu0 0.0
  %192 = vmatmul.mubr.f32.gmra.mrb[0].mxu0 %v83
  %v193 = vpop.f32.mrb[0].mxu0
  %v194 = vadd.f32 %v43, %v193
  %v195 = vpop.f32.mrb[0].mxu0
  %v196 = vadd.f32 %v47, %v195
  %197 = vdwg.mxu0
  %198 = vmatprep.subr.mxu0 %v25
  %199 = vmatpush1.msra.mxu0 %v24
  %200 = vmatprep.subr.mxu0 %v29
  %201 = vmatpush1.msra.mxu0 %v28
  %202 = vmatprep.subr.mxu0 %v33
  %203 = vmatpush1.msra.mxu0 %v32
  %204 = vmatprep.subr.mxu0 %v37
  %205 = vmatpush1.msra.mxu0 %v36
  %206 = vmatprep.subr.mxu0 0.0
  %207 = vmatpush1.msra.mxu0 0.0
  %208 = vmatprep.subr.mxu0 0.0
  %209 = vmatpush1.msra.mxu0 0.0
  %210 = vmatprep.subr.mxu0 0.0
  %211 = vmatpush1.msra.mxu0 0.0
  %212 = vmatprep.subr.mxu0 0.0
  %213 = vmatpush1.msra.mxu0 0.0
  %214 = vmatprep.subr.mxu0 0.0
  %215 = vmatpush1.msra.mxu0 0.0
  %216 = vmatprep.subr.mxu0 0.0
  %217 = vmatpush1.msra.mxu0 0.0
  %218 = vmatprep.subr.mxu0 0.0
  %219 = vmatpush1.msra.mxu0 0.0
  %220 = vmatprep.subr.mxu0 0.0
  %221 = vmatpush1.msra.mxu0 0.0
  %222 = vmatprep.subr.mxu0 0.0
  %223 = vmatpush1.msra.mxu0 0.0
  %224 = vmatprep.subr.mxu0 0.0
  %225 = vmatpush1.msra.mxu0 0.0
  %226 = vmatprep.subr.mxu0 0.0
  %227 = vmatpush1.msra.mxu0 0.0
  %228 = vmatprep.subr.mxu0 0.0
  %229 = vmatpush1.msra.mxu0 0.0
  %230 = vmatprep.subr.mxu0 0.0
  %231 = vmatpush1.msra.mxu0 0.0
  %232 = vmatprep.subr.mxu0 0.0
  %233 = vmatpush1.msra.mxu0 0.0
  %234 = vmatprep.subr.mxu0 0.0
  %235 = vmatpush1.msra.mxu0 0.0
  %236 = vmatprep.subr.mxu0 0.0
  %237 = vmatpush1.msra.mxu0 0.0
  %238 = vmatprep.subr.mxu0 0.0
  %239 = vmatpush1.msra.mxu0 0.0
  %240 = vmatprep.subr.mxu0 0.0
  %241 = vmatpush1.msra.mxu0 0.0
  %242 = vmatprep.subr.mxu0 0.0
  %243 = vmatpush1.msra.mxu0 0.0
  %244 = vmatprep.subr.mxu0 0.0
  %245 = vmatpush1.msra.mxu0 0.0
  %246 = vmatprep.subr.mxu0 0.0
  %247 = vmatpush1.msra.mxu0 0.0
  %248 = vmatprep.subr.mxu0 0.0
  %249 = vmatpush1.msra.mxu0 0.0
  %250 = vmatprep.subr.mxu0 0.0
  %251 = vmatpush1.msra.mxu0 0.0
  %252 = vmatprep.subr.mxu0 0.0
  %253 = vmatpush1.msra.mxu0 0.0
  %254 = vmatprep.subr.mxu0 0.0
  %255 = vmatpush1.msra.mxu0 0.0
  %256 = vmatprep.subr.mxu0 0.0
  %257 = vmatpush1.msra.mxu0 0.0
  %258 = vmatprep.subr.mxu0 0.0
  %259 = vmatpush1.msra.mxu0 0.0
  %260 = vmatprep.subr.mxu0 0.0
  %261 = vmatpush1.msra.mxu0 0.0
  %262 = vmatprep.mubr.f32.mxu0 0.0
  %263 = vmatmul.mubr.f32.gmra.mrb[0].mxu0 %v62
  %v264 = vpop.f32.mrb[0].mxu0
  %v265 = vadd.f32 %v51, %v264
  %v266 = vpop.f32.mrb[0].mxu0
  %v267 = vadd.f32 %v55, %v266
  %268 = vmatprep.mubr.f32.mxu0 0.0
  %269 = vmatmul.mubr.f32.gmra.mrb[0].mxu0 %v65
  %v270 = vpop.f32.mrb[0].mxu0
  %v271 = vadd.f32 %v51, %v270
  %v272 = vpop.f32.mrb[0].mxu0
  %v273 = vadd.f32 %v55, %v272
  %274 = vmatprep.mubr.f32.mxu0 0.0
  %275 = vmatmul.mubr.f32.gmra.mrb[0].mxu0 %v68
  %v276 = vpop.f32.mrb[0].mxu0
  %v277 = vadd.f32 %v51, %v276
  %v278 = vpop.f32.mrb[0].mxu0
  %v279 = vadd.f32 %v55, %v278
  %280 = vmatprep.mubr.f32.mxu0 0.0
  %281 = vmatmul.mubr.f32.gmra.mrb[0].mxu0 %v71
  %v282 = vpop.f32.mrb[0].mxu0
  %v283 = vadd.f32 %v51, %v282
  %v284 = vpop.f32.mrb[0].mxu0
  %v285 = vadd.f32 %v55, %v284
  %286 = vmatprep.mubr.f32.mxu0 0.0
  %287 = vmatmul.mubr.f32.gmra.mrb[0].mxu0 %v74
  %v288 = vpop.f32.mrb[0].mxu0
  %v289 = vadd.f32 %v51, %v288
  %v290 = vpop.f32.mrb[0].mxu0
  %v291 = vadd.f32 %v55, %v290
  %292 = vmatprep.mubr.f32.mxu0 0.0
  %293 = vmatmul.mubr.f32.gmra.mrb[0].mxu0 %v77
  %v294 = vpop.f32.mrb[0].mxu0
  %v295 = vadd.f32 %v51, %v294
  %v296 = vpop.f32.mrb[0].mxu0
  %v297 = vadd.f32 %v55, %v296
  %298 = vmatprep.mubr.f32.mxu0 0.0
  %299 = vmatmul.mubr.f32.gmra.mrb[0].mxu0 %v80
  %v300 = vpop.f32.mrb[0].mxu0
  %v301 = vadd.f32 %v51, %v300
  %v302 = vpop.f32.mrb[0].mxu0
  %v303 = vadd.f32 %v55, %v302
  %304 = vmatprep.mubr.f32.mxu0 0.0
  %305 = vmatmul.mubr.f32.gmra.mrb[0].mxu0 %v83
  %v306 = vpop.f32.mrb[0].mxu0
  %v307 = vadd.f32 %v51, %v306
  %v308 = vpop.f32.mrb[0].mxu0
  %v309 = vadd.f32 %v55, %v308
  %310 = vdwg.mxu0
  %311 = vst [vmem:[%s3] sm:$0xff] %v152
  %312 = vst [vmem:[%s3 + $0x8] sm:$0xff] %v154
  %313 = vst [vmem:[%s3 + $0x10] sm:$0xff] %v265
  %314 = vst [vmem:[%s3 + $0x18] sm:$0xff] %v267
  %315 = vst [vmem:[%s3 + $0x20] sm:$0xff] %v158
  %316 = vst [vmem:[%s3 + $0x28] sm:$0xff] %v160
  %317 = vst [vmem:[%s3 + $0x30] sm:$0xff] %v271
  %318 = vst [vmem:[%s3 + $0x38] sm:$0xff] %v273
  %319 = vst [vmem:[%s3 + $0x40] sm:$0xff] %v164
  %320 = vst [vmem:[%s3 + $0x48] sm:$0xff] %v166
  %321 = vst [vmem:[%s3 + $0x50] sm:$0xff] %v277
  %322 = vst [vmem:[%s3 + $0x58] sm:$0xff] %v279
  %323 = vst [vmem:[%s3 + $0x60] sm:$0xff] %v170
  %324 = vst [vmem:[%s3 + $0x68] sm:$0xff] %v172
  %325 = vst [vmem:[%s3 + $0x70] sm:$0xff] %v283
  %326 = vst [vmem:[%s3 + $0x78] sm:$0xff] %v285
  %327 = vst [vmem:[%s3 + $0x80] sm:$0xff] %v176
  %328 = vst [vmem:[%s3 + $0x88] sm:$0xff] %v178
  %329 = vst [vmem:[%s3 + $0x90] sm:$0xff] %v289
  %330 = vst [vmem:[%s3 + $0x98] sm:$0xff] %v291
  %331 = vst [vmem:[%s3 + $0xa0] sm:$0xff] %v182
  %332 = vst [vmem:[%s3 + $0xa8] sm:$0xff] %v184
  %333 = vst [vmem:[%s3 + $0xb0] sm:$0xff] %v295
  %334 = vst [vmem:[%s3 + $0xb8] sm:$0xff] %v297
  %335 = vst [vmem:[%s3 + $0xc0] sm:$0xff] %v188
  %336 = vst [vmem:[%s3 + $0xc8] sm:$0xff] %v190
  %337 = vst [vmem:[%s3 + $0xd0] sm:$0xff] %v301
  %338 = vst [vmem:[%s3 + $0xd8] sm:$0xff] %v303
  %339 = vst [vmem:[%s3 + $0xe0] sm:$0xff] %v194
  %340 = vst [vmem:[%s3 + $0xe8] sm:$0xff] %v196
  %341 = vst [vmem:[%s3 + $0xf0] sm:$0xff] %v307
  %342 = vst [vmem:[%s3 + $0xf8] sm:$0xff] %v309
  // Predicated region
  $region14: #{encoder_forward.4} parent=0 // pred_check
    _
  $region15: #{encoder_forward.4} parent=0 // pred_check_branch
    %344 = sbr.rel (0) target = $region17
  $region16: #{encoder_forward.4} parent=0 // pred_region
    _
  $region17: #{encoder_forward.4} parent=0 // pred_fallthru
    _
  // Predicated region
  $region18: #{encoder_forward.4} parent=0 // pred_check
    _
  $region19: #{encoder_forward.4} parent=0 // pred_check_branch
    %346 = sbr.rel (0) target = $region21
  $region20: #{encoder_forward.4} parent=0 // pred_region
    _
  $region21: #{encoder_forward.4} parent=0 // pred_fallthru
    _

// kernel: encoder_forward.6
$region0: #{encoder_forward.6}
  #allocation0 [shape = 'u32[]', space=smem, size = 0x4, offset = 0x4, fixed_abs, tag = 'smem constant byte address 0x4 - core index']
  #allocation1 [shape = 'u32[144,128]{1,0:T(1,128)}', space=vmem, size = 0x12000, scoped, tag = 'internal scratch']
  %s0 = inlined_call_operand.vmem [shape: f32[64,128], index: 0, kind: input, shape index: {}]
  %s1 = inlined_call_operand.vmem [shape: f32[128,512], index: 1, kind: input, shape index: {}]
  %s2 = inlined_call_operand.vmem [shape: f32[1,512], index: 2, kind: input, shape index: {}]
  %s3 = inlined_call_operand.vmem [shape: f32[64,512], index: 3, kind: output, shape index: {}]
  %s4 = sld [smem:[#allocation0]]
  $region22: #{encoder_forward.6} parent=0
    _
  %s6 = ssub.s32 1, %s4
  %s7 = scalar_select 0, %s6, %s4
  // Predicated region
  $region2: #{encoder_forward.6} parent=0 // pred_check
    _
  $region3: #{encoder_forward.6} parent=0 // pred_check_branch
    %9 = sbr.rel (0) target = $region5
  $region4: #{encoder_forward.6} parent=0 // pred_region
    _
  $region5: #{encoder_forward.6} parent=0 // pred_fallthru
    _
  // Predicated region
  $region6: #{encoder_forward.6} parent=0 // pred_check
    _
  $region7: #{encoder_forward.6} parent=0 // pred_check_branch
    %11 = sbr.rel (0) target = $region9
  $region8: #{encoder_forward.6} parent=0 // pred_region
    _
  $region9: #{encoder_forward.6} parent=0 // pred_fallthru
    _
  // Predicated region
  $region10: #{encoder_forward.6} parent=0 // pred_check
    _
  $region11: #{encoder_forward.6} parent=0 // pred_check_branch
    %13 = sbr.rel (0) target = $region13
  $region12: #{encoder_forward.6} parent=0 // pred_region
    _
  $region13: #{encoder_forward.6} parent=0 // pred_fallthru
    _
  %v14 = vld [vmem:[%s0] sm:$0xff]
  %v15 = vld [vmem:[%s0 + $0x8] sm:$0xff]
  %v16 = vld [vmem:[%s0 + $0x10] sm:$0xff]
  %v17 = vld [vmem:[%s0 + $0x18] sm:$0xff]
  %v18 = vld [vmem:[%s0 + $0x20] sm:$0xff]
  %v19 = vld [vmem:[%s0 + $0x28] sm:$0xff]
  %v20 = vld [vmem:[%s0 + $0x30] sm:$0xff]
  %v21 = vld [vmem:[%s0 + $0x38] sm:$0xff]
  %v22 = vld [vmem:[%s1] sm:$0xff]
  %v23 = vld [vmem:[%s1 + $0x8] sm:$0xff]
  %v24 = vld [vmem:[%s1 + $0x10] sm:$0xff]
  %v25 = vld [vmem:[%s1 + $0x18] sm:$0xff]
  %v26 = vld [vmem:[%s1 + $0x20] sm:$0xff]
  %v27 = vld [vmem:[%s1 + $0x28] sm:$0xff]
  %v28 = vld [vmem:[%s1 + $0x30] sm:$0xff]
  %v29 = vld [vmem:[%s1 + $0x38] sm:$0xff]
  %v30 = vld [vmem:[%s1 + $0x40] sm:$0xff]
  %v31 = vld [vmem:[%s1 + $0x48] sm:$0xff]
  %v32 = vld [vmem:[%s1 + $0x50] sm:$0xff]
  %v33 = vld [vmem:[%s1 + $0x58] sm:$0xff]
  %v34 = vld [vmem:[%s1 + $0x60] sm:$0xff]
  %v35 = vld [vmem:[%s1 + $0x68] sm:$0xff]
  %v36 = vld [vmem:[%s1 + $0x70] sm:$0xff]
  %v37 = vld [vmem:[%s1 + $0x78] sm:$0xff]
  %v38 = vld [vmem:[%s1 + $0x80] sm:$0xff]
  %v39 = vld [vmem:[%s1 + $0x88] sm:$0xff]
  %v40 = vld [vmem:[%s1 + $0x90] sm:$0xff]
  %v41 = vld [vmem:[%s1 + $0x98] sm:$0xff]
  %v42 = vld [vmem:[%s1 + $0xa0] sm:$0xff]
  %v43 = vld [vmem:[%s1 + $0xa8] sm:$0xff]
  %v44 = vld [vmem:[%s1 + $0xb0] sm:$0xff]
  %v45 = vld [vmem:[%s1 + $0xb8] sm:$0xff]
  %v46 = vld [vmem:[%s1 + $0xc0] sm:$0xff]
  %v47 = vld [vmem:[%s1 + $0xc8] sm:$0xff]
  %v48 = vld [vmem:[%s1 + $0xd0] sm:$0xff]
  %v49 = vld [vmem:[%s1 + $0xd8] sm:$0xff]
  %v50 = vld [vmem:[%s1 + $0xe0] sm:$0xff]
  %v51 = vld [vmem:[%s1 + $0xe8] sm:$0xff]
  %v52 = vld [vmem:[%s1 + $0xf0] sm:$0xff]
  %v53 = vld [vmem:[%s1 + $0xf8] sm:$0xff]
  %v54 = vld [vmem:[%s1 + $0x100] sm:$0xff]
  %v55 = vld [vmem:[%s1 + $0x108] sm:$0xff]
  %v56 = vld [vmem:[%s1 + $0x110] sm:$0xff]
  %v57 = vld [vmem:[%s1 + $0x118] sm:$0xff]
  %v58 = vld [vmem:[%s1 + $0x120] sm:$0xff]
  %v59 = vld [vmem:[%s1 + $0x128] sm:$0xff]
  %v60 = vld [vmem:[%s1 + $0x130] sm:$0xff]
  %v61 = vld [vmem:[%s1 + $0x138] sm:$0xff]
  %v62 = vld [vmem:[%s1 + $0x140] sm:$0xff]
  %v63 = vld [vmem:[%s1 + $0x148] sm:$0xff]
  %v64 = vld [vmem:[%s1 + $0x150] sm:$0xff]
  %v65 = vld [vmem:[%s1 + $0x158] sm:$0xff]
  %v66 = vld [vmem:[%s1 + $0x160] sm:$0xff]
  %v67 = vld [vmem:[%s1 + $0x168] sm:$0xff]
  %v68 = vld [vmem:[%s1 + $0x170] sm:$0xff]
  %v69 = vld [vmem:[%s1 + $0x178] sm:$0xff]
  %v70 = vld [vmem:[%s1 + $0x180] sm:$0xff]
  %v71 = vld [vmem:[%s1 + $0x188] sm:$0xff]
  %v72 = vld [vmem:[%s1 + $0x190] sm:$0xff]
  %v73 = vld [vmem:[%s1 + $0x198] sm:$0xff]
  %v74 = vld [vmem:[%s1 + $0x1a0] sm:$0xff]
  %v75 = vld [vmem:[%s1 + $0x1a8] sm:$0xff]
  %v76 = vld [vmem:[%s1 + $0x1b0] sm:$0xff]
  %v77 = vld [vmem:[%s1 + $0x1b8] sm:$0xff]
  %v78 = vld [vmem:[%s1 + $0x1c0] sm:$0xff]
  %v79 = vld [vmem:[%s1 + $0x1c8] sm:$0xff]
  %v80 = vld [vmem:[%s1 + $0x1d0] sm:$0xff]
  %v81 = vld [vmem:[%s1 + $0x1d8] sm:$0xff]
  %v82 = vld [vmem:[%s1 + $0x1e0] sm:$0xff]
  %v83 = vld [vmem:[%s1 + $0x1e8] sm:$0xff]
  %v84 = vld [vmem:[%s1 + $0x1f0] sm:$0xff]
  %v85 = vld [vmem:[%s1 + $0x1f8] sm:$0xff]
  %v86 = vld [vmem:[%s2] sm:$0xf]
  %v88 = vlaneseq
  %v89 = vshrl.u32 %v88, 7
  %v90 = vsub.s32 0, %v89
  %v91 = vrot.slane %v86, %v90
  %v92 = vlaneseq
  %v93 = vshrl.u32 %v92, 7
  %v94 = vsub.s32 1, %v93
  %v95 = vrot.slane %v86, %v94
  %v96 = vlaneseq
  %v97 = vshrl.u32 %v96, 7
  %v98 = vsub.s32 2, %v97
  %v99 = vrot.slane %v86, %v98
  %v100 = vlaneseq
  %v101 = vshrl.u32 %v100, 7
  %v102 = vsub.s32 3, %v101
  %v103 = vrot.slane %v86, %v102
  %108 = vmatprep.subr.mxu0 %v23
  %109 = vmatpush1.msra.mxu0 %v22
  %110 = vmatprep.subr.mxu0 %v27
  %111 = vmatpush1.msra.mxu0 %v26
  %112 = vmatprep.subr.mxu0 %v31
  %113 = vmatpush1.msra.mxu0 %v30
  %114 = vmatprep.subr.mxu0 %v35
  %115 = vmatpush1.msra.mxu0 %v34
  %116 = vmatprep.subr.mxu0 %v39
  %117 = vmatpush1.msra.mxu0 %v38
  %118 = vmatprep.subr.mxu0 %v43
  %119 = vmatpush1.msra.mxu0 %v42
  %120 = vmatprep.subr.mxu0 %v47
  %121 = vmatpush1.msra.mxu0 %v46
  %122 = vmatprep.subr.mxu0 %v51
  %123 = vmatpush1.msra.mxu0 %v50
  %124 = vmatprep.subr.mxu0 %v55
  %125 = vmatpush1.msra.mxu0 %v54
  %126 = vmatprep.subr.mxu0 %v59
  %127 = vmatpush1.msra.mxu0 %v58
  %128 = vmatprep.subr.mxu0 %v63
  %129 = vmatpush1.msra.mxu0 %v62
  %130 = vmatprep.subr.mxu0 %v67
  %131 = vmatpush1.msra.mxu0 %v66
  %132 = vmatprep.subr.mxu0 %v71
  %133 = vmatpush1.msra.mxu0 %v70
  %134 = vmatprep.subr.mxu0 %v75
  %135 = vmatpush1.msra.mxu0 %v74
  %136 = vmatprep.subr.mxu0 %v79
  %137 = vmatpush1.msra.mxu0 %v78
  %138 = vmatprep.subr.mxu0 %v83
  %139 = vmatpush1.msra.mxu0 %v82
  %140 = vmatprep.subr.mxu0 0.0
  %141 = vmatpush1.msra.mxu0 0.0
  %142 = vmatprep.subr.mxu0 0.0
  %143 = vmatpush1.msra.mxu0 0.0
  %144 = vmatprep.subr.mxu0 0.0
  %145 = vmatpush1.msra.mxu0 0.0
  %146 = vmatprep.subr.mxu0 0.0
  %147 = vmatpush1.msra.mxu0 0.0
  %148 = vmatprep.subr.mxu0 0.0
  %149 = vmatpush1.msra.mxu0 0.0
  %150 = vmatprep.subr.mxu0 0.0
  %151 = vmatpush1.msra.mxu0 0.0
  %152 = vmatprep.subr.mxu0 0.0
  %153 = vmatpush1.msra.mxu0 0.0
  %154 = vmatprep.subr.mxu0 0.0
  %155 = vmatpush1.msra.mxu0 0.0
  %156 = vmatprep.subr.mxu0 0.0
  %157 = vmatpush1.msra.mxu0 0.0
  %158 = vmatprep.subr.mxu0 0.0
  %159 = vmatpush1.msra.mxu0 0.0
  %160 = vmatprep.subr.mxu0 0.0
  %161 = vmatpush1.msra.mxu0 0.0
  %162 = vmatprep.subr.mxu0 0.0
  %163 = vmatpush1.msra.mxu0 0.0
  %164 = vmatprep.subr.mxu0 0.0
  %165 = vmatpush1.msra.mxu0 0.0
  %166 = vmatprep.subr.mxu0 0.0
  %167 = vmatpush1.msra.mxu0 0.0
  %168 = vmatprep.subr.mxu0 0.0
  %169 = vmatpush1.msra.mxu0 0.0
  %170 = vmatprep.subr.mxu0 0.0
  %171 = vmatpush1.msra.mxu0 0.0
  %172 = vmatprep.mubr.f32.mxu0 0.0
  %173 = vmatmul.mubr.f32.gmra.mrb[0].mxu0 %v14
  %v174 = vpop.f32.mrb[0].mxu0
  %v175 = vadd.f32 %v91, %v174
  %v176 = vpop.f32.mrb[0].mxu0
  %v177 = vadd.f32 %v95, %v176
  %178 = vmatprep.mubr.f32.mxu0 0.0
  %179 = vmatmul.mubr.f32.gmra.mrb[0].mxu0 %v15
  %v180 = vpop.f32.mrb[0].mxu0
  %v181 = vadd.f32 %v91, %v180
  %v182 = vpop.f32.mrb[0].mxu0
  %v183 = vadd.f32 %v95, %v182
  %184 = vmatprep.mubr.f32.mxu0 0.0
  %185 = vmatmul.mubr.f32.gmra.mrb[0].mxu0 %v16
  %v186 = vpop.f32.mrb[0].mxu0
  %v187 = vadd.f32 %v91, %v186
  %v188 = vpop.f32.mrb[0].mxu0
  %v189 = vadd.f32 %v95, %v188
  %190 = vmatprep.mubr.f32.mxu0 0.0
  %191 = vmatmul.mubr.f32.gmra.mrb[0].mxu0 %v17
  %v192 = vpop.f32.mrb[0].mxu0
  %v193 = vadd.f32 %v91, %v192
  %v194 = vpop.f32.mrb[0].mxu0
  %v195 = vadd.f32 %v95, %v194
  %196 = vmatprep.mubr.f32.mxu0 0.0
  %197 = vmatmul.mubr.f32.gmra.mrb[0].mxu0 %v18
  %v198 = vpop.f32.mrb[0].mxu0
  %v199 = vadd.f32 %v91, %v198
  %v200 = vpop.f32.mrb[0].mxu0
  %v201 = vadd.f32 %v95, %v200
  %202 = vmatprep.mubr.f32.mxu0 0.0
  %203 = vmatmul.mubr.f32.gmra.mrb[0].mxu0 %v19
  %v204 = vpop.f32.mrb[0].mxu0
  %v205 = vadd.f32 %v91, %v204
  %v206 = vpop.f32.mrb[0].mxu0
  %v207 = vadd.f32 %v95, %v206
  %208 = vmatprep.mubr.f32.mxu0 0.0
  %209 = vmatmul.mubr.f32.gmra.mrb[0].mxu0 %v20
  %v210 = vpop.f32.mrb[0].mxu0
  %v211 = vadd.f32 %v91, %v210
  %v212 = vpop.f32.mrb[0].mxu0
  %v213 = vadd.f32 %v95, %v212
  %214 = vmatprep.mubr.f32.mxu0 0.0
  %215 = vmatmul.mubr.f32.gmra.mrb[0].mxu0 %v21
  %v216 = vpop.f32.mrb[0].mxu0
  %v217 = vadd.f32 %v91, %v216
  %v218 = vpop.f32.mrb[0].mxu0
  %v219 = vadd.f32 %v95, %v218
  %220 = vdwg.mxu0
  %221 = vmatprep.subr.mxu0 %v25
  %222 = vmatpush1.msra.mxu0 %v24
  %223 = vmatprep.subr.mxu0 %v29
  %224 = vmatpush1.msra.mxu0 %v28
  %225 = vmatprep.subr.mxu0 %v33
  %226 = vmatpush1.msra.mxu0 %v32
  %227 = vmatprep.subr.mxu0 %v37
  %228 = vmatpush1.msra.mxu0 %v36
  %229 = vmatprep.subr.mxu0 %v41
  %230 = vmatpush1.msra.mxu0 %v40
  %231 = vmatprep.subr.mxu0 %v45
  %232 = vmatpush1.msra.mxu0 %v44
  %233 = vmatprep.subr.mxu0 %v49
  %234 = vmatpush1.msra.mxu0 %v48
  %235 = vmatprep.subr.mxu0 %v53
  %236 = vmatpush1.msra.mxu0 %v52
  %237 = vmatprep.subr.mxu0 %v57
  %238 = vmatpush1.msra.mxu0 %v56
  %239 = vmatprep.subr.mxu0 %v61
  %240 = vmatpush1.msra.mxu0 %v60
  %241 = vmatprep.subr.mxu0 %v65
  %242 = vmatpush1.msra.mxu0 %v64
  %243 = vmatprep.subr.mxu0 %v69
  %244 = vmatpush1.msra.mxu0 %v68
  %245 = vmatprep.subr.mxu0 %v73
  %246 = vmatpush1.msra.mxu0 %v72
  %247 = vmatprep.subr.mxu0 %v77
  %248 = vmatpush1.msra.mxu0 %v76
  %249 = vmatprep.subr.mxu0 %v81
  %250 = vmatpush1.msra.mxu0 %v80
  %251 = vmatprep.subr.mxu0 %v85
  %252 = vmatpush1.msra.mxu0 %v84
  %253 = vmatprep.subr.mxu0 0.0
  %254 = vmatpush1.msra.mxu0 0.0
  %255 = vmatprep.subr.mxu0 0.0
  %256 = vmatpush1.msra.mxu0 0.0
  %257 = vmatprep.subr.mxu0 0.0
  %258 = vmatpush1.msra.mxu0 0.0
  %259 = vmatprep.subr.mxu0 0.0
  %260 = vmatpush1.msra.mxu0 0.0
  %261 = vmatprep.subr.mxu0 0.0
  %262 = vmatpush1.msra.mxu0 0.0
  %263 = vmatprep.subr.mxu0 0.0
  %264 = vmatpush1.msra.mxu0 0.0
  %265 = vmatprep.subr.mxu0 0.0
  %266 = vmatpush1.msra.mxu0 0.0
  %267 = vmatprep.subr.mxu0 0.0
  %268 = vmatpush1.msra.mxu0 0.0
  %269 = vmatprep.subr.mxu0 0.0
  %270 = vmatpush1.msra.mxu0 0.0
  %271 = vmatprep.subr.mxu0 0.0
  %272 = vmatpush1.msra.mxu0 0.0
  %273 = vmatprep.subr.mxu0 0.0
  %274 = vmatpush1.msra.mxu0 0.0
  %275 = vmatprep.subr.mxu0 0.0
  %276 = vmatpush1.msra.mxu0 0.0
  %277 = vmatprep.subr.mxu0 0.0
  %278 = vmatpush1.msra.mxu0 0.0
  %279 = vmatprep.subr.mxu0 0.0
  %280 = vmatpush1.msra.mxu0 0.0
  %281 = vmatprep.subr.mxu0 0.0
  %282 = vmatpush1.msra.mxu0 0.0
  %283 = vmatprep.subr.mxu0 0.0
  %284 = vmatpush1.msra.mxu0 0.0
  %285 = vmatprep.mubr.f32.mxu0 0.0
  %286 = vmatmul.mubr.f32.gmra.mrb[0].mxu0 %v14
  %v287 = vpop.f32.mrb[0].mxu0
  %v288 = vadd.f32 %v99, %v287
  %v289 = vpop.f32.mrb[0].mxu0
  %v290 = vadd.f32 %v103, %v289
  %291 = vmatprep.mubr.f32.mxu0 0.0
  %292 = vmatmul.mubr.f32.gmra.mrb[0].mxu0 %v15
  %v293 = vpop.f32.mrb[0].mxu0
  %v294 = vadd.f32 %v99, %v293
  %v295 = vpop.f32.mrb[0].mxu0
  %v296 = vadd.f32 %v103, %v295
  %297 = vmatprep.mubr.f32.mxu0 0.0
  %298 = vmatmul.mubr.f32.gmra.mrb[0].mxu0 %v16
  %v299 = vpop.f32.mrb[0].mxu0
  %v300 = vadd.f32 %v99, %v299
  %v301 = vpop.f32.mrb[0].mxu0
  %v302 = vadd.f32 %v103, %v301
  %303 = vmatprep.mubr.f32.mxu0 0.0
  %304 = vmatmul.mubr.f32.gmra.mrb[0].mxu0 %v17
  %v305 = vpop.f32.mrb[0].mxu0
  %v306 = vadd.f32 %v99, %v305
  %v307 = vpop.f32.mrb[0].mxu0
  %v308 = vadd.f32 %v103, %v307
  %309 = vmatprep.mubr.f32.mxu0 0.0
  %310 = vmatmul.mubr.f32.gmra.mrb[0].mxu0 %v18
  %v311 = vpop.f32.mrb[0].mxu0
  %v312 = vadd.f32 %v99, %v311
  %v313 = vpop.f32.mrb[0].mxu0
  %v314 = vadd.f32 %v103, %v313
  %315 = vmatprep.mubr.f32.mxu0 0.0
  %316 = vmatmul.mubr.f32.gmra.mrb[0].mxu0 %v19
  %v317 = vpop.f32.mrb[0].mxu0
  %v318 = vadd.f32 %v99, %v317
  %v319 = vpop.f32.mrb[0].mxu0
  %v320 = vadd.f32 %v103, %v319
  %321 = vmatprep.mubr.f32.mxu0 0.0
  %322 = vmatmul.mubr.f32.gmra.mrb[0].mxu0 %v20
  %v323 = vpop.f32.mrb[0].mxu0
  %v324 = vadd.f32 %v99, %v323
  %v325 = vpop.f32.mrb[0].mxu0
  %v326 = vadd.f32 %v103, %v325
  %327 = vmatprep.mubr.f32.mxu0 0.0
  %328 = vmatmul.mubr.f32.gmra.mrb[0].mxu0 %v21
  %v329 = vpop.f32.mrb[0].mxu0
  %v330 = vadd.f32 %v99, %v329
  %v331 = vpop.f32.mrb[0].mxu0
  %v332 = vadd.f32 %v103, %v331
  %333 = vdwg.mxu0
  %334 = vst [vmem:[%s3] sm:$0xff] %v175
  %335 = vst [vmem:[%s3 + $0x8] sm:$0xff] %v177
  %336 = vst [vmem:[%s3 + $0x10] sm:$0xff] %v288
  %337 = vst [vmem:[%s3 + $0x18] sm:$0xff] %v290
  %338 = vst [vmem:[%s3 + $0x20] sm:$0xff] %v181
  %339 = vst [vmem:[%s3 + $0x28] sm:$0xff] %v183
  %340 = vst [vmem:[%s3 + $0x30] sm:$0xff] %v294
  %341 = vst [vmem:[%s3 + $0x38] sm:$0xff] %v296
  %342 = vst [vmem:[%s3 + $0x40] sm:$0xff] %v187
  %343 = vst [vmem:[%s3 + $0x48] sm:$0xff] %v189
  %344 = vst [vmem:[%s3 + $0x50] sm:$0xff] %v300
  %345 = vst [vmem:[%s3 + $0x58] sm:$0xff] %v302
  %346 = vst [vmem:[%s3 + $0x60] sm:$0xff] %v193
  %347 = vst [vmem:[%s3 + $0x68] sm:$0xff] %v195
  %348 = vst [vmem:[%s3 + $0x70] sm:$0xff] %v306
  %349 = vst [vmem:[%s3 + $0x78] sm:$0xff] %v308
  %350 = vst [vmem:[%s3 + $0x80] sm:$0xff] %v199
  %351 = vst [vmem:[%s3 + $0x88] sm:$0xff] %v201
  %352 = vst [vmem:[%s3 + $0x90] sm:$0xff] %v312
  %353 = vst [vmem:[%s3 + $0x98] sm:$0xff] %v314
  %354 = vst [vmem:[%s3 + $0xa0] sm:$0xff] %v205
  %355 = vst [vmem:[%s3 + $0xa8] sm:$0xff] %v207
  %356 = vst [vmem:[%s3 + $0xb0] sm:$0xff] %v318
  %357 = vst [vmem:[%s3 + $0xb8] sm:$0xff] %v320
  %358 = vst [vmem:[%s3 + $0xc0] sm:$0xff] %v211
  %359 = vst [vmem:[%s3 + $0xc8] sm:$0xff] %v213
  %360 = vst [vmem:[%s3 + $0xd0] sm:$0xff] %v324
  %361 = vst [vmem:[%s3 + $0xd8] sm:$0xff] %v326
  %362 = vst [vmem:[%s3 + $0xe0] sm:$0xff] %v217
  %363 = vst [vmem:[%s3 + $0xe8] sm:$0xff] %v219
  %364 = vst [vmem:[%s3 + $0xf0] sm:$0xff] %v330
  %365 = vst [vmem:[%s3 + $0xf8] sm:$0xff] %v332
  // Predicated region
  $region14: #{encoder_forward.6} parent=0 // pred_check
    _
  $region15: #{encoder_forward.6} parent=0 // pred_check_branch
    %367 = sbr.rel (0) target = $region17
  $region16: #{encoder_forward.6} parent=0 // pred_region
    _
  $region17: #{encoder_forward.6} parent=0 // pred_fallthru
    _
  // Predicated region
  $region18: #{encoder_forward.6} parent=0 // pred_check
    _
  $region19: #{encoder_forward.6} parent=0 // pred_check_branch
    %369 = sbr.rel (0) target = $region21
  $region20: #{encoder_forward.6} parent=0 // pred_region
    _
  $region21: #{encoder_forward.6} parent=0 // pred_fallthru
    _

// kernel: encoder_forward.5
$region0: #{encoder_forward.5}
  #allocation0 [shape = 'u32[]', space=smem, size = 0x4, offset = 0x4, fixed_abs, tag = 'smem constant byte address 0x4 - core index']
  #allocation1 [shape = 'u32[144,128]{1,0:T(1,128)}', space=vmem, size = 0x12000, scoped, tag = 'internal scratch']
  #allocation2 [shape = 'f32[128,512]{1,0:T(8,128)}', space=vmem, size = 0x40000, scoped, tag = 'scratch operand']
  #allocation3 [shape = 'f32[8,128]{1,0:T(8,128)}', space=vmem, size = 0x1000, scoped, tag = 'scratch operand']
  #allocation4 [shape = 'f32[8,128]{1,0:T(8,128)}', space=vmem, size = 0x1000, scoped, tag = 'scratch operand']
  #allocation6 [shape = 's32[]', space=sflag, size = 0x4, offset = 0, fixed_abs, tag = 'sflag constant byte address 0x0 - dummy sync flag']
  %s0 = inlined_call_operand.vmem [shape: f32[8,8,512], index: 0, kind: input, shape index: {}]
  %s1 = inlined_call_operand.vmem [shape: f32[128,512], index: 1, kind: input, shape index: {}]
  %s2 = inlined_call_operand.vmem [shape: f32[8,8,128], index: 2, kind: output, shape index: {0}]
  %s3 = inlined_call_operand.vmem [shape: f32[8,128], index: 3, kind: output, shape index: {1}]
  %s4 = inlined_call_operand.vmem [shape: f32[8,128], index: 4, kind: output, shape index: {2}]
  %5 = xla_tuple %s2, %s3, %s4
  %s6 = sld [smem:[#allocation0]]
  $region73: #{encoder_forward.5} parent=0
    _
  %s8 = ssub.s32 1, %s6
  %s9 = scalar_select 0, %s8, %s6
  // Predicated region
  $region2: #{encoder_forward.5} parent=0 // pred_check
    _
  $region3: #{encoder_forward.5} parent=0 // pred_check_branch
    %11 = sbr.rel (0) target = $region5
  $region4: #{encoder_forward.5} parent=0 // pred_region
    _
  $region5: #{encoder_forward.5} parent=0 // pred_fallthru
    _
  %p12 = scmp.eq.s32.totalorder 0, 0
  // Predicated region
  $region6: #{encoder_forward.5} parent=0 // pred_check
    %p13 = pneg %p12
  $region7: #{encoder_forward.5} parent=0 // pred_check_branch
    %15 = sbr.rel (%p13) target = $region9
  $region8: #{encoder_forward.5} parent=0 // pred_region
    $region10: #{encoder_forward.5} parent=8
      #allocation5 [shape = 's32[1]{0}', space=sflag, size = 0x4, scoped, tag = 'scoped memory for encoder_forward.5']
      %p17 = scmp.lt.u32.totalorder 512, 8
      %p18 = pneg %p17
      // Predicated region
      $region11: #{encoder_forward.5} parent=10 // pred_check
        _
      $region12: #{encoder_forward.5} parent=10 // pred_check_branch
        %20 = sbr.rel (%p17) target = $region14
      $region13: #{encoder_forward.5} parent=10 // pred_region
        %s35 = sand.u32 512, 7
        %p36 = scmp.eq.s32.totalorder %s35, 0
        // Predicated region
        $region26: #{encoder_forward.5} parent=13 // pred_check
          %p37 = pneg %p36
        $region27: #{encoder_forward.5} parent=13 // pred_check_branch
          %39 = sbr.rel (%p37) target = $region29
        $region28: #{encoder_forward.5} parent=13 // pred_region
          loop: start=0, step=1, limit=1
          $region30: #{encoder_forward.5} parent=28 // loop_pre_header
            _
          $region31: #{encoder_forward.5} parent=28 // loop_header
            %s41 = sphi 0, %s45
            %p42 = scmp.ge.s32.totalorder %s41, 1
            %s46 = sphi %s1, %s1
            %s47 = sphi [#allocation2], [#allocation2]
          $region32: #{encoder_forward.5} parent=28 // loop_header_branch
            %44 = sbr.rel (%p42) target = $region36
          $region33: #{encoder_forward.5} parent=28 // loop_body
            %v48 = vld [vmem:[%s46] sm:$0xff]
            %49 = vst [vmem:[%s47] sm:$0xff] %v48
            %v50 = vld [vmem:[%s46 + $0x8] sm:$0xff]
            %51 = vst [vmem:[%s47 + $0x8] sm:$0xff] %v50
            %v52 = vld [vmem:[%s46 + $0x10] sm:$0xff]
            %53 = vst [vmem:[%s47 + $0x10] sm:$0xff] %v52
            %v54 = vld [vmem:[%s46 + $0x18] sm:$0xff]
            %55 = vst [vmem:[%s47 + $0x18] sm:$0xff] %v54
            %v56 = vld [vmem:[%s46 + $0x20] sm:$0xff]
            %57 = vst [vmem:[%s47 + $0x20] sm:$0xff] %v56
            %v58 = vld [vmem:[%s46 + $0x28] sm:$0xff]
            %59 = vst [vmem:[%s47 + $0x28] sm:$0xff] %v58
            %v60 = vld [vmem:[%s46 + $0x30] sm:$0xff]
            %61 = vst [vmem:[%s47 + $0x30] sm:$0xff] %v60
            %v62 = vld [vmem:[%s46 + $0x38] sm:$0xff]
            %63 = vst [vmem:[%s47 + $0x38] sm:$0xff] %v62
            %v64 = vld [vmem:[%s46 + $0x40] sm:$0xff]
            %65 = vst [vmem:[%s47 + $0x40] sm:$0xff] %v64
            %v66 = vld [vmem:[%s46 + $0x48] sm:$0xff]
            %67 = vst [vmem:[%s47 + $0x48] sm:$0xff] %v66
            %v68 = vld [vmem:[%s46 + $0x50] sm:$0xff]
            %69 = vst [vmem:[%s47 + $0x50] sm:$0xff] %v68
            %v70 = vld [vmem:[%s46 + $0x58] sm:$0xff]
            %71 = vst [vmem:[%s47 + $0x58] sm:$0xff] %v70
            %v72 = vld [vmem:[%s46 + $0x60] sm:$0xff]
            %73 = vst [vmem:[%s47 + $0x60] sm:$0xff] %v72
            %v74 = vld [vmem:[%s46 + $0x68] sm:$0xff]
            %75 = vst [vmem:[%s47 + $0x68] sm:$0xff] %v74
            %v76 = vld [vmem:[%s46 + $0x70] sm:$0xff]
            %77 = vst [vmem:[%s47 + $0x70] sm:$0xff] %v76
            %v78 = vld [vmem:[%s46 + $0x78] sm:$0xff]
            %79 = vst [vmem:[%s47 + $0x78] sm:$0xff] %v78
            %v80 = vld [vmem:[%s46 + $0x80] sm:$0xff]
            %81 = vst [vmem:[%s47 + $0x80] sm:$0xff] %v80
            %v82 = vld [vmem:[%s46 + $0x88] sm:$0xff]
            %83 = vst [vmem:[%s47 + $0x88] sm:$0xff] %v82
            %v84 = vld [vmem:[%s46 + $0x90] sm:$0xff]
            %85 = vst [vmem:[%s47 + $0x90] sm:$0xff] %v84
            %v86 = vld [vmem:[%s46 + $0x98] sm:$0xff]
            %87 = vst [vmem:[%s47 + $0x98] sm:$0xff] %v86
            %v88 = vld [vmem:[%s46 + $0xa0] sm:$0xff]
            %89 = vst [vmem:[%s47 + $0xa0] sm:$0xff] %v88
            %v90 = vld [vmem:[%s46 + $0xa8] sm:$0xff]
            %91 = vst [vmem:[%s47 + $0xa8] sm:$0xff] %v90
            %v92 = vld [vmem:[%s46 + $0xb0] sm:$0xff]
            %93 = vst [vmem:[%s47 + $0xb0] sm:$0xff] %v92
            %v94 = vld [vmem:[%s46 + $0xb8] sm:$0xff]
            %95 = vst [vmem:[%s47 + $0xb8] sm:$0xff] %v94
            %v96 = vld [vmem:[%s46 + $0xc0] sm:$0xff]
            %97 = vst [vmem:[%s47 + $0xc0] sm:$0xff] %v96
            %v98 = vld [vmem:[%s46 + $0xc8] sm:$0xff]
            %99 = vst [vmem:[%s47 + $0xc8] sm:$0xff] %v98
            %v100 = vld [vmem:[%s46 + $0xd0] sm:$0xff]
            %101 = vst [vmem:[%s47 + $0xd0] sm:$0xff] %v100
            %v102 = vld [vmem:[%s46 + $0xd8] sm:$0xff]
            %103 = vst [vmem:[%s47 + $0xd8] sm:$0xff] %v102
            %v104 = vld [vmem:[%s46 + $0xe0] sm:$0xff]
            %105 = vst [vmem:[%s47 + $0xe0] sm:$0xff] %v104
            %v106 = vld [vmem:[%s46 + $0xe8] sm:$0xff]
            %107 = vst [vmem:[%s47 + $0xe8] sm:$0xff] %v106
            %v108 = vld [vmem:[%s46 + $0xf0] sm:$0xff]
            %109 = vst [vmem:[%s47 + $0xf0] sm:$0xff] %v108
            %v110 = vld [vmem:[%s46 + $0xf8] sm:$0xff]
            %111 = vst [vmem:[%s47 + $0xf8] sm:$0xff] %v110
            %v112 = vld [vmem:[%s46 + $0x100] sm:$0xff]
            %113 = vst [vmem:[%s47 + $0x100] sm:$0xff] %v112
            %v114 = vld [vmem:[%s46 + $0x108] sm:$0xff]
            %115 = vst [vmem:[%s47 + $0x108] sm:$0xff] %v114
            %v116 = vld [vmem:[%s46 + $0x110] sm:$0xff]
            %117 = vst [vmem:[%s47 + $0x110] sm:$0xff] %v116
            %v118 = vld [vmem:[%s46 + $0x118] sm:$0xff]
            %119 = vst [vmem:[%s47 + $0x118] sm:$0xff] %v118
            %v120 = vld [vmem:[%s46 + $0x120] sm:$0xff]
            %121 = vst [vmem:[%s47 + $0x120] sm:$0xff] %v120
            %v122 = vld [vmem:[%s46 + $0x128] sm:$0xff]
            %123 = vst [vmem:[%s47 + $0x128] sm:$0xff] %v122
            %v124 = vld [vmem:[%s46 + $0x130] sm:$0xff]
            %125 = vst [vmem:[%s47 + $0x130] sm:$0xff] %v124
            %v126 = vld [vmem:[%s46 + $0x138] sm:$0xff]
            %127 = vst [vmem:[%s47 + $0x138] sm:$0xff] %v126
            %v128 = vld [vmem:[%s46 + $0x140] sm:$0xff]
            %129 = vst [vmem:[%s47 + $0x140] sm:$0xff] %v128
            %v130 = vld [vmem:[%s46 + $0x148] sm:$0xff]
            %131 = vst [vmem:[%s47 + $0x148] sm:$0xff] %v130
            %v132 = vld [vmem:[%s46 + $0x150] sm:$0xff]
            %133 = vst [vmem:[%s47 + $0x150] sm:$0xff] %v132
            %v134 = vld [vmem:[%s46 + $0x158] sm:$0xff]
            %135 = vst [vmem:[%s47 + $0x158] sm:$0xff] %v134
            %v136 = vld [vmem:[%s46 + $0x160] sm:$0xff]
            %137 = vst [vmem:[%s47 + $0x160] sm:$0xff] %v136
            %v138 = vld [vmem:[%s46 + $0x168] sm:$0xff]
            %139 = vst [vmem:[%s47 + $0x168] sm:$0xff] %v138
            %v140 = vld [vmem:[%s46 + $0x170] sm:$0xff]
            %141 = vst [vmem:[%s47 + $0x170] sm:$0xff] %v140
            %v142 = vld [vmem:[%s46 + $0x178] sm:$0xff]
            %143 = vst [vmem:[%s47 + $0x178] sm:$0xff] %v142
            %v144 = vld [vmem:[%s46 + $0x180] sm:$0xff]
            %145 = vst [vmem:[%s47 + $0x180] sm:$0xff] %v144
            %v146 = vld [vmem:[%s46 + $0x188] sm:$0xff]
            %147 = vst [vmem:[%s47 + $0x188] sm:$0xff] %v146
            %v148 = vld [vmem:[%s46 + $0x190] sm:$0xff]
            %149 = vst [vmem:[%s47 + $0x190] sm:$0xff] %v148
            %v150 = vld [vmem:[%s46 + $0x198] sm:$0xff]
            %151 = vst [vmem:[%s47 + $0x198] sm:$0xff] %v150
            %v152 = vld [vmem:[%s46 + $0x1a0] sm:$0xff]
            %153 = vst [vmem:[%s47 + $0x1a0] sm:$0xff] %v152
            %v154 = vld [vmem:[%s46 + $0x1a8] sm:$0xff]
            %155 = vst [vmem:[%s47 + $0x1a8] sm:$0xff] %v154
            %v156 = vld [vmem:[%s46 + $0x1b0] sm:$0xff]
            %157 = vst [vmem:[%s47 + $0x1b0] sm:$0xff] %v156
            %v158 = vld [vmem:[%s46 + $0x1b8] sm:$0xff]
            %159 = vst [vmem:[%s47 + $0x1b8] sm:$0xff] %v158
            %v160 = vld [vmem:[%s46 + $0x1c0] sm:$0xff]
            %161 = vst [vmem:[%s47 + $0x1c0] sm:$0xff] %v160
            %v162 = vld [vmem:[%s46 + $0x1c8] sm:$0xff]
            %163 = vst [vmem:[%s47 + $0x1c8] sm:$0xff] %v162
            %v164 = vld [vmem:[%s46 + $0x1d0] sm:$0xff]
            %165 = vst [vmem:[%s47 + $0x1d0] sm:$0xff] %v164
            %v166 = vld [vmem:[%s46 + $0x1d8] sm:$0xff]
            %167 = vst [vmem:[%s47 + $0x1d8] sm:$0xff] %v166
            %v168 = vld [vmem:[%s46 + $0x1e0] sm:$0xff]
            %169 = vst [vmem:[%s47 + $0x1e0] sm:$0xff] %v168
            %v170 = vld [vmem:[%s46 + $0x1e8] sm:$0xff]
            %171 = vst [vmem:[%s47 + $0x1e8] sm:$0xff] %v170
            %v172 = vld [vmem:[%s46 + $0x1f0] sm:$0xff]
            %173 = vst [vmem:[%s47 + $0x1f0] sm:$0xff] %v172
            %v174 = vld [vmem:[%s46 + $0x1f8] sm:$0xff]
            %175 = vst [vmem:[%s47 + $0x1f8] sm:$0xff] %v174
          $region34: #{encoder_forward.5} parent=28 // loop_footer
            %s45 = sadd.s32 1, %s41
          $region35: #{encoder_forward.5} parent=28 // loop_footer_branch
            %40 = sbr.rel target = $region31
          $region36: #{encoder_forward.5} parent=28 // loop_exit
            _
        $region29: #{encoder_forward.5} parent=13 // pred_fallthru
          _
        %p176 = pneg %p36
        // Predicated region
        $region37: #{encoder_forward.5} parent=13 // pred_check
          _
        $region38: #{encoder_forward.5} parent=13 // pred_check_branch
          %178 = sbr.rel (%p36) target = $region40
        $region39: #{encoder_forward.5} parent=13 // pred_region
          %s179 = sand.u32 512, 7
        $region40: #{encoder_forward.5} parent=13 // pred_fallthru
          _
      $region14: #{encoder_forward.5} parent=10 // pred_fallthru
        _
      // Predicated region
      $region15: #{encoder_forward.5} parent=10 // pred_check
        %p21 = pneg %p17
      $region16: #{encoder_forward.5} parent=10 // pred_check_branch
        %23 = sbr.rel (%p21) target = $region18
      $region17: #{encoder_forward.5} parent=10 // pred_region
        %s24 = sshllo.u32 0, 512
        loop: start=0, step=1, limit=1
        $region19: #{encoder_forward.5} parent=17 // loop_pre_header
          _
        $region20: #{encoder_forward.5} parent=17 // loop_header
          %s26 = sphi 0, %s30
          %p27 = scmp.ge.s32.totalorder %s26, 1
          %s31 = sphi %s1, %s1
          %s32 = sphi [#allocation2], [#allocation2]
        $region21: #{encoder_forward.5} parent=17 // loop_header_branch
          %29 = sbr.rel (%p27) target = $region25
        $region22: #{encoder_forward.5} parent=17 // loop_body
          %v33 = vld [vmem:[%s31] sm:%s24]
          %34 = vst [vmem:[%s32] sm:%s24] %v33
        $region23: #{encoder_forward.5} parent=17 // loop_footer
          %s30 = sadd.s32 1, %s26
        $region24: #{encoder_forward.5} parent=17 // loop_footer_branch
          %25 = sbr.rel target = $region20
        $region25: #{encoder_forward.5} parent=17 // loop_exit
          _
      $region18: #{encoder_forward.5} parent=10 // pred_fallthru
        _
      // Predicated region
      $region41: #{encoder_forward.5} parent=10 // pred_check
        _
      $region42: #{encoder_forward.5} parent=10 // pred_check_branch
        %182 = sbr.rel (0) target = $region44
      $region43: #{encoder_forward.5} parent=10 // pred_region
        %183 = vsyncadd [#allocation5], 8192
      $region44: #{encoder_forward.5} parent=10 // pred_fallthru
        _
      %s184 = smul.u32 8, 16
      %s185 = smul.u32 %s184, 4
      %s186 = sshll.u32 %s185, 4
      %187 = dma.done [#allocation5], %s186
    %188 = vst [vmem:[#allocation3] sm:$0xff] 0.0
    %189 = vst [vmem:[#allocation4] sm:$0xff] 0.0
  $region9: #{encoder_forward.5} parent=0 // pred_fallthru
    _
  %v190 = vld [vmem:[#allocation2] sm:$0xff]
  %v191 = vld [vmem:[#allocation2 + $0x8] sm:$0xff]
  %v192 = vld [vmem:[#allocation2 + $0x10] sm:$0xff]
  %v193 = vld [vmem:[#allocation2 + $0x18] sm:$0xff]
  %v194 = vld [vmem:[#allocation2 + $0x20] sm:$0xff]
  %v195 = vld [vmem:[#allocation2 + $0x28] sm:$0xff]
  %v196 = vld [vmem:[#allocation2 + $0x30] sm:$0xff]
  %v197 = vld [vmem:[#allocation2 + $0x38] sm:$0xff]
  %v198 = vld [vmem:[#allocation2 + $0x40] sm:$0xff]
  %v199 = vld [vmem:[#allocation2 + $0x48] sm:$0xff]
  %v200 = vld [vmem:[#allocation2 + $0x50] sm:$0xff]
  %v201 = vld [vmem:[#allocation2 + $0x58] sm:$0xff]
  %v202 = vld [vmem:[#allocation2 + $0x60] sm:$0xff]
  %v203 = vld [vmem:[#allocation2 + $0x68] sm:$0xff]
  %v204 = vld [vmem:[#allocation2 + $0x70] sm:$0xff]
  %v205 = vld [vmem:[#allocation2 + $0x78] sm:$0xff]
  %v206 = vld [vmem:[#allocation2 + $0x80] sm:$0xff]
  %v207 = vld [vmem:[#allocation2 + $0x88] sm:$0xff]
  %v208 = vld [vmem:[#allocation2 + $0x90] sm:$0xff]
  %v209 = vld [vmem:[#allocation2 + $0x98] sm:$0xff]
  %v210 = vld [vmem:[#allocation2 + $0xa0] sm:$0xff]
  %v211 = vld [vmem:[#allocation2 + $0xa8] sm:$0xff]
  %v212 = vld [vmem:[#allocation2 + $0xb0] sm:$0xff]
  %v213 = vld [vmem:[#allocation2 + $0xb8] sm:$0xff]
  %v214 = vld [vmem:[#allocation2 + $0xc0] sm:$0xff]
  %v215 = vld [vmem:[#allocation2 + $0xc8] sm:$0xff]
  %v216 = vld [vmem:[#allocation2 + $0xd0] sm:$0xff]
  %v217 = vld [vmem:[#allocation2 + $0xd8] sm:$0xff]
  %v218 = vld [vmem:[#allocation2 + $0xe0] sm:$0xff]
  %v219 = vld [vmem:[#allocation2 + $0xe8] sm:$0xff]
  %v220 = vld [vmem:[#allocation2 + $0xf0] sm:$0xff]
  %v221 = vld [vmem:[#allocation2 + $0xf8] sm:$0xff]
  %v222 = vld [vmem:[#allocation2 + $0x100] sm:$0xff]
  %v223 = vld [vmem:[#allocation2 + $0x108] sm:$0xff]
  %v224 = vld [vmem:[#allocation2 + $0x110] sm:$0xff]
  %v225 = vld [vmem:[#allocation2 + $0x118] sm:$0xff]
  %v226 = vld [vmem:[#allocation2 + $0x120] sm:$0xff]
  %v227 = vld [vmem:[#allocation2 + $0x128] sm:$0xff]
  %v228 = vld [vmem:[#allocation2 + $0x130] sm:$0xff]
  %v229 = vld [vmem:[#allocation2 + $0x138] sm:$0xff]
  %v230 = vld [vmem:[#allocation2 + $0x140] sm:$0xff]
  %v231 = vld [vmem:[#allocation2 + $0x148] sm:$0xff]
  %v232 = vld [vmem:[#allocation2 + $0x150] sm:$0xff]
  %v233 = vld [vmem:[#allocation2 + $0x158] sm:$0xff]
  %v234 = vld [vmem:[#allocation2 + $0x160] sm:$0xff]
  %v235 = vld [vmem:[#allocation2 + $0x168] sm:$0xff]
  %v236 = vld [vmem:[#allocation2 + $0x170] sm:$0xff]
  %v237 = vld [vmem:[#allocation2 + $0x178] sm:$0xff]
  %v238 = vld [vmem:[#allocation2 + $0x180] sm:$0xff]
  %v239 = vld [vmem:[#allocation2 + $0x188] sm:$0xff]
  %v240 = vld [vmem:[#allocation2 + $0x190] sm:$0xff]
  %v241 = vld [vmem:[#allocation2 + $0x198] sm:$0xff]
  %v242 = vld [vmem:[#allocation2 + $0x1a0] sm:$0xff]
  %v243 = vld [vmem:[#allocation2 + $0x1a8] sm:$0xff]
  %v244 = vld [vmem:[#allocation2 + $0x1b0] sm:$0xff]
  %v245 = vld [vmem:[#allocation2 + $0x1b8] sm:$0xff]
  %v246 = vld [vmem:[#allocation2 + $0x1c0] sm:$0xff]
  %v247 = vld [vmem:[#allocation2 + $0x1c8] sm:$0xff]
  %v248 = vld [vmem:[#allocation2 + $0x1d0] sm:$0xff]
  %v249 = vld [vmem:[#allocation2 + $0x1d8] sm:$0xff]
  %v250 = vld [vmem:[#allocation2 + $0x1e0] sm:$0xff]
  %v251 = vld [vmem:[#allocation2 + $0x1e8] sm:$0xff]
  %v252 = vld [vmem:[#allocation2 + $0x1f0] sm:$0xff]
  %v253 = vld [vmem:[#allocation2 + $0x1f8] sm:$0xff]
  %v254 = vld [vmem:[%s0] sm:$0xff]
  %v255 = vld [vmem:[%s0 + $0x8] sm:$0xff]
  %v256 = vld [vmem:[%s0 + $0x10] sm:$0xff]
  %v257 = vld [vmem:[%s0 + $0x18] sm:$0xff]
  %v258 = vld [vmem:[#allocation3] sm:$0xff]
  %259 = vmatprep.subr.mxu0 %v191
  %260 = vmatpush1.msra.mxu0 %v190
  %261 = vmatprep.subr.mxu0 %v195
  %262 = vmatpush1.msra.mxu0 %v194
  %263 = vmatprep.subr.mxu0 %v199
  %264 = vmatpush1.msra.mxu0 %v198
  %265 = vmatprep.subr.mxu0 %v203
  %266 = vmatpush1.msra.mxu0 %v202
  %267 = vmatprep.subr.mxu0 %v207
  %268 = vmatpush1.msra.mxu0 %v206
  %269 = vmatprep.subr.mxu0 %v211
  %270 = vmatpush1.msra.mxu0 %v210
  %271 = vmatprep.subr.mxu0 %v215
  %272 = vmatpush1.msra.mxu0 %v214
  %273 = vmatprep.subr.mxu0 %v219
  %274 = vmatpush1.msra.mxu0 %v218
  %275 = vmatprep.subr.mxu0 %v223
  %276 = vmatpush1.msra.mxu0 %v222
  %277 = vmatprep.subr.mxu0 %v227
  %278 = vmatpush1.msra.mxu0 %v226
  %279 = vmatprep.subr.mxu0 %v231
  %280 = vmatpush1.msra.mxu0 %v230
  %281 = vmatprep.subr.mxu0 %v235
  %282 = vmatpush1.msra.mxu0 %v234
  %283 = vmatprep.subr.mxu0 %v239
  %284 = vmatpush1.msra.mxu0 %v238
  %285 = vmatprep.subr.mxu0 %v243
  %286 = vmatpush1.msra.mxu0 %v242
  %287 = vmatprep.subr.mxu0 %v247
  %288 = vmatpush1.msra.mxu0 %v246
  %289 = vmatprep.subr.mxu0 %v251
  %290 = vmatpush1.msra.mxu0 %v250
  %291 = vmatprep.subr.mxu0 0.0
  %292 = vmatpush1.msra.mxu0 0.0
  %293 = vmatprep.subr.mxu0 0.0
  %294 = vmatpush1.msra.mxu0 0.0
  %295 = vmatprep.subr.mxu0 0.0
  %296 = vmatpush1.msra.mxu0 0.0
  %297 = vmatprep.subr.mxu0 0.0
  %298 = vmatpush1.msra.mxu0 0.0
  %299 = vmatprep.subr.mxu0 0.0
  %300 = vmatpush1.msra.mxu0 0.0
  %301 = vmatprep.subr.mxu0 0.0
  %302 = vmatpush1.msra.mxu0 0.0
  %303 = vmatprep.subr.mxu0 0.0
  %304 = vmatpush1.msra.mxu0 0.0
  %305 = vmatprep.subr.mxu0 0.0
  %306 = vmatpush1.msra.mxu0 0.0
  %307 = vmatprep.subr.mxu0 0.0
  %308 = vmatpush1.msra.mxu0 0.0
  %309 = vmatprep.subr.mxu0 0.0
  %310 = vmatpush1.msra.mxu0 0.0
  %311 = vmatprep.subr.mxu0 0.0
  %312 = vmatpush1.msra.mxu0 0.0
  %313 = vmatprep.subr.mxu0 0.0
  %314 = vmatpush1.msra.mxu0 0.0
  %315 = vmatprep.subr.mxu0 0.0
  %316 = vmatpush1.msra.mxu0 0.0
  %317 = vmatprep.subr.mxu0 0.0
  %318 = vmatpush1.msra.mxu0 0.0
  %319 = vmatprep.subr.mxu0 0.0
  %320 = vmatpush1.msra.mxu0 0.0
  %321 = vmatprep.subr.mxu0 0.0
  %322 = vmatpush1.msra.mxu0 0.0
  %323 = vmatprep.mubr.f32.mxu0 0.0
  %324 = vmatmul.mubr.f32.gmra.mrb[0].mxu0 %v258
  %v325 = vpop.f32.mrb[0].mxu0
  %v326 = vadd.f32 0.0, %v325
  %v327 = vpop.f32.mrb[0].mxu0
  %v328 = vadd.f32 0.0, %v327
  %329 = vdwg.mxu0
  %330 = vmatprep.subr.mxu0 %v193
  %331 = vmatpush1.msra.mxu0 %v192
  %332 = vmatprep.subr.mxu0 %v197
  %333 = vmatpush1.msra.mxu0 %v196
  %334 = vmatprep.subr.mxu0 %v201
  %335 = vmatpush1.msra.mxu0 %v200
  %336 = vmatprep.subr.mxu0 %v205
  %337 = vmatpush1.msra.mxu0 %v204
  %338 = vmatprep.subr.mxu0 %v209
  %339 = vmatpush1.msra.mxu0 %v208
  %340 = vmatprep.subr.mxu0 %v213
  %341 = vmatpush1.msra.mxu0 %v212
  %342 = vmatprep.subr.mxu0 %v217
  %343 = vmatpush1.msra.mxu0 %v216
  %344 = vmatprep.subr.mxu0 %v221
  %345 = vmatpush1.msra.mxu0 %v220
  %346 = vmatprep.subr.mxu0 %v225
  %347 = vmatpush1.msra.mxu0 %v224
  %348 = vmatprep.subr.mxu0 %v229
  %349 = vmatpush1.msra.mxu0 %v228
  %350 = vmatprep.subr.mxu0 %v233
  %351 = vmatpush1.msra.mxu0 %v232
  %352 = vmatprep.subr.mxu0 %v237
  %353 = vmatpush1.msra.mxu0 %v236
  %354 = vmatprep.subr.mxu0 %v241
  %355 = vmatpush1.msra.mxu0 %v240
  %356 = vmatprep.subr.mxu0 %v245
  %357 = vmatpush1.msra.mxu0 %v244
  %358 = vmatprep.subr.mxu0 %v249
  %359 = vmatpush1.msra.mxu0 %v248
  %360 = vmatprep.subr.mxu0 %v253
  %361 = vmatpush1.msra.mxu0 %v252
  %362 = vmatprep.subr.mxu0 0.0
  %363 = vmatpush1.msra.mxu0 0.0
  %364 = vmatprep.subr.mxu0 0.0
  %365 = vmatpush1.msra.mxu0 0.0
  %366 = vmatprep.subr.mxu0 0.0
  %367 = vmatpush1.msra.mxu0 0.0
  %368 = vmatprep.subr.mxu0 0.0
  %369 = vmatpush1.msra.mxu0 0.0
  %370 = vmatprep.subr.mxu0 0.0
  %371 = vmatpush1.msra.mxu0 0.0
  %372 = vmatprep.subr.mxu0 0.0
  %373 = vmatpush1.msra.mxu0 0.0
  %374 = vmatprep.subr.mxu0 0.0
  %375 = vmatpush1.msra.mxu0 0.0
  %376 = vmatprep.subr.mxu0 0.0
  %377 = vmatpush1.msra.mxu0 0.0
  %378 = vmatprep.subr.mxu0 0.0
  %379 = vmatpush1.msra.mxu0 0.0
  %380 = vmatprep.subr.mxu0 0.0
  %381 = vmatpush1.msra.mxu0 0.0
  %382 = vmatprep.subr.mxu0 0.0
  %383 = vmatpush1.msra.mxu0 0.0
  %384 = vmatprep.subr.mxu0 0.0
  %385 = vmatpush1.msra.mxu0 0.0
  %386 = vmatprep.subr.mxu0 0.0
  %387 = vmatpush1.msra.mxu0 0.0
  %388 = vmatprep.subr.mxu0 0.0
  %389 = vmatpush1.msra.mxu0 0.0
  %390 = vmatprep.subr.mxu0 0.0
  %391 = vmatpush1.msra.mxu0 0.0
  %392 = vmatprep.subr.mxu0 0.0
  %393 = vmatpush1.msra.mxu0 0.0
  %394 = vmatprep.mubr.f32.mxu0 0.0
  %395 = vmatmul.mubr.f32.gmra.mrb[0].mxu0 %v258
  %v396 = vpop.f32.mrb[0].mxu0
  %v397 = vadd.f32 0.0, %v396
  %v398 = vpop.f32.mrb[0].mxu0
  %v399 = vadd.f32 0.0, %v398
  %400 = vdwg.mxu0
  %v401 = vadd.f32 %v254, %v326
  %v402 = vadd.f32 %v255, %v328
  %v403 = vadd.f32 %v256, %v397
  %v404 = vadd.f32 %v257, %v399
  %v405 = vxor.u32 %v401, 2147483648
  %v406 = vmul.f32 %v405, 1.442695
  %v407 = vpow.pop %v406
  %v408 = vadd.f32 %v407, 1.0
  %v409 = vrcp.pop %v408
  %v410 = vmul.f32 1.0, %v409
  %v411 = vxor.u32 %v402, 2147483648
  %v412 = vmul.f32 %v411, 1.442695
  %v413 = vpow.pop %v412
  %v414 = vadd.f32 %v413, 1.0
  %v415 = vrcp.pop %v414
  %v416 = vmul.f32 1.0, %v415
  %v417 = vtanh.pop %v403
  %v418 = vxor.u32 %v404, 2147483648
  %v419 = vmul.f32 %v418, 1.442695
  %v420 = vpow.pop %v419
  %v421 = vadd.f32 %v420, 1.0
  %v422 = vrcp.pop %v421
  %v423 = vmul.f32 1.0, %v422
  %v424 = vld [vmem:[#allocation4] sm:$0xff]
  %v425 = vmul.f32 %v416, %v424
  %v426 = vmul.f32 %v410, %v417
  %v427 = vadd.f32 %v425, %v426
  %v428 = vtanh.pop %v427
  %v429 = vmul.f32 %v423, %v428
  %430 = vst [vmem:[#allocation3] sm:$0xff] %v429
  %431 = vst [vmem:[#allocation4] sm:$0xff] %v427
  %432 = vst [vmem:[%s2] sm:$0xff] %v429
  %s433 = scalar_lea.vmem %s0, 32
  %v434 = vld [vmem:[%s433] sm:$0xff]
  %v435 = vld [vmem:[%s433 + $0x8] sm:$0xff]
  %v436 = vld [vmem:[%s433 + $0x10] sm:$0xff]
  %v437 = vld [vmem:[%s433 + $0x18] sm:$0xff]
  %v438 = vld [vmem:[#allocation3] sm:$0xff]
  %439 = vmatprep.subr.mxu0 %v191
  %440 = vmatpush1.msra.mxu0 %v190
  %441 = vmatprep.subr.mxu0 %v195
  %442 = vmatpush1.msra.mxu0 %v194
  %443 = vmatprep.subr.mxu0 %v199
  %444 = vmatpush1.msra.mxu0 %v198
  %445 = vmatprep.subr.mxu0 %v203
  %446 = vmatpush1.msra.mxu0 %v202
  %447 = vmatprep.subr.mxu0 %v207
  %448 = vmatpush1.msra.mxu0 %v206
  %449 = vmatprep.subr.mxu0 %v211
  %450 = vmatpush1.msra.mxu0 %v210
  %451 = vmatprep.subr.mxu0 %v215
  %452 = vmatpush1.msra.mxu0 %v214
  %453 = vmatprep.subr.mxu0 %v219
  %454 = vmatpush1.msra.mxu0 %v218
  %455 = vmatprep.subr.mxu0 %v223
  %456 = vmatpush1.msra.mxu0 %v222
  %457 = vmatprep.subr.mxu0 %v227
  %458 = vmatpush1.msra.mxu0 %v226
  %459 = vmatprep.subr.mxu0 %v231
  %460 = vmatpush1.msra.mxu0 %v230
  %461 = vmatprep.subr.mxu0 %v235
  %462 = vmatpush1.msra.mxu0 %v234
  %463 = vmatprep.subr.mxu0 %v239
  %464 = vmatpush1.msra.mxu0 %v238
  %465 = vmatprep.subr.mxu0 %v243
  %466 = vmatpush1.msra.mxu0 %v242
  %467 = vmatprep.subr.mxu0 %v247
  %468 = vmatpush1.msra.mxu0 %v246
  %469 = vmatprep.subr.mxu0 %v251
  %470 = vmatpush1.msra.mxu0 %v250
  %471 = vmatprep.subr.mxu0 0.0
  %472 = vmatpush1.msra.mxu0 0.0
  %473 = vmatprep.subr.mxu0 0.0
  %474 = vmatpush1.msra.mxu0 0.0
  %475 = vmatprep.subr.mxu0 0.0
  %476 = vmatpush1.msra.mxu0 0.0
  %477 = vmatprep.subr.mxu0 0.0
  %478 = vmatpush1.msra.mxu0 0.0
  %479 = vmatprep.subr.mxu0 0.0
  %480 = vmatpush1.msra.mxu0 0.0
  %481 = vmatprep.subr.mxu0 0.0
  %482 = vmatpush1.msra.mxu0 0.0
  %483 = vmatprep.subr.mxu0 0.0
  %484 = vmatpush1.msra.mxu0 0.0
  %485 = vmatprep.subr.mxu0 0.0
  %486 = vmatpush1.msra.mxu0 0.0
  %487 = vmatprep.subr.mxu0 0.0
  %488 = vmatpush1.msra.mxu0 0.0
  %489 = vmatprep.subr.mxu0 0.0
  %490 = vmatpush1.msra.mxu0 0.0
  %491 = vmatprep.subr.mxu0 0.0
  %492 = vmatpush1.msra.mxu0 0.0
  %493 = vmatprep.subr.mxu0 0.0
  %494 = vmatpush1.msra.mxu0 0.0
  %495 = vmatprep.subr.mxu0 0.0
  %496 = vmatpush1.msra.mxu0 0.0
  %497 = vmatprep.subr.mxu0 0.0
  %498 = vmatpush1.msra.mxu0 0.0
  %499 = vmatprep.subr.mxu0 0.0
  %500 = vmatpush1.msra.mxu0 0.0
  %501 = vmatprep.subr.mxu0 0.0
  %502 = vmatpush1.msra.mxu0 0.0
  %503 = vmatprep.mubr.f32.mxu0 0.0
  %504 = vmatmul.mubr.f32.gmra.mrb[0].mxu0 %v438
  %v505 = vpop.f32.mrb[0].mxu0
  %v506 = vadd.f32 0.0, %v505
  %v507 = vpop.f32.mrb[0].mxu0
  %v508 = vadd.f32 0.0, %v507
  %509 = vdwg.mxu0
  %510 = vmatprep.subr.mxu0 %v193
  %511 = vmatpush1.msra.mxu0 %v192
  %512 = vmatprep.subr.mxu0 %v197
  %513 = vmatpush1.msra.mxu0 %v196
  %514 = vmatprep.subr.mxu0 %v201
  %515 = vmatpush1.msra.mxu0 %v200
  %516 = vmatprep.subr.mxu0 %v205
  %517 = vmatpush1.msra.mxu0 %v204
  %518 = vmatprep.subr.mxu0 %v209
  %519 = vmatpush1.msra.mxu0 %v208
  %520 = vmatprep.subr.mxu0 %v213
  %521 = vmatpush1.msra.mxu0 %v212
  %522 = vmatprep.subr.mxu0 %v217
  %523 = vmatpush1.msra.mxu0 %v216
  %524 = vmatprep.subr.mxu0 %v221
  %525 = vmatpush1.msra.mxu0 %v220
  %526 = vmatprep.subr.mxu0 %v225
  %527 = vmatpush1.msra.mxu0 %v224
  %528 = vmatprep.subr.mxu0 %v229
  %529 = vmatpush1.msra.mxu0 %v228
  %530 = vmatprep.subr.mxu0 %v233
  %531 = vmatpush1.msra.mxu0 %v232
  %532 = vmatprep.subr.mxu0 %v237
  %533 = vmatpush1.msra.mxu0 %v236
  %534 = vmatprep.subr.mxu0 %v241
  %535 = vmatpush1.msra.mxu0 %v240
  %536 = vmatprep.subr.mxu0 %v245
  %537 = vmatpush1.msra.mxu0 %v244
  %538 = vmatprep.subr.mxu0 %v249
  %539 = vmatpush1.msra.mxu0 %v248
  %540 = vmatprep.subr.mxu0 %v253
  %541 = vmatpush1.msra.mxu0 %v252
  %542 = vmatprep.subr.mxu0 0.0
  %543 = vmatpush1.msra.mxu0 0.0
  %544 = vmatprep.subr.mxu0 0.0
  %545 = vmatpush1.msra.mxu0 0.0
  %546 = vmatprep.subr.mxu0 0.0
  %547 = vmatpush1.msra.mxu0 0.0
  %548 = vmatprep.subr.mxu0 0.0
  %549 = vmatpush1.msra.mxu0 0.0
  %550 = vmatprep.subr.mxu0 0.0
  %551 = vmatpush1.msra.mxu0 0.0
  %552 = vmatprep.subr.mxu0 0.0
  %553 = vmatpush1.msra.mxu0 0.0
  %554 = vmatprep.subr.mxu0 0.0
  %555 = vmatpush1.msra.mxu0 0.0
  %556 = vmatprep.subr.mxu0 0.0
  %557 = vmatpush1.msra.mxu0 0.0
  %558 = vmatprep.subr.mxu0 0.0
  %559 = vmatpush1.msra.mxu0 0.0
  %560 = vmatprep.subr.mxu0 0.0
  %561 = vmatpush1.msra.mxu0 0.0
  %562 = vmatprep.subr.mxu0 0.0
  %563 = vmatpush1.msra.mxu0 0.0
  %564 = vmatprep.subr.mxu0 0.0
  %565 = vmatpush1.msra.mxu0 0.0
  %566 = vmatprep.subr.mxu0 0.0
  %567 = vmatpush1.msra.mxu0 0.0
  %568 = vmatprep.subr.mxu0 0.0
  %569 = vmatpush1.msra.mxu0 0.0
  %570 = vmatprep.subr.mxu0 0.0
  %571 = vmatpush1.msra.mxu0 0.0
  %572 = vmatprep.subr.mxu0 0.0
  %573 = vmatpush1.msra.mxu0 0.0
  %574 = vmatprep.mubr.f32.mxu0 0.0
  %575 = vmatmul.mubr.f32.gmra.mrb[0].mxu0 %v438
  %v576 = vpop.f32.mrb[0].mxu0
  %v577 = vadd.f32 0.0, %v576
  %v578 = vpop.f32.mrb[0].mxu0
  %v579 = vadd.f32 0.0, %v578
  %580 = vdwg.mxu0
  %v581 = vadd.f32 %v434, %v506
  %v582 = vadd.f32 %v435, %v508
  %v583 = vadd.f32 %v436, %v577
  %v584 = vadd.f32 %v437, %v579
  %v585 = vxor.u32 %v581, 2147483648
  %v586 = vmul.f32 %v585, 1.442695
  %v587 = vpow.pop %v586
  %v588 = vadd.f32 %v587, 1.0
  %v589 = vrcp.pop %v588
  %v590 = vmul.f32 1.0, %v589
  %v591 = vxor.u32 %v582, 2147483648
  %v592 = vmul.f32 %v591, 1.442695
  %v593 = vpow.pop %v592
  %v594 = vadd.f32 %v593, 1.0
  %v595 = vrcp.pop %v594
  %v596 = vmul.f32 1.0, %v595
  %v597 = vtanh.pop %v583
  %v598 = vxor.u32 %v584, 2147483648
  %v599 = vmul.f32 %v598, 1.442695
  %v600 = vpow.pop %v599
  %v601 = vadd.f32 %v600, 1.0
  %v602 = vrcp.pop %v601
  %v603 = vmul.f32 1.0, %v602
  %v604 = vld [vmem:[#allocation4] sm:$0xff]
  %v605 = vmul.f32 %v596, %v604
  %v606 = vmul.f32 %v590, %v597
  %v607 = vadd.f32 %v605, %v606
  %v608 = vtanh.pop %v607
  %v609 = vmul.f32 %v603, %v608
  %610 = vst [vmem:[#allocation3] sm:$0xff] %v609
  %611 = vst [vmem:[#allocation4] sm:$0xff] %v607
  %s612 = scalar_lea.vmem %s2, 8
  %613 = vst [vmem:[%s612] sm:$0xff] %v609
  %s614 = scalar_lea.vmem %s0, 64
  %v615 = vld [vmem:[%s614] sm:$0xff]
  %v616 = vld [vmem:[%s614 + $0x8] sm:$0xff]
  %v617 = vld [vmem:[%s614 + $0x10] sm:$0xff]
  %v618 = vld [vmem:[%s614 + $0x18] sm:$0xff]
  %v619 = vld [vmem:[#allocation3] sm:$0xff]
  %620 = vmatprep.subr.mxu0 %v191
  %621 = vmatpush1.msra.mxu0 %v190
  %622 = vmatprep.subr.mxu0 %v195
  %623 = vmatpush1.msra.mxu0 %v194
  %624 = vmatprep.subr.mxu0 %v199
  %625 = vmatpush1.msra.mxu0 %v198
  %626 = vmatprep.subr.mxu0 %v203
  %627 = vmatpush1.msra.mxu0 %v202
  %628 = vmatprep.subr.mxu0 %v207
  %629 = vmatpush1.msra.mxu0 %v206
  %630 = vmatprep.subr.mxu0 %v211
  %631 = vmatpush1.msra.mxu0 %v210
  %632 = vmatprep.subr.mxu0 %v215
  %633 = vmatpush1.msra.mxu0 %v214
  %634 = vmatprep.subr.mxu0 %v219
  %635 = vmatpush1.msra.mxu0 %v218
  %636 = vmatprep.subr.mxu0 %v223
  %637 = vmatpush1.msra.mxu0 %v222
  %638 = vmatprep.subr.mxu0 %v227
  %639 = vmatpush1.msra.mxu0 %v226
  %640 = vmatprep.subr.mxu0 %v231
  %641 = vmatpush1.msra.mxu0 %v230
  %642 = vmatprep.subr.mxu0 %v235
  %643 = vmatpush1.msra.mxu0 %v234
  %644 = vmatprep.subr.mxu0 %v239
  %645 = vmatpush1.msra.mxu0 %v238
  %646 = vmatprep.subr.mxu0 %v243
  %647 = vmatpush1.msra.mxu0 %v242
  %648 = vmatprep.subr.mxu0 %v247
  %649 = vmatpush1.msra.mxu0 %v246
  %650 = vmatprep.subr.mxu0 %v251
  %651 = vmatpush1.msra.mxu0 %v250
  %652 = vmatprep.subr.mxu0 0.0
  %653 = vmatpush1.msra.mxu0 0.0
  %654 = vmatprep.subr.mxu0 0.0
  %655 = vmatpush1.msra.mxu0 0.0
  %656 = vmatprep.subr.mxu0 0.0
  %657 = vmatpush1.msra.mxu0 0.0
  %658 = vmatprep.subr.mxu0 0.0
  %659 = vmatpush1.msra.mxu0 0.0
  %660 = vmatprep.subr.mxu0 0.0
  %661 = vmatpush1.msra.mxu0 0.0
  %662 = vmatprep.subr.mxu0 0.0
  %663 = vmatpush1.msra.mxu0 0.0
  %664 = vmatprep.subr.mxu0 0.0
  %665 = vmatpush1.msra.mxu0 0.0
  %666 = vmatprep.subr.mxu0 0.0
  %667 = vmatpush1.msra.mxu0 0.0
  %668 = vmatprep.subr.mxu0 0.0
  %669 = vmatpush1.msra.mxu0 0.0
  %670 = vmatprep.subr.mxu0 0.0
  %671 = vmatpush1.msra.mxu0 0.0
  %672 = vmatprep.subr.mxu0 0.0
  %673 = vmatpush1.msra.mxu0 0.0
  %674 = vmatprep.subr.mxu0 0.0
  %675 = vmatpush1.msra.mxu0 0.0
  %676 = vmatprep.subr.mxu0 0.0
  %677 = vmatpush1.msra.mxu0 0.0
  %678 = vmatprep.subr.mxu0 0.0
  %679 = vmatpush1.msra.mxu0 0.0
  %680 = vmatprep.subr.mxu0 0.0
  %681 = vmatpush1.msra.mxu0 0.0
  %682 = vmatprep.subr.mxu0 0.0
  %683 = vmatpush1.msra.mxu0 0.0
  %684 = vmatprep.mubr.f32.mxu0 0.0
  %685 = vmatmul.mubr.f32.gmra.mrb[0].mxu0 %v619
  %v686 = vpop.f32.mrb[0].mxu0
  %v687 = vadd.f32 0.0, %v686
  %v688 = vpop.f32.mrb[0].mxu0
  %v689 = vadd.f32 0.0, %v688
  %690 = vdwg.mxu0
  %691 = vmatprep.subr.mxu0 %v193
  %692 = vmatpush1.msra.mxu0 %v192
  %693 = vmatprep.subr.mxu0 %v197
  %694 = vmatpush1.msra.mxu0 %v196
  %695 = vmatprep.subr.mxu0 %v201
  %696 = vmatpush1.msra.mxu0 %v200
  %697 = vmatprep.subr.mxu0 %v205
  %698 = vmatpush1.msra.mxu0 %v204
  %699 = vmatprep.subr.mxu0 %v209
  %700 = vmatpush1.msra.mxu0 %v208
  %701 = vmatprep.subr.mxu0 %v213
  %702 = vmatpush1.msra.mxu0 %v212
  %703 = vmatprep.subr.mxu0 %v217
  %704 = vmatpush1.msra.mxu0 %v216
  %705 = vmatprep.subr.mxu0 %v221
  %706 = vmatpush1.msra.mxu0 %v220
  %707 = vmatprep.subr.mxu0 %v225
  %708 = vmatpush1.msra.mxu0 %v224
  %709 = vmatprep.subr.mxu0 %v229
  %710 = vmatpush1.msra.mxu0 %v228
  %711 = vmatprep.subr.mxu0 %v233
  %712 = vmatpush1.msra.mxu0 %v232
  %713 = vmatprep.subr.mxu0 %v237
  %714 = vmatpush1.msra.mxu0 %v236
  %715 = vmatprep.subr.mxu0 %v241
  %716 = vmatpush1.msra.mxu0 %v240
  %717 = vmatprep.subr.mxu0 %v245
  %718 = vmatpush1.msra.mxu0 %v244
  %719 = vmatprep.subr.mxu0 %v249
  %720 = vmatpush1.msra.mxu0 %v248
  %721 = vmatprep.subr.mxu0 %v253
  %722 = vmatpush1.msra.mxu0 %v252
  %723 = vmatprep.subr.mxu0 0.0
  %724 = vmatpush1.msra.mxu0 0.0
  %725 = vmatprep.subr.mxu0 0.0
  %726 = vmatpush1.msra.mxu0 0.0
  %727 = vmatprep.subr.mxu0 0.0
  %728 = vmatpush1.msra.mxu0 0.0
  %729 = vmatprep.subr.mxu0 0.0
  %730 = vmatpush1.msra.mxu0 0.0
  %731 = vmatprep.subr.mxu0 0.0
  %732 = vmatpush1.msra.mxu0 0.0
  %733 = vmatprep.subr.mxu0 0.0
  %734 = vmatpush1.msra.mxu0 0.0
  %735 = vmatprep.subr.mxu0 0.0
  %736 = vmatpush1.msra.mxu0 0.0
  %737 = vmatprep.subr.mxu0 0.0
  %738 = vmatpush1.msra.mxu0 0.0
  %739 = vmatprep.subr.mxu0 0.0
  %740 = vmatpush1.msra.mxu0 0.0
  %741 = vmatprep.subr.mxu0 0.0
  %742 = vmatpush1.msra.mxu0 0.0
  %743 = vmatprep.subr.mxu0 0.0
  %744 = vmatpush1.msra.mxu0 0.0
  %745 = vmatprep.subr.mxu0 0.0
  %746 = vmatpush1.msra.mxu0 0.0
  %747 = vmatprep.subr.mxu0 0.0
  %748 = vmatpush1.msra.mxu0 0.0
  %749 = vmatprep.subr.mxu0 0.0
  %750 = vmatpush1.msra.mxu0 0.0
  %751 = vmatprep.subr.mxu0 0.0
  %752 = vmatpush1.msra.mxu0 0.0
  %753 = vmatprep.subr.mxu0 0.0
  %754 = vmatpush1.msra.mxu0 0.0
  %755 = vmatprep.mubr.f32.mxu0 0.0
  %756 = vmatmul.mubr.f32.gmra.mrb[0].mxu0 %v619
  %v757 = vpop.f32.mrb[0].mxu0
  %v758 = vadd.f32 0.0, %v757
  %v759 = vpop.f32.mrb[0].mxu0
  %v760 = vadd.f32 0.0, %v759
  %761 = vdwg.mxu0
  %v762 = vadd.f32 %v615, %v687
  %v763 = vadd.f32 %v616, %v689
  %v764 = vadd.f32 %v617, %v758
  %v765 = vadd.f32 %v618, %v760
  %v766 = vxor.u32 %v762, 2147483648
  %v767 = vmul.f32 %v766, 1.442695
  %v768 = vpow.pop %v767
  %v769 = vadd.f32 %v768, 1.0
  %v770 = vrcp.pop %v769
  %v771 = vmul.f32 1.0, %v770
  %v772 = vxor.u32 %v763, 2147483648
  %v773 = vmul.f32 %v772, 1.442695
  %v774 = vpow.pop %v773
  %v775 = vadd.f32 %v774, 1.0
  %v776 = vrcp.pop %v775
  %v777 = vmul.f32 1.0, %v776
  %v778 = vtanh.pop %v764
  %v779 = vxor.u32 %v765, 2147483648
  %v780 = vmul.f32 %v779, 1.442695
  %v781 = vpow.pop %v780
  %v782 = vadd.f32 %v781, 1.0
  %v783 = vrcp.pop %v782
  %v784 = vmul.f32 1.0, %v783
  %v785 = vld [vmem:[#allocation4] sm:$0xff]
  %v786 = vmul.f32 %v777, %v785
  %v787 = vmul.f32 %v771, %v778
  %v788 = vadd.f32 %v786, %v787
  %v789 = vtanh.pop %v788
  %v790 = vmul.f32 %v784, %v789
  %791 = vst [vmem:[#allocation3] sm:$0xff] %v790
  %792 = vst [vmem:[#allocation4] sm:$0xff] %v788
  %s793 = scalar_lea.vmem %s2, 16
  %794 = vst [vmem:[%s793] sm:$0xff] %v790
  %s795 = scalar_lea.vmem %s0, 96
  %v796 = vld [vmem:[%s795] sm:$0xff]
  %v797 = vld [vmem:[%s795 + $0x8] sm:$0xff]
  %v798 = vld [vmem:[%s795 + $0x10] sm:$0xff]
  %v799 = vld [vmem:[%s795 + $0x18] sm:$0xff]
  %v800 = vld [vmem:[#allocation3] sm:$0xff]
  %801 = vmatprep.subr.mxu0 %v191
  %802 = vmatpush1.msra.mxu0 %v190
  %803 = vmatprep.subr.mxu0 %v195
  %804 = vmatpush1.msra.mxu0 %v194
  %805 = vmatprep.subr.mxu0 %v199
  %806 = vmatpush1.msra.mxu0 %v198
  %807 = vmatprep.subr.mxu0 %v203
  %808 = vmatpush1.msra.mxu0 %v202
  %809 = vmatprep.subr.mxu0 %v207
  %810 = vmatpush1.msra.mxu0 %v206
  %811 = vmatprep.subr.mxu0 %v211
  %812 = vmatpush1.msra.mxu0 %v210
  %813 = vmatprep.subr.mxu0 %v215
  %814 = vmatpush1.msra.mxu0 %v214
  %815 = vmatprep.subr.mxu0 %v219
  %816 = vmatpush1.msra.mxu0 %v218
  %817 = vmatprep.subr.mxu0 %v223
  %818 = vmatpush1.msra.mxu0 %v222
  %819 = vmatprep.subr.mxu0 %v227
  %820 = vmatpush1.msra.mxu0 %v226
  %821 = vmatprep.subr.mxu0 %v231
  %822 = vmatpush1.msra.mxu0 %v230
  %823 = vmatprep.subr.mxu0 %v235
  %824 = vmatpush1.msra.mxu0 %v234
  %825 = vmatprep.subr.mxu0 %v239
  %826 = vmatpush1.msra.mxu0 %v238
  %827 = vmatprep.subr.mxu0 %v243
  %828 = vmatpush1.msra.mxu0 %v242
  %829 = vmatprep.subr.mxu0 %v247
  %830 = vmatpush1.msra.mxu0 %v246
  %831 = vmatprep.subr.mxu0 %v251
  %832 = vmatpush1.msra.mxu0 %v250
  %833 = vmatprep.subr.mxu0 0.0
  %834 = vmatpush1.msra.mxu0 0.0
  %835 = vmatprep.subr.mxu0 0.0
  %836 = vmatpush1.msra.mxu0 0.0
  %837 = vmatprep.subr.mxu0 0.0
  %838 = vmatpush1.msra.mxu0 0.0
  %839 = vmatprep.subr.mxu0 0.0
  %840 = vmatpush1.msra.mxu0 0.0
  %841 = vmatprep.subr.mxu0 0.0
  %842 = vmatpush1.msra.mxu0 0.0
  %843 = vmatprep.subr.mxu0 0.0
  %844 = vmatpush1.msra.mxu0 0.0
  %845 = vmatprep.subr.mxu0 0.0
  %846 = vmatpush1.msra.mxu0 0.0
  %847 = vmatprep.subr.mxu0 0.0
  %848 = vmatpush1.msra.mxu0 0.0
  %849 = vmatprep.subr.mxu0 0.0
  %850 = vmatpush1.msra.mxu0 0.0
  %851 = vmatprep.subr.mxu0 0.0
  %852 = vmatpush1.msra.mxu0 0.0
  %853 = vmatprep.subr.mxu0 0.0
  %854 = vmatpush1.msra.mxu0 0.0
  %855 = vmatprep.subr.mxu0 0.0
  %856 = vmatpush1.msra.mxu0 0.0
  %857 = vmatprep.subr.mxu0 0.0
  %858 = vmatpush1.msra.mxu0 0.0
  %859 = vmatprep.subr.mxu0 0.0
  %860 = vmatpush1.msra.mxu0 0.0
  %861 = vmatprep.subr.mxu0 0.0
  %862 = vmatpush1.msra.mxu0 0.0
  %863 = vmatprep.subr.mxu0 0.0
  %864 = vmatpush1.msra.mxu0 0.0
  %865 = vmatprep.mubr.f32.mxu0 0.0
  %866 = vmatmul.mubr.f32.gmra.mrb[0].mxu0 %v800
  %v867 = vpop.f32.mrb[0].mxu0
  %v868 = vadd.f32 0.0, %v867
  %v869 = vpop.f32.mrb[0].mxu0
  %v870 = vadd.f32 0.0, %v869
  %871 = vdwg.mxu0
  %872 = vmatprep.subr.mxu0 %v193
  %873 = vmatpush1.msra.mxu0 %v192
  %874 = vmatprep.subr.mxu0 %v197
  %875 = vmatpush1.msra.mxu0 %v196
  %876 = vmatprep.subr.mxu0 %v201
  %877 = vmatpush1.msra.mxu0 %v200
  %878 = vmatprep.subr.mxu0 %v205
  %879 = vmatpush1.msra.mxu0 %v204
  %880 = vmatprep.subr.mxu0 %v209
  %881 = vmatpush1.msra.mxu0 %v208
  %882 = vmatprep.subr.mxu0 %v213
  %883 = vmatpush1.msra.mxu0 %v212
  %884 = vmatprep.subr.mxu0 %v217
  %885 = vmatpush1.msra.mxu0 %v216
  %886 = vmatprep.subr.mxu0 %v221
  %887 = vmatpush1.msra.mxu0 %v220
  %888 = vmatprep.subr.mxu0 %v225
  %889 = vmatpush1.msra.mxu0 %v224
  %890 = vmatprep.subr.mxu0 %v229
  %891 = vmatpush1.msra.mxu0 %v228
  %892 = vmatprep.subr.mxu0 %v233
  %893 = vmatpush1.msra.mxu0 %v232
  %894 = vmatprep.subr.mxu0 %v237
  %895 = vmatpush1.msra.mxu0 %v236
  %896 = vmatprep.subr.mxu0 %v241
  %897 = vmatpush1.msra.mxu0 %v240
  %898 = vmatprep.subr.mxu0 %v245
  %899 = vmatpush1.msra.mxu0 %v244
  %900 = vmatprep.subr.mxu0 %v249
  %901 = vmatpush1.msra.mxu0 %v248
  %902 = vmatprep.subr.mxu0 %v253
  %903 = vmatpush1.msra.mxu0 %v252
  %904 = vmatprep.subr.mxu0 0.0
  %905 = vmatpush1.msra.mxu0 0.0
  %906 = vmatprep.subr.mxu0 0.0
  %907 = vmatpush1.msra.mxu0 0.0
  %908 = vmatprep.subr.mxu0 0.0
  %909 = vmatpush1.msra.mxu0 0.0
  %910 = vmatprep.subr.mxu0 0.0
  %911 = vmatpush1.msra.mxu0 0.0
  %912 = vmatprep.subr.mxu0 0.0
  %913 = vmatpush1.msra.mxu0 0.0
  %914 = vmatprep.subr.mxu0 0.0
  %915 = vmatpush1.msra.mxu0 0.0
  %916 = vmatprep.subr.mxu0 0.0
  %917 = vmatpush1.msra.mxu0 0.0
  %918 = vmatprep.subr.mxu0 0.0
  %919 = vmatpush1.msra.mxu0 0.0
  %920 = vmatprep.subr.mxu0 0.0
  %921 = vmatpush1.msra.mxu0 0.0
  %922 = vmatprep.subr.mxu0 0.0
  %923 = vmatpush1.msra.mxu0 0.0
  %924 = vmatprep.subr.mxu0 0.0
  %925 = vmatpush1.msra.mxu0 0.0
  %926 = vmatprep.subr.mxu0 0.0
  %927 = vmatpush1.msra.mxu0 0.0
  %928 = vmatprep.subr.mxu0 0.0
  %929 = vmatpush1.msra.mxu0 0.0
  %930 = vmatprep.subr.mxu0 0.0
  %931 = vmatpush1.msra.mxu0 0.0
  %932 = vmatprep.subr.mxu0 0.0
  %933 = vmatpush1.msra.mxu0 0.0
  %934 = vmatprep.subr.mxu0 0.0
  %935 = vmatpush1.msra.mxu0 0.0
  %936 = vmatprep.mubr.f32.mxu0 0.0
  %937 = vmatmul.mubr.f32.gmra.mrb[0].mxu0 %v800
  %v938 = vpop.f32.mrb[0].mxu0
  %v939 = vadd.f32 0.0, %v938
  %v940 = vpop.f32.mrb[0].mxu0
  %v941 = vadd.f32 0.0, %v940
  %942 = vdwg.mxu0
  %v943 = vadd.f32 %v796, %v868
  %v944 = vadd.f32 %v797, %v870
  %v945 = vadd.f32 %v798, %v939
  %v946 = vadd.f32 %v799, %v941
  %v947 = vxor.u32 %v943, 2147483648
  %v948 = vmul.f32 %v947, 1.442695
  %v949 = vpow.pop %v948
  %v950 = vadd.f32 %v949, 1.0
  %v951 = vrcp.pop %v950
  %v952 = vmul.f32 1.0, %v951
  %v953 = vxor.u32 %v944, 2147483648
  %v954 = vmul.f32 %v953, 1.442695
  %v955 = vpow.pop %v954
  %v956 = vadd.f32 %v955, 1.0
  %v957 = vrcp.pop %v956
  %v958 = vmul.f32 1.0, %v957
  %v959 = vtanh.pop %v945
  %v960 = vxor.u32 %v946, 2147483648
  %v961 = vmul.f32 %v960, 1.442695
  %v962 = vpow.pop %v961
  %v963 = vadd.f32 %v962, 1.0
  %v964 = vrcp.pop %v963
  %v965 = vmul.f32 1.0, %v964
  %v966 = vld [vmem:[#allocation4] sm:$0xff]
  %v967 = vmul.f32 %v958, %v966
  %v968 = vmul.f32 %v952, %v959
  %v969 = vadd.f32 %v967, %v968
  %v970 = vtanh.pop %v969
  %v971 = vmul.f32 %v965, %v970
  %972 = vst [vmem:[#allocation3] sm:$0xff] %v971
  %973 = vst [vmem:[#allocation4] sm:$0xff] %v969
  %s974 = scalar_lea.vmem %s2, 24
  %975 = vst [vmem:[%s974] sm:$0xff] %v971
  %s976 = scalar_lea.vmem %s0, 128
  %v977 = vld [vmem:[%s976] sm:$0xff]
  %v978 = vld [vmem:[%s976 + $0x8] sm:$0xff]
  %v979 = vld [vmem:[%s976 + $0x10] sm:$0xff]
  %v980 = vld [vmem:[%s976 + $0x18] sm:$0xff]
  %v981 = vld [vmem:[#allocation3] sm:$0xff]
  %982 = vmatprep.subr.mxu0 %v191
  %983 = vmatpush1.msra.mxu0 %v190
  %984 = vmatprep.subr.mxu0 %v195
  %985 = vmatpush1.msra.mxu0 %v194
  %986 = vmatprep.subr.mxu0 %v199
  %987 = vmatpush1.msra.mxu0 %v198
  %988 = vmatprep.subr.mxu0 %v203
  %989 = vmatpush1.msra.mxu0 %v202
  %990 = vmatprep.subr.mxu0 %v207
  %991 = vmatpush1.msra.mxu0 %v206
  %992 = vmatprep.subr.mxu0 %v211
  %993 = vmatpush1.msra.mxu0 %v210
  %994 = vmatprep.subr.mxu0 %v215
  %995 = vmatpush1.msra.mxu0 %v214
  %996 = vmatprep.subr.mxu0 %v219
  %997 = vmatpush1.msra.mxu0 %v218
  %998 = vmatprep.subr.mxu0 %v223
  %999 = vmatpush1.msra.mxu0 %v222
  %1000 = vmatprep.subr.mxu0 %v227
  %1001 = vmatpush1.msra.mxu0 %v226
  %1002 = vmatprep.subr.mxu0 %v231
  %1003 = vmatpush1.msra.mxu0 %v230
  %1004 = vmatprep.subr.mxu0 %v235
  %1005 = vmatpush1.msra.mxu0 %v234
  %1006 = vmatprep.subr.mxu0 %v239
  %1007 = vmatpush1.msra.mxu0 %v238
  %1008 = vmatprep.subr.mxu0 %v243
  %1009 = vmatpush1.msra.mxu0 %v242
  %1010 = vmatprep.subr.mxu0 %v247
  %1011 = vmatpush1.msra.mxu0 %v246
  %1012 = vmatprep.subr.mxu0 %v251
  %1013 = vmatpush1.msra.mxu0 %v250
  %1014 = vmatprep.subr.mxu0 0.0
  %1015 = vmatpush1.msra.mxu0 0.0
  %1016 = vmatprep.subr.mxu0 0.0
  %1017 = vmatpush1.msra.mxu0 0.0
  %1018 = vmatprep.subr.mxu0 0.0
  %1019 = vmatpush1.msra.mxu0 0.0
  %1020 = vmatprep.subr.mxu0 0.0
  %1021 = vmatpush1.msra.mxu0 0.0
  %1022 = vmatprep.subr.mxu0 0.0
  %1023 = vmatpush1.msra.mxu0 0.0
  %1024 = vmatprep.subr.mxu0 0.0
  %1025 = vmatpush1.msra.mxu0 0.0
  %1026 = vmatprep.subr.mxu0 0.0
  %1027 = vmatpush1.msra.mxu0 0.0
  %1028 = vmatprep.subr.mxu0 0.0
  %1029 = vmatpush1.msra.mxu0 0.0
  %1030 = vmatprep.subr.mxu0 0.0
  %1031 = vmatpush1.msra.mxu0 0.0
  %1032 = vmatprep.subr.mxu0 0.0
  %1033 = vmatpush1.msra.mxu0 0.0
  %1034 = vmatprep.subr.mxu0 0.0
  %1035 = vmatpush1.msra.mxu0 0.0
  %1036 = vmatprep.subr.mxu0 0.0
  %1037 = vmatpush1.msra.mxu0 0.0
  %1038 = vmatprep.subr.mxu0 0.0
  %1039 = vmatpush1.msra.mxu0 0.0
  %1040 = vmatprep.subr.mxu0 0.0
  %1041 = vmatpush1.msra.mxu0 0.0
  %1042 = vmatprep.subr.mxu0 0.0
  %1043 = vmatpush1.msra.mxu0 0.0
  %1044 = vmatprep.subr.mxu0 0.0
  %1045 = vmatpush1.msra.mxu0 0.0
  %1046 = vmatprep.mubr.f32.mxu0 0.0
  %1047 = vmatmul.mubr.f32.gmra.mrb[0].mxu0 %v981
  %v1048 = vpop.f32.mrb[0].mxu0
  %v1049 = vadd.f32 0.0, %v1048
  %v1050 = vpop.f32.mrb[0].mxu0
  %v1051 = vadd.f32 0.0, %v1050
  %1052 = vdwg.mxu0
  %1053 = vmatprep.subr.mxu0 %v193
  %1054 = vmatpush1.msra.mxu0 %v192
  %1055 = vmatprep.subr.mxu0 %v197
  %1056 = vmatpush1.msra.mxu0 %v196
  %1057 = vmatprep.subr.mxu0 %v201
  %1058 = vmatpush1.msra.mxu0 %v200
  %1059 = vmatprep.subr.mxu0 %v205
  %1060 = vmatpush1.msra.mxu0 %v204
  %1061 = vmatprep.subr.mxu0 %v209
  %1062 = vmatpush1.msra.mxu0 %v208
  %1063 = vmatprep.subr.mxu0 %v213
  %1064 = vmatpush1.msra.mxu0 %v212
  %1065 = vmatprep.subr.mxu0 %v217
  %1066 = vmatpush1.msra.mxu0 %v216
  %1067 = vmatprep.subr.mxu0 %v221
  %1068 = vmatpush1.msra.mxu0 %v220
  %1069 = vmatprep.subr.mxu0 %v225
  %1070 = vmatpush1.msra.mxu0 %v224
  %1071 = vmatprep.subr.mxu0 %v229
  %1072 = vmatpush1.msra.mxu0 %v228
  %1073 = vmatprep.subr.mxu0 %v233
  %1074 = vmatpush1.msra.mxu0 %v232
  %1075 = vmatprep.subr.mxu0 %v237
  %1076 = vmatpush1.msra.mxu0 %v236
  %1077 = vmatprep.subr.mxu0 %v241
  %1078 = vmatpush1.msra.mxu0 %v240
  %1079 = vmatprep.subr.mxu0 %v245
  %1080 = vmatpush1.msra.mxu0 %v244
  %1081 = vmatprep.subr.mxu0 %v249
  %1082 = vmatpush1.msra.mxu0 %v248
  %1083 = vmatprep.subr.mxu0 %v253
  %1084 = vmatpush1.msra.mxu0 %v252
  %1085 = vmatprep.subr.mxu0 0.0
  %1086 = vmatpush1.msra.mxu0 0.0
  %1087 = vmatprep.subr.mxu0 0.0
  %1088 = vmatpush1.msra.mxu0 0.0
  %1089 = vmatprep.subr.mxu0 0.0
  %1090 = vmatpush1.msra.mxu0 0.0
  %1091 = vmatprep.subr.mxu0 0.0
  %1092 = vmatpush1.msra.mxu0 0.0
  %1093 = vmatprep.subr.mxu0 0.0
  %1094 = vmatpush1.msra.mxu0 0.0
  %1095 = vmatprep.subr.mxu0 0.0
  %1096 = vmatpush1.msra.mxu0 0.0
  %1097 = vmatprep.subr.mxu0 0.0
  %1098 = vmatpush1.msra.mxu0 0.0
  %1099 = vmatprep.subr.mxu0 0.0
  %1100 = vmatpush1.msra.mxu0 0.0
  %1101 = vmatprep.subr.mxu0 0.0
  %1102 = vmatpush1.msra.mxu0 0.0
  %1103 = vmatprep.subr.mxu0 0.0
  %1104 = vmatpush1.msra.mxu0 0.0
  %1105 = vmatprep.subr.mxu0 0.0
  %1106 = vmatpush1.msra.mxu0 0.0
  %1107 = vmatprep.subr.mxu0 0.0
  %1108 = vmatpush1.msra.mxu0 0.0
  %1109 = vmatprep.subr.mxu0 0.0
  %1110 = vmatpush1.msra.mxu0 0.0
  %1111 = vmatprep.subr.mxu0 0.0
  %1112 = vmatpush1.msra.mxu0 0.0
  %1113 = vmatprep.subr.mxu0 0.0
  %1114 = vmatpush1.msra.mxu0 0.0
  %1115 = vmatprep.subr.mxu0 0.0
  %1116 = vmatpush1.msra.mxu0 0.0
  %1117 = vmatprep.mubr.f32.mxu0 0.0
  %1118 = vmatmul.mubr.f32.gmra.mrb[0].mxu0 %v981
  %v1119 = vpop.f32.mrb[0].mxu0
  %v1120 = vadd.f32 0.0, %v1119
  %v1121 = vpop.f32.mrb[0].mxu0
  %v1122 = vadd.f32 0.0, %v1121
  %1123 = vdwg.mxu0
  %v1124 = vadd.f32 %v977, %v1049
  %v1125 = vadd.f32 %v978, %v1051
  %v1126 = vadd.f32 %v979, %v1120
  %v1127 = vadd.f32 %v980, %v1122
  %v1128 = vxor.u32 %v1124, 2147483648
  %v1129 = vmul.f32 %v1128, 1.442695
  %v1130 = vpow.pop %v1129
  %v1131 = vadd.f32 %v1130, 1.0
  %v1132 = vrcp.pop %v1131
  %v1133 = vmul.f32 1.0, %v1132
  %v1134 = vxor.u32 %v1125, 2147483648
  %v1135 = vmul.f32 %v1134, 1.442695
  %v1136 = vpow.pop %v1135
  %v1137 = vadd.f32 %v1136, 1.0
  %v1138 = vrcp.pop %v1137
  %v1139 = vmul.f32 1.0, %v1138
  %v1140 = vtanh.pop %v1126
  %v1141 = vxor.u32 %v1127, 2147483648
  %v1142 = vmul.f32 %v1141, 1.442695
  %v1143 = vpow.pop %v1142
  %v1144 = vadd.f32 %v1143, 1.0
  %v1145 = vrcp.pop %v1144
  %v1146 = vmul.f32 1.0, %v1145
  %v1147 = vld [vmem:[#allocation4] sm:$0xff]
  %v1148 = vmul.f32 %v1139, %v1147
  %v1149 = vmul.f32 %v1133, %v1140
  %v1150 = vadd.f32 %v1148, %v1149
  %v1151 = vtanh.pop %v1150
  %v1152 = vmul.f32 %v1146, %v1151
  %1153 = vst [vmem:[#allocation3] sm:$0xff] %v1152
  %1154 = vst [vmem:[#allocation4] sm:$0xff] %v1150
  %s1155 = scalar_lea.vmem %s2, 32
  %1156 = vst [vmem:[%s1155] sm:$0xff] %v1152
  %s1157 = scalar_lea.vmem %s0, 160
  %v1158 = vld [vmem:[%s1157] sm:$0xff]
  %v1159 = vld [vmem:[%s1157 + $0x8] sm:$0xff]
  %v1160 = vld [vmem:[%s1157 + $0x10] sm:$0xff]
  %v1161 = vld [vmem:[%s1157 + $0x18] sm:$0xff]
  %v1162 = vld [vmem:[#allocation3] sm:$0xff]
  %1163 = vmatprep.subr.mxu0 %v191
  %1164 = vmatpush1.msra.mxu0 %v190
  %1165 = vmatprep.subr.mxu0 %v195
  %1166 = vmatpush1.msra.mxu0 %v194
  %1167 = vmatprep.subr.mxu0 %v199
  %1168 = vmatpush1.msra.mxu0 %v198
  %1169 = vmatprep.subr.mxu0 %v203
  %1170 = vmatpush1.msra.mxu0 %v202
  %1171 = vmatprep.subr.mxu0 %v207
  %1172 = vmatpush1.msra.mxu0 %v206
  %1173 = vmatprep.subr.mxu0 %v211
  %1174 = vmatpush1.msra.mxu0 %v210
  %1175 = vmatprep.subr.mxu0 %v215
  %1176 = vmatpush1.msra.mxu0 %v214
  %1177 = vmatprep.subr.mxu0 %v219
  %1178 = vmatpush1.msra.mxu0 %v218
  %1179 = vmatprep.subr.mxu0 %v223
  %1180 = vmatpush1.msra.mxu0 %v222
  %1181 = vmatprep.subr.mxu0 %v227
  %1182 = vmatpush1.msra.mxu0 %v226
  %1183 = vmatprep.subr.mxu0 %v231
  %1184 = vmatpush1.msra.mxu0 %v230
  %1185 = vmatprep.subr.mxu0 %v235
  %1186 = vmatpush1.msra.mxu0 %v234
  %1187 = vmatprep.subr.mxu0 %v239
  %1188 = vmatpush1.msra.mxu0 %v238
  %1189 = vmatprep.subr.mxu0 %v243
  %1190 = vmatpush1.msra.mxu0 %v242
  %1191 = vmatprep.subr.mxu0 %v247
  %1192 = vmatpush1.msra.mxu0 %v246
  %1193 = vmatprep.subr.mxu0 %v251
  %1194 = vmatpush1.msra.mxu0 %v250
  %1195 = vmatprep.subr.mxu0 0.0
  %1196 = vmatpush1.msra.mxu0 0.0
  %1197 = vmatprep.subr.mxu0 0.0
  %1198 = vmatpush1.msra.mxu0 0.0
  %1199 = vmatprep.subr.mxu0 0.0
  %1200 = vmatpush1.msra.mxu0 0.0
  %1201 = vmatprep.subr.mxu0 0.0
  %1202 = vmatpush1.msra.mxu0 0.0
  %1203 = vmatprep.subr.mxu0 0.0
  %1204 = vmatpush1.msra.mxu0 0.0
  %1205 = vmatprep.subr.mxu0 0.0
  %1206 = vmatpush1.msra.mxu0 0.0
  %1207 = vmatprep.subr.mxu0 0.0
  %1208 = vmatpush1.msra.mxu0 0.0
  %1209 = vmatprep.subr.mxu0 0.0
  %1210 = vmatpush1.msra.mxu0 0.0
  %1211 = vmatprep.subr.mxu0 0.0
  %1212 = vmatpush1.msra.mxu0 0.0
  %1213 = vmatprep.subr.mxu0 0.0
  %1214 = vmatpush1.msra.mxu0 0.0
  %1215 = vmatprep.subr.mxu0 0.0
  %1216 = vmatpush1.msra.mxu0 0.0
  %1217 = vmatprep.subr.mxu0 0.0
  %1218 = vmatpush1.msra.mxu0 0.0
  %1219 = vmatprep.subr.mxu0 0.0
  %1220 = vmatpush1.msra.mxu0 0.0
  %1221 = vmatprep.subr.mxu0 0.0
  %1222 = vmatpush1.msra.mxu0 0.0
  %1223 = vmatprep.subr.mxu0 0.0
  %1224 = vmatpush1.msra.mxu0 0.0
  %1225 = vmatprep.subr.mxu0 0.0
  %1226 = vmatpush1.msra.mxu0 0.0
  %1227 = vmatprep.mubr.f32.mxu0 0.0
  %1228 = vmatmul.mubr.f32.gmra.mrb[0].mxu0 %v1162
  %v1229 = vpop.f32.mrb[0].mxu0
  %v1230 = vadd.f32 0.0, %v1229
  %v1231 = vpop.f32.mrb[0].mxu0
  %v1232 = vadd.f32 0.0, %v1231
  %1233 = vdwg.mxu0
  %1234 = vmatprep.subr.mxu0 %v193
  %1235 = vmatpush1.msra.mxu0 %v192
  %1236 = vmatprep.subr.mxu0 %v197
  %1237 = vmatpush1.msra.mxu0 %v196
  %1238 = vmatprep.subr.mxu0 %v201
  %1239 = vmatpush1.msra.mxu0 %v200
  %1240 = vmatprep.subr.mxu0 %v205
  %1241 = vmatpush1.msra.mxu0 %v204
  %1242 = vmatprep.subr.mxu0 %v209
  %1243 = vmatpush1.msra.mxu0 %v208
  %1244 = vmatprep.subr.mxu0 %v213
  %1245 = vmatpush1.msra.mxu0 %v212
  %1246 = vmatprep.subr.mxu0 %v217
  %1247 = vmatpush1.msra.mxu0 %v216
  %1248 = vmatprep.subr.mxu0 %v221
  %1249 = vmatpush1.msra.mxu0 %v220
  %1250 = vmatprep.subr.mxu0 %v225
  %1251 = vmatpush1.msra.mxu0 %v224
  %1252 = vmatprep.subr.mxu0 %v229
  %1253 = vmatpush1.msra.mxu0 %v228
  %1254 = vmatprep.subr.mxu0 %v233
  %1255 = vmatpush1.msra.mxu0 %v232
  %1256 = vmatprep.subr.mxu0 %v237
  %1257 = vmatpush1.msra.mxu0 %v236
  %1258 = vmatprep.subr.mxu0 %v241
  %1259 = vmatpush1.msra.mxu0 %v240
  %1260 = vmatprep.subr.mxu0 %v245
  %1261 = vmatpush1.msra.mxu0 %v244
  %1262 = vmatprep.subr.mxu0 %v249
  %1263 = vmatpush1.msra.mxu0 %v248
  %1264 = vmatprep.subr.mxu0 %v253
  %1265 = vmatpush1.msra.mxu0 %v252
  %1266 = vmatprep.subr.mxu0 0.0
  %1267 = vmatpush1.msra.mxu0 0.0
  %1268 = vmatprep.subr.mxu0 0.0
  %1269 = vmatpush1.msra.mxu0 0.0
  %1270 = vmatprep.subr.mxu0 0.0
  %1271 = vmatpush1.msra.mxu0 0.0
  %1272 = vmatprep.subr.mxu0 0.0
  %1273 = vmatpush1.msra.mxu0 0.0
  %1274 = vmatprep.subr.mxu0 0.0
  %1275 = vmatpush1.msra.mxu0 0.0
  %1276 = vmatprep.subr.mxu0 0.0
  %1277 = vmatpush1.msra.mxu0 0.0
  %1278 = vmatprep.subr.mxu0 0.0
  %1279 = vmatpush1.msra.mxu0 0.0
  %1280 = vmatprep.subr.mxu0 0.0
  %1281 = vmatpush1.msra.mxu0 0.0
  %1282 = vmatprep.subr.mxu0 0.0
  %1283 = vmatpush1.msra.mxu0 0.0
  %1284 = vmatprep.subr.mxu0 0.0
  %1285 = vmatpush1.msra.mxu0 0.0
  %1286 = vmatprep.subr.mxu0 0.0
  %1287 = vmatpush1.msra.mxu0 0.0
  %1288 = vmatprep.subr.mxu0 0.0
  %1289 = vmatpush1.msra.mxu0 0.0
  %1290 = vmatprep.subr.mxu0 0.0
  %1291 = vmatpush1.msra.mxu0 0.0
  %1292 = vmatprep.subr.mxu0 0.0
  %1293 = vmatpush1.msra.mxu0 0.0
  %1294 = vmatprep.subr.mxu0 0.0
  %1295 = vmatpush1.msra.mxu0 0.0
  %1296 = vmatprep.subr.mxu0 0.0
  %1297 = vmatpush1.msra.mxu0 0.0
  %1298 = vmatprep.mubr.f32.mxu0 0.0
  %1299 = vmatmul.mubr.f32.gmra.mrb[0].mxu0 %v1162
  %v1300 = vpop.f32.mrb[0].mxu0
  %v1301 = vadd.f32 0.0, %v1300
  %v1302 = vpop.f32.mrb[0].mxu0
  %v1303 = vadd.f32 0.0, %v1302
  %1304 = vdwg.mxu0
  %v1305 = vadd.f32 %v1158, %v1230
  %v1306 = vadd.f32 %v1159, %v1232
  %v1307 = vadd.f32 %v1160, %v1301
  %v1308 = vadd.f32 %v1161, %v1303
  %v1309 = vxor.u32 %v1305, 2147483648
  %v1310 = vmul.f32 %v1309, 1.442695
  %v1311 = vpow.pop %v1310
  %v1312 = vadd.f32 %v1311, 1.0
  %v1313 = vrcp.pop %v1312
  %v1314 = vmul.f32 1.0, %v1313
  %v1315 = vxor.u32 %v1306, 2147483648
  %v1316 = vmul.f32 %v1315, 1.442695
  %v1317 = vpow.pop %v1316
  %v1318 = vadd.f32 %v1317, 1.0
  %v1319 = vrcp.pop %v1318
  %v1320 = vmul.f32 1.0, %v1319
  %v1321 = vtanh.pop %v1307
  %v1322 = vxor.u32 %v1308, 2147483648
  %v1323 = vmul.f32 %v1322, 1.442695
  %v1324 = vpow.pop %v1323
  %v1325 = vadd.f32 %v1324, 1.0
  %v1326 = vrcp.pop %v1325
  %v1327 = vmul.f32 1.0, %v1326
  %v1328 = vld [vmem:[#allocation4] sm:$0xff]
  %v1329 = vmul.f32 %v1320, %v1328
  %v1330 = vmul.f32 %v1314, %v1321
  %v1331 = vadd.f32 %v1329, %v1330
  %v1332 = vtanh.pop %v1331
  %v1333 = vmul.f32 %v1327, %v1332
  %1334 = vst [vmem:[#allocation3] sm:$0xff] %v1333
  %1335 = vst [vmem:[#allocation4] sm:$0xff] %v1331
  %s1336 = scalar_lea.vmem %s2, 40
  %1337 = vst [vmem:[%s1336] sm:$0xff] %v1333
  %s1338 = scalar_lea.vmem %s0, 192
  %v1339 = vld [vmem:[%s1338] sm:$0xff]
  %v1340 = vld [vmem:[%s1338 + $0x8] sm:$0xff]
  %v1341 = vld [vmem:[%s1338 + $0x10] sm:$0xff]
  %v1342 = vld [vmem:[%s1338 + $0x18] sm:$0xff]
  %v1343 = vld [vmem:[#allocation3] sm:$0xff]
  %1344 = vmatprep.subr.mxu0 %v191
  %1345 = vmatpush1.msra.mxu0 %v190
  %1346 = vmatprep.subr.mxu0 %v195
  %1347 = vmatpush1.msra.mxu0 %v194
  %1348 = vmatprep.subr.mxu0 %v199
  %1349 = vmatpush1.msra.mxu0 %v198
  %1350 = vmatprep.subr.mxu0 %v203
  %1351 = vmatpush1.msra.mxu0 %v202
  %1352 = vmatprep.subr.mxu0 %v207
  %1353 = vmatpush1.msra.mxu0 %v206
  %1354 = vmatprep.subr.mxu0 %v211
  %1355 = vmatpush1.msra.mxu0 %v210
  %1356 = vmatprep.subr.mxu0 %v215
  %1357 = vmatpush1.msra.mxu0 %v214
  %1358 = vmatprep.subr.mxu0 %v219
  %1359 = vmatpush1.msra.mxu0 %v218
  %1360 = vmatprep.subr.mxu0 %v223
  %1361 = vmatpush1.msra.mxu0 %v222
  %1362 = vmatprep.subr.mxu0 %v227
  %1363 = vmatpush1.msra.mxu0 %v226
  %1364 = vmatprep.subr.mxu0 %v231
  %1365 = vmatpush1.msra.mxu0 %v230
  %1366 = vmatprep.subr.mxu0 %v235
  %1367 = vmatpush1.msra.mxu0 %v234
  %1368 = vmatprep.subr.mxu0 %v239
  %1369 = vmatpush1.msra.mxu0 %v238
  %1370 = vmatprep.subr.mxu0 %v243
  %1371 = vmatpush1.msra.mxu0 %v242
  %1372 = vmatprep.subr.mxu0 %v247
  %1373 = vmatpush1.msra.mxu0 %v246
  %1374 = vmatprep.subr.mxu0 %v251
  %1375 = vmatpush1.msra.mxu0 %v250
  %1376 = vmatprep.subr.mxu0 0.0
  %1377 = vmatpush1.msra.mxu0 0.0
  %1378 = vmatprep.subr.mxu0 0.0
  %1379 = vmatpush1.msra.mxu0 0.0
  %1380 = vmatprep.subr.mxu0 0.0
  %1381 = vmatpush1.msra.mxu0 0.0
  %1382 = vmatprep.subr.mxu0 0.0
  %1383 = vmatpush1.msra.mxu0 0.0
  %1384 = vmatprep.subr.mxu0 0.0
  %1385 = vmatpush1.msra.mxu0 0.0
  %1386 = vmatprep.subr.mxu0 0.0
  %1387 = vmatpush1.msra.mxu0 0.0
  %1388 = vmatprep.subr.mxu0 0.0
  %1389 = vmatpush1.msra.mxu0 0.0
  %1390 = vmatprep.subr.mxu0 0.0
  %1391 = vmatpush1.msra.mxu0 0.0
  %1392 = vmatprep.subr.mxu0 0.0
  %1393 = vmatpush1.msra.mxu0 0.0
  %1394 = vmatprep.subr.mxu0 0.0
  %1395 = vmatpush1.msra.mxu0 0.0
  %1396 = vmatprep.subr.mxu0 0.0
  %1397 = vmatpush1.msra.mxu0 0.0
  %1398 = vmatprep.subr.mxu0 0.0
  %1399 = vmatpush1.msra.mxu0 0.0
  %1400 = vmatprep.subr.mxu0 0.0
  %1401 = vmatpush1.msra.mxu0 0.0
  %1402 = vmatprep.subr.mxu0 0.0
  %1403 = vmatpush1.msra.mxu0 0.0
  %1404 = vmatprep.subr.mxu0 0.0
  %1405 = vmatpush1.msra.mxu0 0.0
  %1406 = vmatprep.subr.mxu0 0.0
  %1407 = vmatpush1.msra.mxu0 0.0
  %1408 = vmatprep.mubr.f32.mxu0 0.0
  %1409 = vmatmul.mubr.f32.gmra.mrb[0].mxu0 %v1343
  %v1410 = vpop.f32.mrb[0].mxu0
  %v1411 = vadd.f32 0.0, %v1410
  %v1412 = vpop.f32.mrb[0].mxu0
  %v1413 = vadd.f32 0.0, %v1412
  %1414 = vdwg.mxu0
  %1415 = vmatprep.subr.mxu0 %v193
  %1416 = vmatpush1.msra.mxu0 %v192
  %1417 = vmatprep.subr.mxu0 %v197
  %1418 = vmatpush1.msra.mxu0 %v196
  %1419 = vmatprep.subr.mxu0 %v201
  %1420 = vmatpush1.msra.mxu0 %v200
  %1421 = vmatprep.subr.mxu0 %v205
  %1422 = vmatpush1.msra.mxu0 %v204
  %1423 = vmatprep.subr.mxu0 %v209
  %1424 = vmatpush1.msra.mxu0 %v208
  %1425 = vmatprep.subr.mxu0 %v213
  %1426 = vmatpush1.msra.mxu0 %v212
  %1427 = vmatprep.subr.mxu0 %v217
  %1428 = vmatpush1.msra.mxu0 %v216
  %1429 = vmatprep.subr.mxu0 %v221
  %1430 = vmatpush1.msra.mxu0 %v220
  %1431 = vmatprep.subr.mxu0 %v225
  %1432 = vmatpush1.msra.mxu0 %v224
  %1433 = vmatprep.subr.mxu0 %v229
  %1434 = vmatpush1.msra.mxu0 %v228
  %1435 = vmatprep.subr.mxu0 %v233
  %1436 = vmatpush1.msra.mxu0 %v232
  %1437 = vmatprep.subr.mxu0 %v237
  %1438 = vmatpush1.msra.mxu0 %v236
  %1439 = vmatprep.subr.mxu0 %v241
  %1440 = vmatpush1.msra.mxu0 %v240
  %1441 = vmatprep.subr.mxu0 %v245
  %1442 = vmatpush1.msra.mxu0 %v244
  %1443 = vmatprep.subr.mxu0 %v249
  %1444 = vmatpush1.msra.mxu0 %v248
  %1445 = vmatprep.subr.mxu0 %v253
  %1446 = vmatpush1.msra.mxu0 %v252
  %1447 = vmatprep.subr.mxu0 0.0
  %1448 = vmatpush1.msra.mxu0 0.0
  %1449 = vmatprep.subr.mxu0 0.0
  %1450 = vmatpush1.msra.mxu0 0.0
  %1451 = vmatprep.subr.mxu0 0.0
  %1452 = vmatpush1.msra.mxu0 0.0
  %1453 = vmatprep.subr.mxu0 0.0
  %1454 = vmatpush1.msra.mxu0 0.0
  %1455 = vmatprep.subr.mxu0 0.0
  %1456 = vmatpush1.msra.mxu0 0.0
  %1457 = vmatprep.subr.mxu0 0.0
  %1458 = vmatpush1.msra.mxu0 0.0
  %1459 = vmatprep.subr.mxu0 0.0
  %1460 = vmatpush1.msra.mxu0 0.0
  %1461 = vmatprep.subr.mxu0 0.0
  %1462 = vmatpush1.msra.mxu0 0.0
  %1463 = vmatprep.subr.mxu0 0.0
  %1464 = vmatpush1.msra.mxu0 0.0
  %1465 = vmatprep.subr.mxu0 0.0
  %1466 = vmatpush1.msra.mxu0 0.0
  %1467 = vmatprep.subr.mxu0 0.0
  %1468 = vmatpush1.msra.mxu0 0.0
  %1469 = vmatprep.subr.mxu0 0.0
  %1470 = vmatpush1.msra.mxu0 0.0
  %1471 = vmatprep.subr.mxu0 0.0
  %1472 = vmatpush1.msra.mxu0 0.0
  %1473 = vmatprep.subr.mxu0 0.0
  %1474 = vmatpush1.msra.mxu0 0.0
  %1475 = vmatprep.subr.mxu0 0.0
  %1476 = vmatpush1.msra.mxu0 0.0
  %1477 = vmatprep.subr.mxu0 0.0
  %1478 = vmatpush1.msra.mxu0 0.0
  %1479 = vmatprep.mubr.f32.mxu0 0.0
  %1480 = vmatmul.mubr.f32.gmra.mrb[0].mxu0 %v1343
  %v1481 = vpop.f32.mrb[0].mxu0
  %v1482 = vadd.f32 0.0, %v1481
  %v1483 = vpop.f32.mrb[0].mxu0
  %v1484 = vadd.f32 0.0, %v1483
  %1485 = vdwg.mxu0
  %v1486 = vadd.f32 %v1339, %v1411
  %v1487 = vadd.f32 %v1340, %v1413
  %v1488 = vadd.f32 %v1341, %v1482
  %v1489 = vadd.f32 %v1342, %v1484
  %v1490 = vxor.u32 %v1486, 2147483648
  %v1491 = vmul.f32 %v1490, 1.442695
  %v1492 = vpow.pop %v1491
  %v1493 = vadd.f32 %v1492, 1.0
  %v1494 = vrcp.pop %v1493
  %v1495 = vmul.f32 1.0, %v1494
  %v1496 = vxor.u32 %v1487, 2147483648
  %v1497 = vmul.f32 %v1496, 1.442695
  %v1498 = vpow.pop %v1497
  %v1499 = vadd.f32 %v1498, 1.0
  %v1500 = vrcp.pop %v1499
  %v1501 = vmul.f32 1.0, %v1500
  %v1502 = vtanh.pop %v1488
  %v1503 = vxor.u32 %v1489, 2147483648
  %v1504 = vmul.f32 %v1503, 1.442695
  %v1505 = vpow.pop %v1504
  %v1506 = vadd.f32 %v1505, 1.0
  %v1507 = vrcp.pop %v1506
  %v1508 = vmul.f32 1.0, %v1507
  %v1509 = vld [vmem:[#allocation4] sm:$0xff]
  %v1510 = vmul.f32 %v1501, %v1509
  %v1511 = vmul.f32 %v1495, %v1502
  %v1512 = vadd.f32 %v1510, %v1511
  %v1513 = vtanh.pop %v1512
  %v1514 = vmul.f32 %v1508, %v1513
  %1515 = vst [vmem:[#allocation3] sm:$0xff] %v1514
  %1516 = vst [vmem:[#allocation4] sm:$0xff] %v1512
  %s1517 = scalar_lea.vmem %s2, 48
  %1518 = vst [vmem:[%s1517] sm:$0xff] %v1514
  %s1519 = scalar_lea.vmem %s0, 224
  %v1520 = vld [vmem:[%s1519] sm:$0xff]
  %v1521 = vld [vmem:[%s1519 + $0x8] sm:$0xff]
  %v1522 = vld [vmem:[%s1519 + $0x10] sm:$0xff]
  %v1523 = vld [vmem:[%s1519 + $0x18] sm:$0xff]
  %v1524 = vld [vmem:[#allocation3] sm:$0xff]
  %1525 = vmatprep.subr.mxu0 %v191
  %1526 = vmatpush1.msra.mxu0 %v190
  %1527 = vmatprep.subr.mxu0 %v195
  %1528 = vmatpush1.msra.mxu0 %v194
  %1529 = vmatprep.subr.mxu0 %v199
  %1530 = vmatpush1.msra.mxu0 %v198
  %1531 = vmatprep.subr.mxu0 %v203
  %1532 = vmatpush1.msra.mxu0 %v202
  %1533 = vmatprep.subr.mxu0 %v207
  %1534 = vmatpush1.msra.mxu0 %v206
  %1535 = vmatprep.subr.mxu0 %v211
  %1536 = vmatpush1.msra.mxu0 %v210
  %1537 = vmatprep.subr.mxu0 %v215
  %1538 = vmatpush1.msra.mxu0 %v214
  %1539 = vmatprep.subr.mxu0 %v219
  %1540 = vmatpush1.msra.mxu0 %v218
  %1541 = vmatprep.subr.mxu0 %v223
  %1542 = vmatpush1.msra.mxu0 %v222
  %1543 = vmatprep.subr.mxu0 %v227
  %1544 = vmatpush1.msra.mxu0 %v226
  %1545 = vmatprep.subr.mxu0 %v231
  %1546 = vmatpush1.msra.mxu0 %v230
  %1547 = vmatprep.subr.mxu0 %v235
  %1548 = vmatpush1.msra.mxu0 %v234
  %1549 = vmatprep.subr.mxu0 %v239
  %1550 = vmatpush1.msra.mxu0 %v238
  %1551 = vmatprep.subr.mxu0 %v243
  %1552 = vmatpush1.msra.mxu0 %v242
  %1553 = vmatprep.subr.mxu0 %v247
  %1554 = vmatpush1.msra.mxu0 %v246
  %1555 = vmatprep.subr.mxu0 %v251
  %1556 = vmatpush1.msra.mxu0 %v250
  %1557 = vmatprep.subr.mxu0 0.0
  %1558 = vmatpush1.msra.mxu0 0.0
  %1559 = vmatprep.subr.mxu0 0.0
  %1560 = vmatpush1.msra.mxu0 0.0
  %1561 = vmatprep.subr.mxu0 0.0
  %1562 = vmatpush1.msra.mxu0 0.0
  %1563 = vmatprep.subr.mxu0 0.0
  %1564 = vmatpush1.msra.mxu0 0.0
  %1565 = vmatprep.subr.mxu0 0.0
  %1566 = vmatpush1.msra.mxu0 0.0
  %1567 = vmatprep.subr.mxu0 0.0
  %1568 = vmatpush1.msra.mxu0 0.0
  %1569 = vmatprep.subr.mxu0 0.0
  %1570 = vmatpush1.msra.mxu0 0.0
  %1571 = vmatprep.subr.mxu0 0.0
  %1572 = vmatpush1.msra.mxu0 0.0
  %1573 = vmatprep.subr.mxu0 0.0
  %1574 = vmatpush1.msra.mxu0 0.0
  %1575 = vmatprep.subr.mxu0 0.0
  %1576 = vmatpush1.msra.mxu0 0.0
  %1577 = vmatprep.subr.mxu0 0.0
  %1578 = vmatpush1.msra.mxu0 0.0
  %1579 = vmatprep.subr.mxu0 0.0
  %1580 = vmatpush1.msra.mxu0 0.0
  %1581 = vmatprep.subr.mxu0 0.0
  %1582 = vmatpush1.msra.mxu0 0.0
  %1583 = vmatprep.subr.mxu0 0.0
  %1584 = vmatpush1.msra.mxu0 0.0
  %1585 = vmatprep.subr.mxu0 0.0
  %1586 = vmatpush1.msra.mxu0 0.0
  %1587 = vmatprep.subr.mxu0 0.0
  %1588 = vmatpush1.msra.mxu0 0.0
  %1589 = vmatprep.mubr.f32.mxu0 0.0
  %1590 = vmatmul.mubr.f32.gmra.mrb[0].mxu0 %v1524
  %v1591 = vpop.f32.mrb[0].mxu0
  %v1592 = vadd.f32 0.0, %v1591
  %v1593 = vpop.f32.mrb[0].mxu0
  %v1594 = vadd.f32 0.0, %v1593
  %1595 = vdwg.mxu0
  %1596 = vmatprep.subr.mxu0 %v193
  %1597 = vmatpush1.msra.mxu0 %v192
  %1598 = vmatprep.subr.mxu0 %v197
  %1599 = vmatpush1.msra.mxu0 %v196
  %1600 = vmatprep.subr.mxu0 %v201
  %1601 = vmatpush1.msra.mxu0 %v200
  %1602 = vmatprep.subr.mxu0 %v205
  %1603 = vmatpush1.msra.mxu0 %v204
  %1604 = vmatprep.subr.mxu0 %v209
  %1605 = vmatpush1.msra.mxu0 %v208
  %1606 = vmatprep.subr.mxu0 %v213
  %1607 = vmatpush1.msra.mxu0 %v212
  %1608 = vmatprep.subr.mxu0 %v217
  %1609 = vmatpush1.msra.mxu0 %v216
  %1610 = vmatprep.subr.mxu0 %v221
  %1611 = vmatpush1.msra.mxu0 %v220
  %1612 = vmatprep.subr.mxu0 %v225
  %1613 = vmatpush1.msra.mxu0 %v224
  %1614 = vmatprep.subr.mxu0 %v229
  %1615 = vmatpush1.msra.mxu0 %v228
  %1616 = vmatprep.subr.mxu0 %v233
  %1617 = vmatpush1.msra.mxu0 %v232
  %1618 = vmatprep.subr.mxu0 %v237
  %1619 = vmatpush1.msra.mxu0 %v236
  %1620 = vmatprep.subr.mxu0 %v241
  %1621 = vmatpush1.msra.mxu0 %v240
  %1622 = vmatprep.subr.mxu0 %v245
  %1623 = vmatpush1.msra.mxu0 %v244
  %1624 = vmatprep.subr.mxu0 %v249
  %1625 = vmatpush1.msra.mxu0 %v248
  %1626 = vmatprep.subr.mxu0 %v253
  %1627 = vmatpush1.msra.mxu0 %v252
  %1628 = vmatprep.subr.mxu0 0.0
  %1629 = vmatpush1.msra.mxu0 0.0
  %1630 = vmatprep.subr.mxu0 0.0
  %1631 = vmatpush1.msra.mxu0 0.0
  %1632 = vmatprep.subr.mxu0 0.0
  %1633 = vmatpush1.msra.mxu0 0.0
  %1634 = vmatprep.subr.mxu0 0.0
  %1635 = vmatpush1.msra.mxu0 0.0
  %1636 = vmatprep.subr.mxu0 0.0
  %1637 = vmatpush1.msra.mxu0 0.0
  %1638 = vmatprep.subr.mxu0 0.0
  %1639 = vmatpush1.msra.mxu0 0.0
  %1640 = vmatprep.subr.mxu0 0.0
  %1641 = vmatpush1.msra.mxu0 0.0
  %1642 = vmatprep.subr.mxu0 0.0
  %1643 = vmatpush1.msra.mxu0 0.0
  %1644 = vmatprep.subr.mxu0 0.0
  %1645 = vmatpush1.msra.mxu0 0.0
  %1646 = vmatprep.subr.mxu0 0.0
  %1647 = vmatpush1.msra.mxu0 0.0
  %1648 = vmatprep.subr.mxu0 0.0
  %1649 = vmatpush1.msra.mxu0 0.0
  %1650 = vmatprep.subr.mxu0 0.0
  %1651 = vmatpush1.msra.mxu0 0.0
  %1652 = vmatprep.subr.mxu0 0.0
  %1653 = vmatpush1.msra.mxu0 0.0
  %1654 = vmatprep.subr.mxu0 0.0
  %1655 = vmatpush1.msra.mxu0 0.0
  %1656 = vmatprep.subr.mxu0 0.0
  %1657 = vmatpush1.msra.mxu0 0.0
  %1658 = vmatprep.subr.mxu0 0.0
  %1659 = vmatpush1.msra.mxu0 0.0
  %1660 = vmatprep.mubr.f32.mxu0 0.0
  %1661 = vmatmul.mubr.f32.gmra.mrb[0].mxu0 %v1524
  %v1662 = vpop.f32.mrb[0].mxu0
  %v1663 = vadd.f32 0.0, %v1662
  %v1664 = vpop.f32.mrb[0].mxu0
  %v1665 = vadd.f32 0.0, %v1664
  %1666 = vdwg.mxu0
  %v1667 = vadd.f32 %v1520, %v1592
  %v1668 = vadd.f32 %v1521, %v1594
  %v1669 = vadd.f32 %v1522, %v1663
  %v1670 = vadd.f32 %v1523, %v1665
  %v1671 = vxor.u32 %v1667, 2147483648
  %v1672 = vmul.f32 %v1671, 1.442695
  %v1673 = vpow.pop %v1672
  %v1674 = vadd.f32 %v1673, 1.0
  %v1675 = vrcp.pop %v1674
  %v1676 = vmul.f32 1.0, %v1675
  %v1677 = vxor.u32 %v1668, 2147483648
  %v1678 = vmul.f32 %v1677, 1.442695
  %v1679 = vpow.pop %v1678
  %v1680 = vadd.f32 %v1679, 1.0
  %v1681 = vrcp.pop %v1680
  %v1682 = vmul.f32 1.0, %v1681
  %v1683 = vtanh.pop %v1669
  %v1684 = vxor.u32 %v1670, 2147483648
  %v1685 = vmul.f32 %v1684, 1.442695
  %v1686 = vpow.pop %v1685
  %v1687 = vadd.f32 %v1686, 1.0
  %v1688 = vrcp.pop %v1687
  %v1689 = vmul.f32 1.0, %v1688
  %v1690 = vld [vmem:[#allocation4] sm:$0xff]
  %v1691 = vmul.f32 %v1682, %v1690
  %v1692 = vmul.f32 %v1676, %v1683
  %v1693 = vadd.f32 %v1691, %v1692
  %v1694 = vtanh.pop %v1693
  %v1695 = vmul.f32 %v1689, %v1694
  %1696 = vst [vmem:[#allocation3] sm:$0xff] %v1695
  %1697 = vst [vmem:[#allocation4] sm:$0xff] %v1693
  %s1698 = scalar_lea.vmem %s2, 56
  %1699 = vst [vmem:[%s1698] sm:$0xff] %v1695
  // Predicated region
  $region45: #{encoder_forward.5} parent=0 // pred_check
    %p1700 = pneg %p12
  $region46: #{encoder_forward.5} parent=0 // pred_check_branch
    %1702 = sbr.rel (%p1700) target = $region48
  $region47: #{encoder_forward.5} parent=0 // pred_region
    %v1703 = vld [vmem:[#allocation3] sm:$0xff]
    %1704 = vst [vmem:[%s3] sm:$0xff] %v1703
    %v1705 = vld [vmem:[#allocation4] sm:$0xff]
    %1706 = vst [vmem:[%s4] sm:$0xff] %v1705
  $region48: #{encoder_forward.5} parent=0 // pred_fallthru
    _
  // Predicated region
  $region49: #{encoder_forward.5} parent=0 // pred_check
    _
  $region50: #{encoder_forward.5} parent=0 // pred_check_branch
    %1708 = sbr.rel (0) target = $region52
  $region51: #{encoder_forward.5} parent=0 // pred_region
    _
  $region52: #{encoder_forward.5} parent=0 // pred_fallthru
    _
  // Predicated region
  $region53: #{encoder_forward.5} parent=0 // pred_check
    _
  $region54: #{encoder_forward.5} parent=0 // pred_check_branch
    %1710 = sbr.rel (0) target = $region56
  $region55: #{encoder_forward.5} parent=0 // pred_region
    _
  $region56: #{encoder_forward.5} parent=0 // pred_fallthru
    _
  // Predicated region
  $region57: #{encoder_forward.5} parent=0 // pred_check
    _
  $region58: #{encoder_forward.5} parent=0 // pred_check_branch
    %1712 = sbr.rel (0) target = $region60
  $region59: #{encoder_forward.5} parent=0 // pred_region
    _
  $region60: #{encoder_forward.5} parent=0 // pred_fallthru
    _
  // Predicated region
  $region61: #{encoder_forward.5} parent=0 // pred_check
    _
  $region62: #{encoder_forward.5} parent=0 // pred_check_branch
    %1714 = sbr.rel (0) target = $region64
  $region63: #{encoder_forward.5} parent=0 // pred_region
    _
  $region64: #{encoder_forward.5} parent=0 // pred_fallthru
    _
  // Predicated region
  $region65: #{encoder_forward.5} parent=0 // pred_check
    _
  $region66: #{encoder_forward.5} parent=0 // pred_check_branch
    %1716 = sbr.rel (0) target = $region68
  $region67: #{encoder_forward.5} parent=0 // pred_region
    _
  $region68: #{encoder_forward.5} parent=0 // pred_fallthru
    _
  // Predicated region
  $region69: #{encoder_forward.5} parent=0 // pred_check
    _
  $region70: #{encoder_forward.5} parent=0 // pred_check_branch
    %1718 = sbr.rel (0) target = $region72
  $region71: #{encoder_forward.5} parent=0 // pred_region
    _
  $region72: #{encoder_forward.5} parent=0 // pred_fallthru
    _

// kernel: encoder_forward.7
$region0: #{encoder_forward.7}
  #allocation0 [shape = 'u32[]', space=smem, size = 0x4, offset = 0x4, fixed_abs, tag = 'smem constant byte address 0x4 - core index']
  #allocation1 [shape = 'u32[144,128]{1,0:T(1,128)}', space=vmem, size = 0x12000, scoped, tag = 'internal scratch']
  #allocation2 [shape = 'f32[128,512]{1,0:T(8,128)}', space=vmem, size = 0x40000, scoped, tag = 'scratch operand']
  #allocation3 [shape = 'f32[8,128]{1,0:T(8,128)}', space=vmem, size = 0x1000, scoped, tag = 'scratch operand']
  #allocation4 [shape = 'f32[8,128]{1,0:T(8,128)}', space=vmem, size = 0x1000, scoped, tag = 'scratch operand']
  #allocation8 [shape = 's32[]', space=sflag, size = 0x4, offset = 0, fixed_abs, tag = 'sflag constant byte address 0x0 - dummy sync flag']
  %s0 = inlined_call_operand.vmem [shape: f32[8,8,512], index: 0, kind: input, shape index: {}]
  %s1 = inlined_call_operand.vmem [shape: f32[128,512], index: 1, kind: input, shape index: {}]
  %s2 = inlined_call_operand.hbm [shape: f32[8,8,128], index: 2, kind: output, shape index: {0}]
  %s3 = inlined_call_operand.vmem [shape: f32[8,128], index: 3, kind: output, shape index: {1}]
  %s4 = inlined_call_operand.vmem [shape: f32[8,128], index: 4, kind: output, shape index: {2}]
  %5 = xla_tuple %s2, %s3, %s4
  %s6 = sld [smem:[#allocation0]]
  $region73: #{encoder_forward.7} parent=0
    _
  %s8 = ssub.s32 1, %s6
  %s9 = scalar_select 0, %s8, %s6
  $region1: #{encoder_forward.7} parent=0
    #allocation5 [shape = 'u8[32768]{0}', space=vmem, size = 0x8000, scoped, tag = 'output window, operand 0, single buffered']
    #allocation6 [shape = 's32[1]{0}', space=sflag, size = 0x4, scoped, tag = 'scoped memory for encoder_forward.7']
    %10 = vsyncpa [#allocation6], 0
    // Predicated region
    $region2: #{encoder_forward.7} parent=1 // pred_check
      _
    $region3: #{encoder_forward.7} parent=1 // pred_check_branch
      %12 = sbr.rel (0) target = $region5
    $region4: #{encoder_forward.7} parent=1 // pred_region
      _
    $region5: #{encoder_forward.7} parent=1 // pred_fallthru
      _
    %p13 = scmp.eq.s32.totalorder 0, 0
    // Predicated region
    $region6: #{encoder_forward.7} parent=1 // pred_check
      %p14 = pneg %p13
    $region7: #{encoder_forward.7} parent=1 // pred_check_branch
      %16 = sbr.rel (%p14) target = $region9
    $region8: #{encoder_forward.7} parent=1 // pred_region
      $region10: #{encoder_forward.7} parent=8
        #allocation7 [shape = 's32[1]{0}', space=sflag, size = 0x4, scoped, tag = 'scoped memory for encoder_forward.7']
        %p18 = scmp.lt.u32.totalorder 512, 8
        %p19 = pneg %p18
        // Predicated region
        $region11: #{encoder_forward.7} parent=10 // pred_check
          _
        $region12: #{encoder_forward.7} parent=10 // pred_check_branch
          %21 = sbr.rel (%p18) target = $region14
        $region13: #{encoder_forward.7} parent=10 // pred_region
          %s36 = sand.u32 512, 7
          %p37 = scmp.eq.s32.totalorder %s36, 0
          // Predicated region
          $region26: #{encoder_forward.7} parent=13 // pred_check
            %p38 = pneg %p37
          $region27: #{encoder_forward.7} parent=13 // pred_check_branch
            %40 = sbr.rel (%p38) target = $region29
          $region28: #{encoder_forward.7} parent=13 // pred_region
            loop: start=0, step=1, limit=1
            $region30: #{encoder_forward.7} parent=28 // loop_pre_header
              _
            $region31: #{encoder_forward.7} parent=28 // loop_header
              %s42 = sphi 0, %s46
              %p43 = scmp.ge.s32.totalorder %s42, 1
              %s47 = sphi %s1, %s1
              %s48 = sphi [#allocation2], [#allocation2]
            $region32: #{encoder_forward.7} parent=28 // loop_header_branch
              %45 = sbr.rel (%p43) target = $region36
            $region33: #{encoder_forward.7} parent=28 // loop_body
              %v49 = vld [vmem:[%s47] sm:$0xff]
              %50 = vst [vmem:[%s48] sm:$0xff] %v49
              %v51 = vld [vmem:[%s47 + $0x8] sm:$0xff]
              %52 = vst [vmem:[%s48 + $0x8] sm:$0xff] %v51
              %v53 = vld [vmem:[%s47 + $0x10] sm:$0xff]
              %54 = vst [vmem:[%s48 + $0x10] sm:$0xff] %v53
              %v55 = vld [vmem:[%s47 + $0x18] sm:$0xff]
              %56 = vst [vmem:[%s48 + $0x18] sm:$0xff] %v55
              %v57 = vld [vmem:[%s47 + $0x20] sm:$0xff]
              %58 = vst [vmem:[%s48 + $0x20] sm:$0xff] %v57
              %v59 = vld [vmem:[%s47 + $0x28] sm:$0xff]
              %60 = vst [vmem:[%s48 + $0x28] sm:$0xff] %v59
              %v61 = vld [vmem:[%s47 + $0x30] sm:$0xff]
              %62 = vst [vmem:[%s48 + $0x30] sm:$0xff] %v61
              %v63 = vld [vmem:[%s47 + $0x38] sm:$0xff]
              %64 = vst [vmem:[%s48 + $0x38] sm:$0xff] %v63
              %v65 = vld [vmem:[%s47 + $0x40] sm:$0xff]
              %66 = vst [vmem:[%s48 + $0x40] sm:$0xff] %v65
              %v67 = vld [vmem:[%s47 + $0x48] sm:$0xff]
              %68 = vst [vmem:[%s48 + $0x48] sm:$0xff] %v67
              %v69 = vld [vmem:[%s47 + $0x50] sm:$0xff]
              %70 = vst [vmem:[%s48 + $0x50] sm:$0xff] %v69
              %v71 = vld [vmem:[%s47 + $0x58] sm:$0xff]
              %72 = vst [vmem:[%s48 + $0x58] sm:$0xff] %v71
              %v73 = vld [vmem:[%s47 + $0x60] sm:$0xff]
              %74 = vst [vmem:[%s48 + $0x60] sm:$0xff] %v73
              %v75 = vld [vmem:[%s47 + $0x68] sm:$0xff]
              %76 = vst [vmem:[%s48 + $0x68] sm:$0xff] %v75
              %v77 = vld [vmem:[%s47 + $0x70] sm:$0xff]
              %78 = vst [vmem:[%s48 + $0x70] sm:$0xff] %v77
              %v79 = vld [vmem:[%s47 + $0x78] sm:$0xff]
              %80 = vst [vmem:[%s48 + $0x78] sm:$0xff] %v79
              %v81 = vld [vmem:[%s47 + $0x80] sm:$0xff]
              %82 = vst [vmem:[%s48 + $0x80] sm:$0xff] %v81
              %v83 = vld [vmem:[%s47 + $0x88] sm:$0xff]
              %84 = vst [vmem:[%s48 + $0x88] sm:$0xff] %v83
              %v85 = vld [vmem:[%s47 + $0x90] sm:$0xff]
              %86 = vst [vmem:[%s48 + $0x90] sm:$0xff] %v85
              %v87 = vld [vmem:[%s47 + $0x98] sm:$0xff]
              %88 = vst [vmem:[%s48 + $0x98] sm:$0xff] %v87
              %v89 = vld [vmem:[%s47 + $0xa0] sm:$0xff]
              %90 = vst [vmem:[%s48 + $0xa0] sm:$0xff] %v89
              %v91 = vld [vmem:[%s47 + $0xa8] sm:$0xff]
              %92 = vst [vmem:[%s48 + $0xa8] sm:$0xff] %v91
              %v93 = vld [vmem:[%s47 + $0xb0] sm:$0xff]
              %94 = vst [vmem:[%s48 + $0xb0] sm:$0xff] %v93
              %v95 = vld [vmem:[%s47 + $0xb8] sm:$0xff]
              %96 = vst [vmem:[%s48 + $0xb8] sm:$0xff] %v95
              %v97 = vld [vmem:[%s47 + $0xc0] sm:$0xff]
              %98 = vst [vmem:[%s48 + $0xc0] sm:$0xff] %v97
              %v99 = vld [vmem:[%s47 + $0xc8] sm:$0xff]
              %100 = vst [vmem:[%s48 + $0xc8] sm:$0xff] %v99
              %v101 = vld [vmem:[%s47 + $0xd0] sm:$0xff]
              %102 = vst [vmem:[%s48 + $0xd0] sm:$0xff] %v101
              %v103 = vld [vmem:[%s47 + $0xd8] sm:$0xff]
              %104 = vst [vmem:[%s48 + $0xd8] sm:$0xff] %v103
              %v105 = vld [vmem:[%s47 + $0xe0] sm:$0xff]
              %106 = vst [vmem:[%s48 + $0xe0] sm:$0xff] %v105
              %v107 = vld [vmem:[%s47 + $0xe8] sm:$0xff]
              %108 = vst [vmem:[%s48 + $0xe8] sm:$0xff] %v107
              %v109 = vld [vmem:[%s47 + $0xf0] sm:$0xff]
              %110 = vst [vmem:[%s48 + $0xf0] sm:$0xff] %v109
              %v111 = vld [vmem:[%s47 + $0xf8] sm:$0xff]
              %112 = vst [vmem:[%s48 + $0xf8] sm:$0xff] %v111
              %v113 = vld [vmem:[%s47 + $0x100] sm:$0xff]
              %114 = vst [vmem:[%s48 + $0x100] sm:$0xff] %v113
              %v115 = vld [vmem:[%s47 + $0x108] sm:$0xff]
              %116 = vst [vmem:[%s48 + $0x108] sm:$0xff] %v115
              %v117 = vld [vmem:[%s47 + $0x110] sm:$0xff]
              %118 = vst [vmem:[%s48 + $0x110] sm:$0xff] %v117
              %v119 = vld [vmem:[%s47 + $0x118] sm:$0xff]
              %120 = vst [vmem:[%s48 + $0x118] sm:$0xff] %v119
              %v121 = vld [vmem:[%s47 + $0x120] sm:$0xff]
              %122 = vst [vmem:[%s48 + $0x120] sm:$0xff] %v121
              %v123 = vld [vmem:[%s47 + $0x128] sm:$0xff]
              %124 = vst [vmem:[%s48 + $0x128] sm:$0xff] %v123
              %v125 = vld [vmem:[%s47 + $0x130] sm:$0xff]
              %126 = vst [vmem:[%s48 + $0x130] sm:$0xff] %v125
              %v127 = vld [vmem:[%s47 + $0x138] sm:$0xff]
              %128 = vst [vmem:[%s48 + $0x138] sm:$0xff] %v127
              %v129 = vld [vmem:[%s47 + $0x140] sm:$0xff]
              %130 = vst [vmem:[%s48 + $0x140] sm:$0xff] %v129
              %v131 = vld [vmem:[%s47 + $0x148] sm:$0xff]
              %132 = vst [vmem:[%s48 + $0x148] sm:$0xff] %v131
              %v133 = vld [vmem:[%s47 + $0x150] sm:$0xff]
              %134 = vst [vmem:[%s48 + $0x150] sm:$0xff] %v133
              %v135 = vld [vmem:[%s47 + $0x158] sm:$0xff]
              %136 = vst [vmem:[%s48 + $0x158] sm:$0xff] %v135
              %v137 = vld [vmem:[%s47 + $0x160] sm:$0xff]
              %138 = vst [vmem:[%s48 + $0x160] sm:$0xff] %v137
              %v139 = vld [vmem:[%s47 + $0x168] sm:$0xff]
              %140 = vst [vmem:[%s48 + $0x168] sm:$0xff] %v139
              %v141 = vld [vmem:[%s47 + $0x170] sm:$0xff]
              %142 = vst [vmem:[%s48 + $0x170] sm:$0xff] %v141
              %v143 = vld [vmem:[%s47 + $0x178] sm:$0xff]
              %144 = vst [vmem:[%s48 + $0x178] sm:$0xff] %v143
              %v145 = vld [vmem:[%s47 + $0x180] sm:$0xff]
              %146 = vst [vmem:[%s48 + $0x180] sm:$0xff] %v145
              %v147 = vld [vmem:[%s47 + $0x188] sm:$0xff]
              %148 = vst [vmem:[%s48 + $0x188] sm:$0xff] %v147
              %v149 = vld [vmem:[%s47 + $0x190] sm:$0xff]
              %150 = vst [vmem:[%s48 + $0x190] sm:$0xff] %v149
              %v151 = vld [vmem:[%s47 + $0x198] sm:$0xff]
              %152 = vst [vmem:[%s48 + $0x198] sm:$0xff] %v151
              %v153 = vld [vmem:[%s47 + $0x1a0] sm:$0xff]
              %154 = vst [vmem:[%s48 + $0x1a0] sm:$0xff] %v153
              %v155 = vld [vmem:[%s47 + $0x1a8] sm:$0xff]
              %156 = vst [vmem:[%s48 + $0x1a8] sm:$0xff] %v155
              %v157 = vld [vmem:[%s47 + $0x1b0] sm:$0xff]
              %158 = vst [vmem:[%s48 + $0x1b0] sm:$0xff] %v157
              %v159 = vld [vmem:[%s47 + $0x1b8] sm:$0xff]
              %160 = vst [vmem:[%s48 + $0x1b8] sm:$0xff] %v159
              %v161 = vld [vmem:[%s47 + $0x1c0] sm:$0xff]
              %162 = vst [vmem:[%s48 + $0x1c0] sm:$0xff] %v161
              %v163 = vld [vmem:[%s47 + $0x1c8] sm:$0xff]
              %164 = vst [vmem:[%s48 + $0x1c8] sm:$0xff] %v163
              %v165 = vld [vmem:[%s47 + $0x1d0] sm:$0xff]
              %166 = vst [vmem:[%s48 + $0x1d0] sm:$0xff] %v165
              %v167 = vld [vmem:[%s47 + $0x1d8] sm:$0xff]
              %168 = vst [vmem:[%s48 + $0x1d8] sm:$0xff] %v167
              %v169 = vld [vmem:[%s47 + $0x1e0] sm:$0xff]
              %170 = vst [vmem:[%s48 + $0x1e0] sm:$0xff] %v169
              %v171 = vld [vmem:[%s47 + $0x1e8] sm:$0xff]
              %172 = vst [vmem:[%s48 + $0x1e8] sm:$0xff] %v171
              %v173 = vld [vmem:[%s47 + $0x1f0] sm:$0xff]
              %174 = vst [vmem:[%s48 + $0x1f0] sm:$0xff] %v173
              %v175 = vld [vmem:[%s47 + $0x1f8] sm:$0xff]
              %176 = vst [vmem:[%s48 + $0x1f8] sm:$0xff] %v175
            $region34: #{encoder_forward.7} parent=28 // loop_footer
              %s46 = sadd.s32 1, %s42
            $region35: #{encoder_forward.7} parent=28 // loop_footer_branch
              %41 = sbr.rel target = $region31
            $region36: #{encoder_forward.7} parent=28 // loop_exit
              _
          $region29: #{encoder_forward.7} parent=13 // pred_fallthru
            _
          %p177 = pneg %p37
          // Predicated region
          $region37: #{encoder_forward.7} parent=13 // pred_check
            _
          $region38: #{encoder_forward.7} parent=13 // pred_check_branch
            %179 = sbr.rel (%p37) target = $region40
          $region39: #{encoder_forward.7} parent=13 // pred_region
            %s180 = sand.u32 512, 7
          $region40: #{encoder_forward.7} parent=13 // pred_fallthru
            _
        $region14: #{encoder_forward.7} parent=10 // pred_fallthru
          _
        // Predicated region
        $region15: #{encoder_forward.7} parent=10 // pred_check
          %p22 = pneg %p18
        $region16: #{encoder_forward.7} parent=10 // pred_check_branch
          %24 = sbr.rel (%p22) target = $region18
        $region17: #{encoder_forward.7} parent=10 // pred_region
          %s25 = sshllo.u32 0, 512
          loop: start=0, step=1, limit=1
          $region19: #{encoder_forward.7} parent=17 // loop_pre_header
            _
          $region20: #{encoder_forward.7} parent=17 // loop_header
            %s27 = sphi 0, %s31
            %p28 = scmp.ge.s32.totalorder %s27, 1
            %s32 = sphi %s1, %s1
            %s33 = sphi [#allocation2], [#allocation2]
          $region21: #{encoder_forward.7} parent=17 // loop_header_branch
            %30 = sbr.rel (%p28) target = $region25
          $region22: #{encoder_forward.7} parent=17 // loop_body
            %v34 = vld [vmem:[%s32] sm:%s25]
            %35 = vst [vmem:[%s33] sm:%s25] %v34
          $region23: #{encoder_forward.7} parent=17 // loop_footer
            %s31 = sadd.s32 1, %s27
          $region24: #{encoder_forward.7} parent=17 // loop_footer_branch
            %26 = sbr.rel target = $region20
          $region25: #{encoder_forward.7} parent=17 // loop_exit
            _
        $region18: #{encoder_forward.7} parent=10 // pred_fallthru
          _
        // Predicated region
        $region41: #{encoder_forward.7} parent=10 // pred_check
          _
        $region42: #{encoder_forward.7} parent=10 // pred_check_branch
          %183 = sbr.rel (0) target = $region44
        $region43: #{encoder_forward.7} parent=10 // pred_region
          %184 = vsyncadd [#allocation7], 8192
        $region44: #{encoder_forward.7} parent=10 // pred_fallthru
          _
        %s185 = smul.u32 8, 16
        %s186 = smul.u32 %s185, 4
        %s187 = sshll.u32 %s186, 4
        %188 = dma.done [#allocation7], %s187
      %189 = vst [vmem:[#allocation3] sm:$0xff] 0.0
      %190 = vst [vmem:[#allocation4] sm:$0xff] 0.0
    $region9: #{encoder_forward.7} parent=1 // pred_fallthru
      _
    %v191 = vld [vmem:[#allocation2] sm:$0xff]
    %v192 = vld [vmem:[#allocation2 + $0x8] sm:$0xff]
    %v193 = vld [vmem:[#allocation2 + $0x10] sm:$0xff]
    %v194 = vld [vmem:[#allocation2 + $0x18] sm:$0xff]
    %v195 = vld [vmem:[#allocation2 + $0x20] sm:$0xff]
    %v196 = vld [vmem:[#allocation2 + $0x28] sm:$0xff]
    %v197 = vld [vmem:[#allocation2 + $0x30] sm:$0xff]
    %v198 = vld [vmem:[#allocation2 + $0x38] sm:$0xff]
    %v199 = vld [vmem:[#allocation2 + $0x40] sm:$0xff]
    %v200 = vld [vmem:[#allocation2 + $0x48] sm:$0xff]
    %v201 = vld [vmem:[#allocation2 + $0x50] sm:$0xff]
    %v202 = vld [vmem:[#allocation2 + $0x58] sm:$0xff]
    %v203 = vld [vmem:[#allocation2 + $0x60] sm:$0xff]
    %v204 = vld [vmem:[#allocation2 + $0x68] sm:$0xff]
    %v205 = vld [vmem:[#allocation2 + $0x70] sm:$0xff]
    %v206 = vld [vmem:[#allocation2 + $0x78] sm:$0xff]
    %v207 = vld [vmem:[#allocation2 + $0x80] sm:$0xff]
    %v208 = vld [vmem:[#allocation2 + $0x88] sm:$0xff]
    %v209 = vld [vmem:[#allocation2 + $0x90] sm:$0xff]
    %v210 = vld [vmem:[#allocation2 + $0x98] sm:$0xff]
    %v211 = vld [vmem:[#allocation2 + $0xa0] sm:$0xff]
    %v212 = vld [vmem:[#allocation2 + $0xa8] sm:$0xff]
    %v213 = vld [vmem:[#allocation2 + $0xb0] sm:$0xff]
    %v214 = vld [vmem:[#allocation2 + $0xb8] sm:$0xff]
    %v215 = vld [vmem:[#allocation2 + $0xc0] sm:$0xff]
    %v216 = vld [vmem:[#allocation2 + $0xc8] sm:$0xff]
    %v217 = vld [vmem:[#allocation2 + $0xd0] sm:$0xff]
    %v218 = vld [vmem:[#allocation2 + $0xd8] sm:$0xff]
    %v219 = vld [vmem:[#allocation2 + $0xe0] sm:$0xff]
    %v220 = vld [vmem:[#allocation2 + $0xe8] sm:$0xff]
    %v221 = vld [vmem:[#allocation2 + $0xf0] sm:$0xff]
    %v222 = vld [vmem:[#allocation2 + $0xf8] sm:$0xff]
    %v223 = vld [vmem:[#allocation2 + $0x100] sm:$0xff]
    %v224 = vld [vmem:[#allocation2 + $0x108] sm:$0xff]
    %v225 = vld [vmem:[#allocation2 + $0x110] sm:$0xff]
    %v226 = vld [vmem:[#allocation2 + $0x118] sm:$0xff]
    %v227 = vld [vmem:[#allocation2 + $0x120] sm:$0xff]
    %v228 = vld [vmem:[#allocation2 + $0x128] sm:$0xff]
    %v229 = vld [vmem:[#allocation2 + $0x130] sm:$0xff]
    %v230 = vld [vmem:[#allocation2 + $0x138] sm:$0xff]
    %v231 = vld [vmem:[#allocation2 + $0x140] sm:$0xff]
    %v232 = vld [vmem:[#allocation2 + $0x148] sm:$0xff]
    %v233 = vld [vmem:[#allocation2 + $0x150] sm:$0xff]
    %v234 = vld [vmem:[#allocation2 + $0x158] sm:$0xff]
    %v235 = vld [vmem:[#allocation2 + $0x160] sm:$0xff]
    %v236 = vld [vmem:[#allocation2 + $0x168] sm:$0xff]
    %v237 = vld [vmem:[#allocation2 + $0x170] sm:$0xff]
    %v238 = vld [vmem:[#allocation2 + $0x178] sm:$0xff]
    %v239 = vld [vmem:[#allocation2 + $0x180] sm:$0xff]
    %v240 = vld [vmem:[#allocation2 + $0x188] sm:$0xff]
    %v241 = vld [vmem:[#allocation2 + $0x190] sm:$0xff]
    %v242 = vld [vmem:[#allocation2 + $0x198] sm:$0xff]
    %v243 = vld [vmem:[#allocation2 + $0x1a0] sm:$0xff]
    %v244 = vld [vmem:[#allocation2 + $0x1a8] sm:$0xff]
    %v245 = vld [vmem:[#allocation2 + $0x1b0] sm:$0xff]
    %v246 = vld [vmem:[#allocation2 + $0x1b8] sm:$0xff]
    %v247 = vld [vmem:[#allocation2 + $0x1c0] sm:$0xff]
    %v248 = vld [vmem:[#allocation2 + $0x1c8] sm:$0xff]
    %v249 = vld [vmem:[#allocation2 + $0x1d0] sm:$0xff]
    %v250 = vld [vmem:[#allocation2 + $0x1d8] sm:$0xff]
    %v251 = vld [vmem:[#allocation2 + $0x1e0] sm:$0xff]
    %v252 = vld [vmem:[#allocation2 + $0x1e8] sm:$0xff]
    %v253 = vld [vmem:[#allocation2 + $0x1f0] sm:$0xff]
    %v254 = vld [vmem:[#allocation2 + $0x1f8] sm:$0xff]
    %v255 = vld [vmem:[%s0] sm:$0xff]
    %v256 = vld [vmem:[%s0 + $0x8] sm:$0xff]
    %v257 = vld [vmem:[%s0 + $0x10] sm:$0xff]
    %v258 = vld [vmem:[%s0 + $0x18] sm:$0xff]
    %v259 = vld [vmem:[#allocation3] sm:$0xff]
    %260 = vmatprep.subr.mxu0 %v192
    %261 = vmatpush1.msra.mxu0 %v191
    %262 = vmatprep.subr.mxu0 %v196
    %263 = vmatpush1.msra.mxu0 %v195
    %264 = vmatprep.subr.mxu0 %v200
    %265 = vmatpush1.msra.mxu0 %v199
    %266 = vmatprep.subr.mxu0 %v204
    %267 = vmatpush1.msra.mxu0 %v203
    %268 = vmatprep.subr.mxu0 %v208
    %269 = vmatpush1.msra.mxu0 %v207
    %270 = vmatprep.subr.mxu0 %v212
    %271 = vmatpush1.msra.mxu0 %v211
    %272 = vmatprep.subr.mxu0 %v216
    %273 = vmatpush1.msra.mxu0 %v215
    %274 = vmatprep.subr.mxu0 %v220
    %275 = vmatpush1.msra.mxu0 %v219
    %276 = vmatprep.subr.mxu0 %v224
    %277 = vmatpush1.msra.mxu0 %v223
    %278 = vmatprep.subr.mxu0 %v228
    %279 = vmatpush1.msra.mxu0 %v227
    %280 = vmatprep.subr.mxu0 %v232
    %281 = vmatpush1.msra.mxu0 %v231
    %282 = vmatprep.subr.mxu0 %v236
    %283 = vmatpush1.msra.mxu0 %v235
    %284 = vmatprep.subr.mxu0 %v240
    %285 = vmatpush1.msra.mxu0 %v239
    %286 = vmatprep.subr.mxu0 %v244
    %287 = vmatpush1.msra.mxu0 %v243
    %288 = vmatprep.subr.mxu0 %v248
    %289 = vmatpush1.msra.mxu0 %v247
    %290 = vmatprep.subr.mxu0 %v252
    %291 = vmatpush1.msra.mxu0 %v251
    %292 = vmatprep.subr.mxu0 0.0
    %293 = vmatpush1.msra.mxu0 0.0
    %294 = vmatprep.subr.mxu0 0.0
    %295 = vmatpush1.msra.mxu0 0.0
    %296 = vmatprep.subr.mxu0 0.0
    %297 = vmatpush1.msra.mxu0 0.0
    %298 = vmatprep.subr.mxu0 0.0
    %299 = vmatpush1.msra.mxu0 0.0
    %300 = vmatprep.subr.mxu0 0.0
    %301 = vmatpush1.msra.mxu0 0.0
    %302 = vmatprep.subr.mxu0 0.0
    %303 = vmatpush1.msra.mxu0 0.0
    %304 = vmatprep.subr.mxu0 0.0
    %305 = vmatpush1.msra.mxu0 0.0
    %306 = vmatprep.subr.mxu0 0.0
    %307 = vmatpush1.msra.mxu0 0.0
    %308 = vmatprep.subr.mxu0 0.0
    %309 = vmatpush1.msra.mxu0 0.0
    %310 = vmatprep.subr.mxu0 0.0
    %311 = vmatpush1.msra.mxu0 0.0
    %312 = vmatprep.subr.mxu0 0.0
    %313 = vmatpush1.msra.mxu0 0.0
    %314 = vmatprep.subr.mxu0 0.0
    %315 = vmatpush1.msra.mxu0 0.0
    %316 = vmatprep.subr.mxu0 0.0
    %317 = vmatpush1.msra.mxu0 0.0
    %318 = vmatprep.subr.mxu0 0.0
    %319 = vmatpush1.msra.mxu0 0.0
    %320 = vmatprep.subr.mxu0 0.0
    %321 = vmatpush1.msra.mxu0 0.0
    %322 = vmatprep.subr.mxu0 0.0
    %323 = vmatpush1.msra.mxu0 0.0
    %324 = vmatprep.mubr.f32.mxu0 0.0
    %325 = vmatmul.mubr.f32.gmra.mrb[0].mxu0 %v259
    %v326 = vpop.f32.mrb[0].mxu0
    %v327 = vadd.f32 0.0, %v326
    %v328 = vpop.f32.mrb[0].mxu0
    %v329 = vadd.f32 0.0, %v328
    %330 = vdwg.mxu0
    %331 = vmatprep.subr.mxu0 %v194
    %332 = vmatpush1.msra.mxu0 %v193
    %333 = vmatprep.subr.mxu0 %v198
    %334 = vmatpush1.msra.mxu0 %v197
    %335 = vmatprep.subr.mxu0 %v202
    %336 = vmatpush1.msra.mxu0 %v201
    %337 = vmatprep.subr.mxu0 %v206
    %338 = vmatpush1.msra.mxu0 %v205
    %339 = vmatprep.subr.mxu0 %v210
    %340 = vmatpush1.msra.mxu0 %v209
    %341 = vmatprep.subr.mxu0 %v214
    %342 = vmatpush1.msra.mxu0 %v213
    %343 = vmatprep.subr.mxu0 %v218
    %344 = vmatpush1.msra.mxu0 %v217
    %345 = vmatprep.subr.mxu0 %v222
    %346 = vmatpush1.msra.mxu0 %v221
    %347 = vmatprep.subr.mxu0 %v226
    %348 = vmatpush1.msra.mxu0 %v225
    %349 = vmatprep.subr.mxu0 %v230
    %350 = vmatpush1.msra.mxu0 %v229
    %351 = vmatprep.subr.mxu0 %v234
    %352 = vmatpush1.msra.mxu0 %v233
    %353 = vmatprep.subr.mxu0 %v238
    %354 = vmatpush1.msra.mxu0 %v237
    %355 = vmatprep.subr.mxu0 %v242
    %356 = vmatpush1.msra.mxu0 %v241
    %357 = vmatprep.subr.mxu0 %v246
    %358 = vmatpush1.msra.mxu0 %v245
    %359 = vmatprep.subr.mxu0 %v250
    %360 = vmatpush1.msra.mxu0 %v249
    %361 = vmatprep.subr.mxu0 %v254
    %362 = vmatpush1.msra.mxu0 %v253
    %363 = vmatprep.subr.mxu0 0.0
    %364 = vmatpush1.msra.mxu0 0.0
    %365 = vmatprep.subr.mxu0 0.0
    %366 = vmatpush1.msra.mxu0 0.0
    %367 = vmatprep.subr.mxu0 0.0
    %368 = vmatpush1.msra.mxu0 0.0
    %369 = vmatprep.subr.mxu0 0.0
    %370 = vmatpush1.msra.mxu0 0.0
    %371 = vmatprep.subr.mxu0 0.0
    %372 = vmatpush1.msra.mxu0 0.0
    %373 = vmatprep.subr.mxu0 0.0
    %374 = vmatpush1.msra.mxu0 0.0
    %375 = vmatprep.subr.mxu0 0.0
    %376 = vmatpush1.msra.mxu0 0.0
    %377 = vmatprep.subr.mxu0 0.0
    %378 = vmatpush1.msra.mxu0 0.0
    %379 = vmatprep.subr.mxu0 0.0
    %380 = vmatpush1.msra.mxu0 0.0
    %381 = vmatprep.subr.mxu0 0.0
    %382 = vmatpush1.msra.mxu0 0.0
    %383 = vmatprep.subr.mxu0 0.0
    %384 = vmatpush1.msra.mxu0 0.0
    %385 = vmatprep.subr.mxu0 0.0
    %386 = vmatpush1.msra.mxu0 0.0
    %387 = vmatprep.subr.mxu0 0.0
    %388 = vmatpush1.msra.mxu0 0.0
    %389 = vmatprep.subr.mxu0 0.0
    %390 = vmatpush1.msra.mxu0 0.0
    %391 = vmatprep.subr.mxu0 0.0
    %392 = vmatpush1.msra.mxu0 0.0
    %393 = vmatprep.subr.mxu0 0.0
    %394 = vmatpush1.msra.mxu0 0.0
    %395 = vmatprep.mubr.f32.mxu0 0.0
    %396 = vmatmul.mubr.f32.gmra.mrb[0].mxu0 %v259
    %v397 = vpop.f32.mrb[0].mxu0
    %v398 = vadd.f32 0.0, %v397
    %v399 = vpop.f32.mrb[0].mxu0
    %v400 = vadd.f32 0.0, %v399
    %401 = vdwg.mxu0
    %v402 = vadd.f32 %v255, %v327
    %v403 = vadd.f32 %v256, %v329
    %v404 = vadd.f32 %v257, %v398
    %v405 = vadd.f32 %v258, %v400
    %v406 = vxor.u32 %v402, 2147483648
    %v407 = vmul.f32 %v406, 1.442695
    %v408 = vpow.pop %v407
    %v409 = vadd.f32 %v408, 1.0
    %v410 = vrcp.pop %v409
    %v411 = vmul.f32 1.0, %v410
    %v412 = vxor.u32 %v403, 2147483648
    %v413 = vmul.f32 %v412, 1.442695
    %v414 = vpow.pop %v413
    %v415 = vadd.f32 %v414, 1.0
    %v416 = vrcp.pop %v415
    %v417 = vmul.f32 1.0, %v416
    %v418 = vtanh.pop %v404
    %v419 = vxor.u32 %v405, 2147483648
    %v420 = vmul.f32 %v419, 1.442695
    %v421 = vpow.pop %v420
    %v422 = vadd.f32 %v421, 1.0
    %v423 = vrcp.pop %v422
    %v424 = vmul.f32 1.0, %v423
    %v425 = vld [vmem:[#allocation4] sm:$0xff]
    %v426 = vmul.f32 %v417, %v425
    %v427 = vmul.f32 %v411, %v418
    %v428 = vadd.f32 %v426, %v427
    %v429 = vtanh.pop %v428
    %v430 = vmul.f32 %v424, %v429
    %431 = vst [vmem:[#allocation3] sm:$0xff] %v430
    %432 = vst [vmem:[#allocation4] sm:$0xff] %v428
    %433 = vst [vmem:[#allocation5] sm:$0xff] %v430
    %s434 = scalar_lea.vmem %s0, 32
    %v435 = vld [vmem:[%s434] sm:$0xff]
    %v436 = vld [vmem:[%s434 + $0x8] sm:$0xff]
    %v437 = vld [vmem:[%s434 + $0x10] sm:$0xff]
    %v438 = vld [vmem:[%s434 + $0x18] sm:$0xff]
    %v439 = vld [vmem:[#allocation3] sm:$0xff]
    %440 = vmatprep.subr.mxu0 %v192
    %441 = vmatpush1.msra.mxu0 %v191
    %442 = vmatprep.subr.mxu0 %v196
    %443 = vmatpush1.msra.mxu0 %v195
    %444 = vmatprep.subr.mxu0 %v200
    %445 = vmatpush1.msra.mxu0 %v199
    %446 = vmatprep.subr.mxu0 %v204
    %447 = vmatpush1.msra.mxu0 %v203
    %448 = vmatprep.subr.mxu0 %v208
    %449 = vmatpush1.msra.mxu0 %v207
    %450 = vmatprep.subr.mxu0 %v212
    %451 = vmatpush1.msra.mxu0 %v211
    %452 = vmatprep.subr.mxu0 %v216
    %453 = vmatpush1.msra.mxu0 %v215
    %454 = vmatprep.subr.mxu0 %v220
    %455 = vmatpush1.msra.mxu0 %v219
    %456 = vmatprep.subr.mxu0 %v224
    %457 = vmatpush1.msra.mxu0 %v223
    %458 = vmatprep.subr.mxu0 %v228
    %459 = vmatpush1.msra.mxu0 %v227
    %460 = vmatprep.subr.mxu0 %v232
    %461 = vmatpush1.msra.mxu0 %v231
    %462 = vmatprep.subr.mxu0 %v236
    %463 = vmatpush1.msra.mxu0 %v235
    %464 = vmatprep.subr.mxu0 %v240
    %465 = vmatpush1.msra.mxu0 %v239
    %466 = vmatprep.subr.mxu0 %v244
    %467 = vmatpush1.msra.mxu0 %v243
    %468 = vmatprep.subr.mxu0 %v248
    %469 = vmatpush1.msra.mxu0 %v247
    %470 = vmatprep.subr.mxu0 %v252
    %471 = vmatpush1.msra.mxu0 %v251
    %472 = vmatprep.subr.mxu0 0.0
    %473 = vmatpush1.msra.mxu0 0.0
    %474 = vmatprep.subr.mxu0 0.0
    %475 = vmatpush1.msra.mxu0 0.0
    %476 = vmatprep.subr.mxu0 0.0
    %477 = vmatpush1.msra.mxu0 0.0
    %478 = vmatprep.subr.mxu0 0.0
    %479 = vmatpush1.msra.mxu0 0.0
    %480 = vmatprep.subr.mxu0 0.0
    %481 = vmatpush1.msra.mxu0 0.0
    %482 = vmatprep.subr.mxu0 0.0
    %483 = vmatpush1.msra.mxu0 0.0
    %484 = vmatprep.subr.mxu0 0.0
    %485 = vmatpush1.msra.mxu0 0.0
    %486 = vmatprep.subr.mxu0 0.0
    %487 = vmatpush1.msra.mxu0 0.0
    %488 = vmatprep.subr.mxu0 0.0
    %489 = vmatpush1.msra.mxu0 0.0
    %490 = vmatprep.subr.mxu0 0.0
    %491 = vmatpush1.msra.mxu0 0.0
    %492 = vmatprep.subr.mxu0 0.0
    %493 = vmatpush1.msra.mxu0 0.0
    %494 = vmatprep.subr.mxu0 0.0
    %495 = vmatpush1.msra.mxu0 0.0
    %496 = vmatprep.subr.mxu0 0.0
    %497 = vmatpush1.msra.mxu0 0.0
    %498 = vmatprep.subr.mxu0 0.0
    %499 = vmatpush1.msra.mxu0 0.0
    %500 = vmatprep.subr.mxu0 0.0
    %501 = vmatpush1.msra.mxu0 0.0
    %502 = vmatprep.subr.mxu0 0.0
    %503 = vmatpush1.msra.mxu0 0.0
    %504 = vmatprep.mubr.f32.mxu0 0.0
    %505 = vmatmul.mubr.f32.gmra.mrb[0].mxu0 %v439
    %v506 = vpop.f32.mrb[0].mxu0
    %v507 = vadd.f32 0.0, %v506
    %v508 = vpop.f32.mrb[0].mxu0
    %v509 = vadd.f32 0.0, %v508
    %510 = vdwg.mxu0
    %511 = vmatprep.subr.mxu0 %v194
    %512 = vmatpush1.msra.mxu0 %v193
    %513 = vmatprep.subr.mxu0 %v198
    %514 = vmatpush1.msra.mxu0 %v197
    %515 = vmatprep.subr.mxu0 %v202
    %516 = vmatpush1.msra.mxu0 %v201
    %517 = vmatprep.subr.mxu0 %v206
    %518 = vmatpush1.msra.mxu0 %v205
    %519 = vmatprep.subr.mxu0 %v210
    %520 = vmatpush1.msra.mxu0 %v209
    %521 = vmatprep.subr.mxu0 %v214
    %522 = vmatpush1.msra.mxu0 %v213
    %523 = vmatprep.subr.mxu0 %v218
    %524 = vmatpush1.msra.mxu0 %v217
    %525 = vmatprep.subr.mxu0 %v222
    %526 = vmatpush1.msra.mxu0 %v221
    %527 = vmatprep.subr.mxu0 %v226
    %528 = vmatpush1.msra.mxu0 %v225
    %529 = vmatprep.subr.mxu0 %v230
    %530 = vmatpush1.msra.mxu0 %v229
    %531 = vmatprep.subr.mxu0 %v234
    %532 = vmatpush1.msra.mxu0 %v233
    %533 = vmatprep.subr.mxu0 %v238
    %534 = vmatpush1.msra.mxu0 %v237
    %535 = vmatprep.subr.mxu0 %v242
    %536 = vmatpush1.msra.mxu0 %v241
    %537 = vmatprep.subr.mxu0 %v246
    %538 = vmatpush1.msra.mxu0 %v245
    %539 = vmatprep.subr.mxu0 %v250
    %540 = vmatpush1.msra.mxu0 %v249
    %541 = vmatprep.subr.mxu0 %v254
    %542 = vmatpush1.msra.mxu0 %v253
    %543 = vmatprep.subr.mxu0 0.0
    %544 = vmatpush1.msra.mxu0 0.0
    %545 = vmatprep.subr.mxu0 0.0
    %546 = vmatpush1.msra.mxu0 0.0
    %547 = vmatprep.subr.mxu0 0.0
    %548 = vmatpush1.msra.mxu0 0.0
    %549 = vmatprep.subr.mxu0 0.0
    %550 = vmatpush1.msra.mxu0 0.0
    %551 = vmatprep.subr.mxu0 0.0
    %552 = vmatpush1.msra.mxu0 0.0
    %553 = vmatprep.subr.mxu0 0.0
    %554 = vmatpush1.msra.mxu0 0.0
    %555 = vmatprep.subr.mxu0 0.0
    %556 = vmatpush1.msra.mxu0 0.0
    %557 = vmatprep.subr.mxu0 0.0
    %558 = vmatpush1.msra.mxu0 0.0
    %559 = vmatprep.subr.mxu0 0.0
    %560 = vmatpush1.msra.mxu0 0.0
    %561 = vmatprep.subr.mxu0 0.0
    %562 = vmatpush1.msra.mxu0 0.0
    %563 = vmatprep.subr.mxu0 0.0
    %564 = vmatpush1.msra.mxu0 0.0
    %565 = vmatprep.subr.mxu0 0.0
    %566 = vmatpush1.msra.mxu0 0.0
    %567 = vmatprep.subr.mxu0 0.0
    %568 = vmatpush1.msra.mxu0 0.0
    %569 = vmatprep.subr.mxu0 0.0
    %570 = vmatpush1.msra.mxu0 0.0
    %571 = vmatprep.subr.mxu0 0.0
    %572 = vmatpush1.msra.mxu0 0.0
    %573 = vmatprep.subr.mxu0 0.0
    %574 = vmatpush1.msra.mxu0 0.0
    %575 = vmatprep.mubr.f32.mxu0 0.0
    %576 = vmatmul.mubr.f32.gmra.mrb[0].mxu0 %v439
    %v577 = vpop.f32.mrb[0].mxu0
    %v578 = vadd.f32 0.0, %v577
    %v579 = vpop.f32.mrb[0].mxu0
    %v580 = vadd.f32 0.0, %v579
    %581 = vdwg.mxu0
    %v582 = vadd.f32 %v435, %v507
    %v583 = vadd.f32 %v436, %v509
    %v584 = vadd.f32 %v437, %v578
    %v585 = vadd.f32 %v438, %v580
    %v586 = vxor.u32 %v582, 2147483648
    %v587 = vmul.f32 %v586, 1.442695
    %v588 = vpow.pop %v587
    %v589 = vadd.f32 %v588, 1.0
    %v590 = vrcp.pop %v589
    %v591 = vmul.f32 1.0, %v590
    %v592 = vxor.u32 %v583, 2147483648
    %v593 = vmul.f32 %v592, 1.442695
    %v594 = vpow.pop %v593
    %v595 = vadd.f32 %v594, 1.0
    %v596 = vrcp.pop %v595
    %v597 = vmul.f32 1.0, %v596
    %v598 = vtanh.pop %v584
    %v599 = vxor.u32 %v585, 2147483648
    %v600 = vmul.f32 %v599, 1.442695
    %v601 = vpow.pop %v600
    %v602 = vadd.f32 %v601, 1.0
    %v603 = vrcp.pop %v602
    %v604 = vmul.f32 1.0, %v603
    %v605 = vld [vmem:[#allocation4] sm:$0xff]
    %v606 = vmul.f32 %v597, %v605
    %v607 = vmul.f32 %v591, %v598
    %v608 = vadd.f32 %v606, %v607
    %v609 = vtanh.pop %v608
    %v610 = vmul.f32 %v604, %v609
    %611 = vst [vmem:[#allocation3] sm:$0xff] %v610
    %612 = vst [vmem:[#allocation4] sm:$0xff] %v608
    %s613 = scalar_lea.vmem [#allocation5], 8
    %614 = vst [vmem:[%s613] sm:$0xff] %v610
    %s615 = scalar_lea.vmem %s0, 64
    %v616 = vld [vmem:[%s615] sm:$0xff]
    %v617 = vld [vmem:[%s615 + $0x8] sm:$0xff]
    %v618 = vld [vmem:[%s615 + $0x10] sm:$0xff]
    %v619 = vld [vmem:[%s615 + $0x18] sm:$0xff]
    %v620 = vld [vmem:[#allocation3] sm:$0xff]
    %621 = vmatprep.subr.mxu0 %v192
    %622 = vmatpush1.msra.mxu0 %v191
    %623 = vmatprep.subr.mxu0 %v196
    %624 = vmatpush1.msra.mxu0 %v195
    %625 = vmatprep.subr.mxu0 %v200
    %626 = vmatpush1.msra.mxu0 %v199
    %627 = vmatprep.subr.mxu0 %v204
    %628 = vmatpush1.msra.mxu0 %v203
    %629 = vmatprep.subr.mxu0 %v208
    %630 = vmatpush1.msra.mxu0 %v207
    %631 = vmatprep.subr.mxu0 %v212
    %632 = vmatpush1.msra.mxu0 %v211
    %633 = vmatprep.subr.mxu0 %v216
    %634 = vmatpush1.msra.mxu0 %v215
    %635 = vmatprep.subr.mxu0 %v220
    %636 = vmatpush1.msra.mxu0 %v219
    %637 = vmatprep.subr.mxu0 %v224
    %638 = vmatpush1.msra.mxu0 %v223
    %639 = vmatprep.subr.mxu0 %v228
    %640 = vmatpush1.msra.mxu0 %v227
    %641 = vmatprep.subr.mxu0 %v232
    %642 = vmatpush1.msra.mxu0 %v231
    %643 = vmatprep.subr.mxu0 %v236
    %644 = vmatpush1.msra.mxu0 %v235
    %645 = vmatprep.subr.mxu0 %v240
    %646 = vmatpush1.msra.mxu0 %v239
    %647 = vmatprep.subr.mxu0 %v244
    %648 = vmatpush1.msra.mxu0 %v243
    %649 = vmatprep.subr.mxu0 %v248
    %650 = vmatpush1.msra.mxu0 %v247
    %651 = vmatprep.subr.mxu0 %v252
    %652 = vmatpush1.msra.mxu0 %v251
    %653 = vmatprep.subr.mxu0 0.0
    %654 = vmatpush1.msra.mxu0 0.0
    %655 = vmatprep.subr.mxu0 0.0
    %656 = vmatpush1.msra.mxu0 0.0
    %657 = vmatprep.subr.mxu0 0.0
    %658 = vmatpush1.msra.mxu0 0.0
    %659 = vmatprep.subr.mxu0 0.0
    %660 = vmatpush1.msra.mxu0 0.0
    %661 = vmatprep.subr.mxu0 0.0
    %662 = vmatpush1.msra.mxu0 0.0
    %663 = vmatprep.subr.mxu0 0.0
    %664 = vmatpush1.msra.mxu0 0.0
    %665 = vmatprep.subr.mxu0 0.0
    %666 = vmatpush1.msra.mxu0 0.0
    %667 = vmatprep.subr.mxu0 0.0
    %668 = vmatpush1.msra.mxu0 0.0
    %669 = vmatprep.subr.mxu0 0.0
    %670 = vmatpush1.msra.mxu0 0.0
    %671 = vmatprep.subr.mxu0 0.0
    %672 = vmatpush1.msra.mxu0 0.0
    %673 = vmatprep.subr.mxu0 0.0
    %674 = vmatpush1.msra.mxu0 0.0
    %675 = vmatprep.subr.mxu0 0.0
    %676 = vmatpush1.msra.mxu0 0.0
    %677 = vmatprep.subr.mxu0 0.0
    %678 = vmatpush1.msra.mxu0 0.0
    %679 = vmatprep.subr.mxu0 0.0
    %680 = vmatpush1.msra.mxu0 0.0
    %681 = vmatprep.subr.mxu0 0.0
    %682 = vmatpush1.msra.mxu0 0.0
    %683 = vmatprep.subr.mxu0 0.0
    %684 = vmatpush1.msra.mxu0 0.0
    %685 = vmatprep.mubr.f32.mxu0 0.0
    %686 = vmatmul.mubr.f32.gmra.mrb[0].mxu0 %v620
    %v687 = vpop.f32.mrb[0].mxu0
    %v688 = vadd.f32 0.0, %v687
    %v689 = vpop.f32.mrb[0].mxu0
    %v690 = vadd.f32 0.0, %v689
    %691 = vdwg.mxu0
    %692 = vmatprep.subr.mxu0 %v194
    %693 = vmatpush1.msra.mxu0 %v193
    %694 = vmatprep.subr.mxu0 %v198
    %695 = vmatpush1.msra.mxu0 %v197
    %696 = vmatprep.subr.mxu0 %v202
    %697 = vmatpush1.msra.mxu0 %v201
    %698 = vmatprep.subr.mxu0 %v206
    %699 = vmatpush1.msra.mxu0 %v205
    %700 = vmatprep.subr.mxu0 %v210
    %701 = vmatpush1.msra.mxu0 %v209
    %702 = vmatprep.subr.mxu0 %v214
    %703 = vmatpush1.msra.mxu0 %v213
    %704 = vmatprep.subr.mxu0 %v218
    %705 = vmatpush1.msra.mxu0 %v217
    %706 = vmatprep.subr.mxu0 %v222
    %707 = vmatpush1.msra.mxu0 %v221
    %708 = vmatprep.subr.mxu0 %v226
    %709 = vmatpush1.msra.mxu0 %v225
    %710 = vmatprep.subr.mxu0 %v230
    %711 = vmatpush1.msra.mxu0 %v229
    %712 = vmatprep.subr.mxu0 %v234
    %713 = vmatpush1.msra.mxu0 %v233
    %714 = vmatprep.subr.mxu0 %v238
    %715 = vmatpush1.msra.mxu0 %v237
    %716 = vmatprep.subr.mxu0 %v242
    %717 = vmatpush1.msra.mxu0 %v241
    %718 = vmatprep.subr.mxu0 %v246
    %719 = vmatpush1.msra.mxu0 %v245
    %720 = vmatprep.subr.mxu0 %v250
    %721 = vmatpush1.msra.mxu0 %v249
    %722 = vmatprep.subr.mxu0 %v254
    %723 = vmatpush1.msra.mxu0 %v253
    %724 = vmatprep.subr.mxu0 0.0
    %725 = vmatpush1.msra.mxu0 0.0
    %726 = vmatprep.subr.mxu0 0.0
    %727 = vmatpush1.msra.mxu0 0.0
    %728 = vmatprep.subr.mxu0 0.0
    %729 = vmatpush1.msra.mxu0 0.0
    %730 = vmatprep.subr.mxu0 0.0
    %731 = vmatpush1.msra.mxu0 0.0
    %732 = vmatprep.subr.mxu0 0.0
    %733 = vmatpush1.msra.mxu0 0.0
    %734 = vmatprep.subr.mxu0 0.0
    %735 = vmatpush1.msra.mxu0 0.0
    %736 = vmatprep.subr.mxu0 0.0
    %737 = vmatpush1.msra.mxu0 0.0
    %738 = vmatprep.subr.mxu0 0.0
    %739 = vmatpush1.msra.mxu0 0.0
    %740 = vmatprep.subr.mxu0 0.0
    %741 = vmatpush1.msra.mxu0 0.0
    %742 = vmatprep.subr.mxu0 0.0
    %743 = vmatpush1.msra.mxu0 0.0
    %744 = vmatprep.subr.mxu0 0.0
    %745 = vmatpush1.msra.mxu0 0.0
    %746 = vmatprep.subr.mxu0 0.0
    %747 = vmatpush1.msra.mxu0 0.0
    %748 = vmatprep.subr.mxu0 0.0
    %749 = vmatpush1.msra.mxu0 0.0
    %750 = vmatprep.subr.mxu0 0.0
    %751 = vmatpush1.msra.mxu0 0.0
    %752 = vmatprep.subr.mxu0 0.0
    %753 = vmatpush1.msra.mxu0 0.0
    %754 = vmatprep.subr.mxu0 0.0
    %755 = vmatpush1.msra.mxu0 0.0
    %756 = vmatprep.mubr.f32.mxu0 0.0
    %757 = vmatmul.mubr.f32.gmra.mrb[0].mxu0 %v620
    %v758 = vpop.f32.mrb[0].mxu0
    %v759 = vadd.f32 0.0, %v758
    %v760 = vpop.f32.mrb[0].mxu0
    %v761 = vadd.f32 0.0, %v760
    %762 = vdwg.mxu0
    %v763 = vadd.f32 %v616, %v688
    %v764 = vadd.f32 %v617, %v690
    %v765 = vadd.f32 %v618, %v759
    %v766 = vadd.f32 %v619, %v761
    %v767 = vxor.u32 %v763, 2147483648
    %v768 = vmul.f32 %v767, 1.442695
    %v769 = vpow.pop %v768
    %v770 = vadd.f32 %v769, 1.0
    %v771 = vrcp.pop %v770
    %v772 = vmul.f32 1.0, %v771
    %v773 = vxor.u32 %v764, 2147483648
    %v774 = vmul.f32 %v773, 1.442695
    %v775 = vpow.pop %v774
    %v776 = vadd.f32 %v775, 1.0
    %v777 = vrcp.pop %v776
    %v778 = vmul.f32 1.0, %v777
    %v779 = vtanh.pop %v765
    %v780 = vxor.u32 %v766, 2147483648
    %v781 = vmul.f32 %v780, 1.442695
    %v782 = vpow.pop %v781
    %v783 = vadd.f32 %v782, 1.0
    %v784 = vrcp.pop %v783
    %v785 = vmul.f32 1.0, %v784
    %v786 = vld [vmem:[#allocation4] sm:$0xff]
    %v787 = vmul.f32 %v778, %v786
    %v788 = vmul.f32 %v772, %v779
    %v789 = vadd.f32 %v787, %v788
    %v790 = vtanh.pop %v789
    %v791 = vmul.f32 %v785, %v790
    %792 = vst [vmem:[#allocation3] sm:$0xff] %v791
    %793 = vst [vmem:[#allocation4] sm:$0xff] %v789
    %s794 = scalar_lea.vmem [#allocation5], 16
    %795 = vst [vmem:[%s794] sm:$0xff] %v791
    %s796 = scalar_lea.vmem %s0, 96
    %v797 = vld [vmem:[%s796] sm:$0xff]
    %v798 = vld [vmem:[%s796 + $0x8] sm:$0xff]
    %v799 = vld [vmem:[%s796 + $0x10] sm:$0xff]
    %v800 = vld [vmem:[%s796 + $0x18] sm:$0xff]
    %v801 = vld [vmem:[#allocation3] sm:$0xff]
    %802 = vmatprep.subr.mxu0 %v192
    %803 = vmatpush1.msra.mxu0 %v191
    %804 = vmatprep.subr.mxu0 %v196
    %805 = vmatpush1.msra.mxu0 %v195
    %806 = vmatprep.subr.mxu0 %v200
    %807 = vmatpush1.msra.mxu0 %v199
    %808 = vmatprep.subr.mxu0 %v204
    %809 = vmatpush1.msra.mxu0 %v203
    %810 = vmatprep.subr.mxu0 %v208
    %811 = vmatpush1.msra.mxu0 %v207
    %812 = vmatprep.subr.mxu0 %v212
    %813 = vmatpush1.msra.mxu0 %v211
    %814 = vmatprep.subr.mxu0 %v216
    %815 = vmatpush1.msra.mxu0 %v215
    %816 = vmatprep.subr.mxu0 %v220
    %817 = vmatpush1.msra.mxu0 %v219
    %818 = vmatprep.subr.mxu0 %v224
    %819 = vmatpush1.msra.mxu0 %v223
    %820 = vmatprep.subr.mxu0 %v228
    %821 = vmatpush1.msra.mxu0 %v227
    %822 = vmatprep.subr.mxu0 %v232
    %823 = vmatpush1.msra.mxu0 %v231
    %824 = vmatprep.subr.mxu0 %v236
    %825 = vmatpush1.msra.mxu0 %v235
    %826 = vmatprep.subr.mxu0 %v240
    %827 = vmatpush1.msra.mxu0 %v239
    %828 = vmatprep.subr.mxu0 %v244
    %829 = vmatpush1.msra.mxu0 %v243
    %830 = vmatprep.subr.mxu0 %v248
    %831 = vmatpush1.msra.mxu0 %v247
    %832 = vmatprep.subr.mxu0 %v252
    %833 = vmatpush1.msra.mxu0 %v251
    %834 = vmatprep.subr.mxu0 0.0
    %835 = vmatpush1.msra.mxu0 0.0
    %836 = vmatprep.subr.mxu0 0.0
    %837 = vmatpush1.msra.mxu0 0.0
    %838 = vmatprep.subr.mxu0 0.0
    %839 = vmatpush1.msra.mxu0 0.0
    %840 = vmatprep.subr.mxu0 0.0
    %841 = vmatpush1.msra.mxu0 0.0
    %842 = vmatprep.subr.mxu0 0.0
    %843 = vmatpush1.msra.mxu0 0.0
    %844 = vmatprep.subr.mxu0 0.0
    %845 = vmatpush1.msra.mxu0 0.0
    %846 = vmatprep.subr.mxu0 0.0
    %847 = vmatpush1.msra.mxu0 0.0
    %848 = vmatprep.subr.mxu0 0.0
    %849 = vmatpush1.msra.mxu0 0.0
    %850 = vmatprep.subr.mxu0 0.0
    %851 = vmatpush1.msra.mxu0 0.0
    %852 = vmatprep.subr.mxu0 0.0
    %853 = vmatpush1.msra.mxu0 0.0
    %854 = vmatprep.subr.mxu0 0.0
    %855 = vmatpush1.msra.mxu0 0.0
    %856 = vmatprep.subr.mxu0 0.0
    %857 = vmatpush1.msra.mxu0 0.0
    %858 = vmatprep.subr.mxu0 0.0
    %859 = vmatpush1.msra.mxu0 0.0
    %860 = vmatprep.subr.mxu0 0.0
    %861 = vmatpush1.msra.mxu0 0.0
    %862 = vmatprep.subr.mxu0 0.0
    %863 = vmatpush1.msra.mxu0 0.0
    %864 = vmatprep.subr.mxu0 0.0
    %865 = vmatpush1.msra.mxu0 0.0
    %866 = vmatprep.mubr.f32.mxu0 0.0
    %867 = vmatmul.mubr.f32.gmra.mrb[0].mxu0 %v801
    %v868 = vpop.f32.mrb[0].mxu0
    %v869 = vadd.f32 0.0, %v868
    %v870 = vpop.f32.mrb[0].mxu0
    %v871 = vadd.f32 0.0, %v870
    %872 = vdwg.mxu0
    %873 = vmatprep.subr.mxu0 %v194
    %874 = vmatpush1.msra.mxu0 %v193
    %875 = vmatprep.subr.mxu0 %v198
    %876 = vmatpush1.msra.mxu0 %v197
    %877 = vmatprep.subr.mxu0 %v202
    %878 = vmatpush1.msra.mxu0 %v201
    %879 = vmatprep.subr.mxu0 %v206
    %880 = vmatpush1.msra.mxu0 %v205
    %881 = vmatprep.subr.mxu0 %v210
    %882 = vmatpush1.msra.mxu0 %v209
    %883 = vmatprep.subr.mxu0 %v214
    %884 = vmatpush1.msra.mxu0 %v213
    %885 = vmatprep.subr.mxu0 %v218
    %886 = vmatpush1.msra.mxu0 %v217
    %887 = vmatprep.subr.mxu0 %v222
    %888 = vmatpush1.msra.mxu0 %v221
    %889 = vmatprep.subr.mxu0 %v226
    %890 = vmatpush1.msra.mxu0 %v225
    %891 = vmatprep.subr.mxu0 %v230
    %892 = vmatpush1.msra.mxu0 %v229
    %893 = vmatprep.subr.mxu0 %v234
    %894 = vmatpush1.msra.mxu0 %v233
    %895 = vmatprep.subr.mxu0 %v238
    %896 = vmatpush1.msra.mxu0 %v237
    %897 = vmatprep.subr.mxu0 %v242
    %898 = vmatpush1.msra.mxu0 %v241
    %899 = vmatprep.subr.mxu0 %v246
    %900 = vmatpush1.msra.mxu0 %v245
    %901 = vmatprep.subr.mxu0 %v250
    %902 = vmatpush1.msra.mxu0 %v249
    %903 = vmatprep.subr.mxu0 %v254
    %904 = vmatpush1.msra.mxu0 %v253
    %905 = vmatprep.subr.mxu0 0.0
    %906 = vmatpush1.msra.mxu0 0.0
    %907 = vmatprep.subr.mxu0 0.0
    %908 = vmatpush1.msra.mxu0 0.0
    %909 = vmatprep.subr.mxu0 0.0
    %910 = vmatpush1.msra.mxu0 0.0
    %911 = vmatprep.subr.mxu0 0.0
    %912 = vmatpush1.msra.mxu0 0.0
    %913 = vmatprep.subr.mxu0 0.0
    %914 = vmatpush1.msra.mxu0 0.0
    %915 = vmatprep.subr.mxu0 0.0
    %916 = vmatpush1.msra.mxu0 0.0
    %917 = vmatprep.subr.mxu0 0.0
    %918 = vmatpush1.msra.mxu0 0.0
    %919 = vmatprep.subr.mxu0 0.0
    %920 = vmatpush1.msra.mxu0 0.0
    %921 = vmatprep.subr.mxu0 0.0
    %922 = vmatpush1.msra.mxu0 0.0
    %923 = vmatprep.subr.mxu0 0.0
    %924 = vmatpush1.msra.mxu0 0.0
    %925 = vmatprep.subr.mxu0 0.0
    %926 = vmatpush1.msra.mxu0 0.0
    %927 = vmatprep.subr.mxu0 0.0
    %928 = vmatpush1.msra.mxu0 0.0
    %929 = vmatprep.subr.mxu0 0.0
    %930 = vmatpush1.msra.mxu0 0.0
    %931 = vmatprep.subr.mxu0 0.0
    %932 = vmatpush1.msra.mxu0 0.0
    %933 = vmatprep.subr.mxu0 0.0
    %934 = vmatpush1.msra.mxu0 0.0
    %935 = vmatprep.subr.mxu0 0.0
    %936 = vmatpush1.msra.mxu0 0.0
    %937 = vmatprep.mubr.f32.mxu0 0.0
    %938 = vmatmul.mubr.f32.gmra.mrb[0].mxu0 %v801
    %v939 = vpop.f32.mrb[0].mxu0
    %v940 = vadd.f32 0.0, %v939
    %v941 = vpop.f32.mrb[0].mxu0
    %v942 = vadd.f32 0.0, %v941
    %943 = vdwg.mxu0
    %v944 = vadd.f32 %v797, %v869
    %v945 = vadd.f32 %v798, %v871
    %v946 = vadd.f32 %v799, %v940
    %v947 = vadd.f32 %v800, %v942
    %v948 = vxor.u32 %v944, 2147483648
    %v949 = vmul.f32 %v948, 1.442695
    %v950 = vpow.pop %v949
    %v951 = vadd.f32 %v950, 1.0
    %v952 = vrcp.pop %v951
    %v953 = vmul.f32 1.0, %v952
    %v954 = vxor.u32 %v945, 2147483648
    %v955 = vmul.f32 %v954, 1.442695
    %v956 = vpow.pop %v955
    %v957 = vadd.f32 %v956, 1.0
    %v958 = vrcp.pop %v957
    %v959 = vmul.f32 1.0, %v958
    %v960 = vtanh.pop %v946
    %v961 = vxor.u32 %v947, 2147483648
    %v962 = vmul.f32 %v961, 1.442695
    %v963 = vpow.pop %v962
    %v964 = vadd.f32 %v963, 1.0
    %v965 = vrcp.pop %v964
    %v966 = vmul.f32 1.0, %v965
    %v967 = vld [vmem:[#allocation4] sm:$0xff]
    %v968 = vmul.f32 %v959, %v967
    %v969 = vmul.f32 %v953, %v960
    %v970 = vadd.f32 %v968, %v969
    %v971 = vtanh.pop %v970
    %v972 = vmul.f32 %v966, %v971
    %973 = vst [vmem:[#allocation3] sm:$0xff] %v972
    %974 = vst [vmem:[#allocation4] sm:$0xff] %v970
    %s975 = scalar_lea.vmem [#allocation5], 24
    %976 = vst [vmem:[%s975] sm:$0xff] %v972
    %s977 = scalar_lea.vmem %s0, 128
    %v978 = vld [vmem:[%s977] sm:$0xff]
    %v979 = vld [vmem:[%s977 + $0x8] sm:$0xff]
    %v980 = vld [vmem:[%s977 + $0x10] sm:$0xff]
    %v981 = vld [vmem:[%s977 + $0x18] sm:$0xff]
    %v982 = vld [vmem:[#allocation3] sm:$0xff]
    %983 = vmatprep.subr.mxu0 %v192
    %984 = vmatpush1.msra.mxu0 %v191
    %985 = vmatprep.subr.mxu0 %v196
    %986 = vmatpush1.msra.mxu0 %v195
    %987 = vmatprep.subr.mxu0 %v200
    %988 = vmatpush1.msra.mxu0 %v199
    %989 = vmatprep.subr.mxu0 %v204
    %990 = vmatpush1.msra.mxu0 %v203
    %991 = vmatprep.subr.mxu0 %v208
    %992 = vmatpush1.msra.mxu0 %v207
    %993 = vmatprep.subr.mxu0 %v212
    %994 = vmatpush1.msra.mxu0 %v211
    %995 = vmatprep.subr.mxu0 %v216
    %996 = vmatpush1.msra.mxu0 %v215
    %997 = vmatprep.subr.mxu0 %v220
    %998 = vmatpush1.msra.mxu0 %v219
    %999 = vmatprep.subr.mxu0 %v224
    %1000 = vmatpush1.msra.mxu0 %v223
    %1001 = vmatprep.subr.mxu0 %v228
    %1002 = vmatpush1.msra.mxu0 %v227
    %1003 = vmatprep.subr.mxu0 %v232
    %1004 = vmatpush1.msra.mxu0 %v231
    %1005 = vmatprep.subr.mxu0 %v236
    %1006 = vmatpush1.msra.mxu0 %v235
    %1007 = vmatprep.subr.mxu0 %v240
    %1008 = vmatpush1.msra.mxu0 %v239
    %1009 = vmatprep.subr.mxu0 %v244
    %1010 = vmatpush1.msra.mxu0 %v243
    %1011 = vmatprep.subr.mxu0 %v248
    %1012 = vmatpush1.msra.mxu0 %v247
    %1013 = vmatprep.subr.mxu0 %v252
    %1014 = vmatpush1.msra.mxu0 %v251
    %1015 = vmatprep.subr.mxu0 0.0
    %1016 = vmatpush1.msra.mxu0 0.0
    %1017 = vmatprep.subr.mxu0 0.0
    %1018 = vmatpush1.msra.mxu0 0.0
    %1019 = vmatprep.subr.mxu0 0.0
    %1020 = vmatpush1.msra.mxu0 0.0
    %1021 = vmatprep.subr.mxu0 0.0
    %1022 = vmatpush1.msra.mxu0 0.0
    %1023 = vmatprep.subr.mxu0 0.0
    %1024 = vmatpush1.msra.mxu0 0.0
    %1025 = vmatprep.subr.mxu0 0.0
    %1026 = vmatpush1.msra.mxu0 0.0
    %1027 = vmatprep.subr.mxu0 0.0
    %1028 = vmatpush1.msra.mxu0 0.0
    %1029 = vmatprep.subr.mxu0 0.0
    %1030 = vmatpush1.msra.mxu0 0.0
    %1031 = vmatprep.subr.mxu0 0.0
    %1032 = vmatpush1.msra.mxu0 0.0
    %1033 = vmatprep.subr.mxu0 0.0
    %1034 = vmatpush1.msra.mxu0 0.0
    %1035 = vmatprep.subr.mxu0 0.0
    %1036 = vmatpush1.msra.mxu0 0.0
    %1037 = vmatprep.subr.mxu0 0.0
    %1038 = vmatpush1.msra.mxu0 0.0
    %1039 = vmatprep.subr.mxu0 0.0
    %1040 = vmatpush1.msra.mxu0 0.0
    %1041 = vmatprep.subr.mxu0 0.0
    %1042 = vmatpush1.msra.mxu0 0.0
    %1043 = vmatprep.subr.mxu0 0.0
    %1044 = vmatpush1.msra.mxu0 0.0
    %1045 = vmatprep.subr.mxu0 0.0
    %1046 = vmatpush1.msra.mxu0 0.0
    %1047 = vmatprep.mubr.f32.mxu0 0.0
    %1048 = vmatmul.mubr.f32.gmra.mrb[0].mxu0 %v982
    %v1049 = vpop.f32.mrb[0].mxu0
    %v1050 = vadd.f32 0.0, %v1049
    %v1051 = vpop.f32.mrb[0].mxu0
    %v1052 = vadd.f32 0.0, %v1051
    %1053 = vdwg.mxu0
    %1054 = vmatprep.subr.mxu0 %v194
    %1055 = vmatpush1.msra.mxu0 %v193
    %1056 = vmatprep.subr.mxu0 %v198
    %1057 = vmatpush1.msra.mxu0 %v197
    %1058 = vmatprep.subr.mxu0 %v202
    %1059 = vmatpush1.msra.mxu0 %v201
    %1060 = vmatprep.subr.mxu0 %v206
    %1061 = vmatpush1.msra.mxu0 %v205
    %1062 = vmatprep.subr.mxu0 %v210
    %1063 = vmatpush1.msra.mxu0 %v209
    %1064 = vmatprep.subr.mxu0 %v214
    %1065 = vmatpush1.msra.mxu0 %v213
    %1066 = vmatprep.subr.mxu0 %v218
    %1067 = vmatpush1.msra.mxu0 %v217
    %1068 = vmatprep.subr.mxu0 %v222
    %1069 = vmatpush1.msra.mxu0 %v221
    %1070 = vmatprep.subr.mxu0 %v226
    %1071 = vmatpush1.msra.mxu0 %v225
    %1072 = vmatprep.subr.mxu0 %v230
    %1073 = vmatpush1.msra.mxu0 %v229
    %1074 = vmatprep.subr.mxu0 %v234
    %1075 = vmatpush1.msra.mxu0 %v233
    %1076 = vmatprep.subr.mxu0 %v238
    %1077 = vmatpush1.msra.mxu0 %v237
    %1078 = vmatprep.subr.mxu0 %v242
    %1079 = vmatpush1.msra.mxu0 %v241
    %1080 = vmatprep.subr.mxu0 %v246
    %1081 = vmatpush1.msra.mxu0 %v245
    %1082 = vmatprep.subr.mxu0 %v250
    %1083 = vmatpush1.msra.mxu0 %v249
    %1084 = vmatprep.subr.mxu0 %v254
    %1085 = vmatpush1.msra.mxu0 %v253
    %1086 = vmatprep.subr.mxu0 0.0
    %1087 = vmatpush1.msra.mxu0 0.0
    %1088 = vmatprep.subr.mxu0 0.0
    %1089 = vmatpush1.msra.mxu0 0.0
    %1090 = vmatprep.subr.mxu0 0.0
    %1091 = vmatpush1.msra.mxu0 0.0
    %1092 = vmatprep.subr.mxu0 0.0
    %1093 = vmatpush1.msra.mxu0 0.0
    %1094 = vmatprep.subr.mxu0 0.0
    %1095 = vmatpush1.msra.mxu0 0.0
    %1096 = vmatprep.subr.mxu0 0.0
    %1097 = vmatpush1.msra.mxu0 0.0
    %1098 = vmatprep.subr.mxu0 0.0
    %1099 = vmatpush1.msra.mxu0 0.0
    %1100 = vmatprep.subr.mxu0 0.0
    %1101 = vmatpush1.msra.mxu0 0.0
    %1102 = vmatprep.subr.mxu0 0.0
    %1103 = vmatpush1.msra.mxu0 0.0
    %1104 = vmatprep.subr.mxu0 0.0
    %1105 = vmatpush1.msra.mxu0 0.0
    %1106 = vmatprep.subr.mxu0 0.0
    %1107 = vmatpush1.msra.mxu0 0.0
    %1108 = vmatprep.subr.mxu0 0.0
    %1109 = vmatpush1.msra.mxu0 0.0
    %1110 = vmatprep.subr.mxu0 0.0
    %1111 = vmatpush1.msra.mxu0 0.0
    %1112 = vmatprep.subr.mxu0 0.0
    %1113 = vmatpush1.msra.mxu0 0.0
    %1114 = vmatprep.subr.mxu0 0.0
    %1115 = vmatpush1.msra.mxu0 0.0
    %1116 = vmatprep.subr.mxu0 0.0
    %1117 = vmatpush1.msra.mxu0 0.0
    %1118 = vmatprep.mubr.f32.mxu0 0.0
    %1119 = vmatmul.mubr.f32.gmra.mrb[0].mxu0 %v982
    %v1120 = vpop.f32.mrb[0].mxu0
    %v1121 = vadd.f32 0.0, %v1120
    %v1122 = vpop.f32.mrb[0].mxu0
    %v1123 = vadd.f32 0.0, %v1122
    %1124 = vdwg.mxu0
    %v1125 = vadd.f32 %v978, %v1050
    %v1126 = vadd.f32 %v979, %v1052
    %v1127 = vadd.f32 %v980, %v1121
    %v1128 = vadd.f32 %v981, %v1123
    %v1129 = vxor.u32 %v1125, 2147483648
    %v1130 = vmul.f32 %v1129, 1.442695
    %v1131 = vpow.pop %v1130
    %v1132 = vadd.f32 %v1131, 1.0
    %v1133 = vrcp.pop %v1132
    %v1134 = vmul.f32 1.0, %v1133
    %v1135 = vxor.u32 %v1126, 2147483648
    %v1136 = vmul.f32 %v1135, 1.442695
    %v1137 = vpow.pop %v1136
    %v1138 = vadd.f32 %v1137, 1.0
    %v1139 = vrcp.pop %v1138
    %v1140 = vmul.f32 1.0, %v1139
    %v1141 = vtanh.pop %v1127
    %v1142 = vxor.u32 %v1128, 2147483648
    %v1143 = vmul.f32 %v1142, 1.442695
    %v1144 = vpow.pop %v1143
    %v1145 = vadd.f32 %v1144, 1.0
    %v1146 = vrcp.pop %v1145
    %v1147 = vmul.f32 1.0, %v1146
    %v1148 = vld [vmem:[#allocation4] sm:$0xff]
    %v1149 = vmul.f32 %v1140, %v1148
    %v1150 = vmul.f32 %v1134, %v1141
    %v1151 = vadd.f32 %v1149, %v1150
    %v1152 = vtanh.pop %v1151
    %v1153 = vmul.f32 %v1147, %v1152
    %1154 = vst [vmem:[#allocation3] sm:$0xff] %v1153
    %1155 = vst [vmem:[#allocation4] sm:$0xff] %v1151
    %s1156 = scalar_lea.vmem [#allocation5], 32
    %1157 = vst [vmem:[%s1156] sm:$0xff] %v1153
    %s1158 = scalar_lea.vmem %s0, 160
    %v1159 = vld [vmem:[%s1158] sm:$0xff]
    %v1160 = vld [vmem:[%s1158 + $0x8] sm:$0xff]
    %v1161 = vld [vmem:[%s1158 + $0x10] sm:$0xff]
    %v1162 = vld [vmem:[%s1158 + $0x18] sm:$0xff]
    %v1163 = vld [vmem:[#allocation3] sm:$0xff]
    %1164 = vmatprep.subr.mxu0 %v192
    %1165 = vmatpush1.msra.mxu0 %v191
    %1166 = vmatprep.subr.mxu0 %v196
    %1167 = vmatpush1.msra.mxu0 %v195
    %1168 = vmatprep.subr.mxu0 %v200
    %1169 = vmatpush1.msra.mxu0 %v199
    %1170 = vmatprep.subr.mxu0 %v204
    %1171 = vmatpush1.msra.mxu0 %v203
    %1172 = vmatprep.subr.mxu0 %v208
    %1173 = vmatpush1.msra.mxu0 %v207
    %1174 = vmatprep.subr.mxu0 %v212
    %1175 = vmatpush1.msra.mxu0 %v211
    %1176 = vmatprep.subr.mxu0 %v216
    %1177 = vmatpush1.msra.mxu0 %v215
    %1178 = vmatprep.subr.mxu0 %v220
    %1179 = vmatpush1.msra.mxu0 %v219
    %1180 = vmatprep.subr.mxu0 %v224
    %1181 = vmatpush1.msra.mxu0 %v223
    %1182 = vmatprep.subr.mxu0 %v228
    %1183 = vmatpush1.msra.mxu0 %v227
    %1184 = vmatprep.subr.mxu0 %v232
    %1185 = vmatpush1.msra.mxu0 %v231
    %1186 = vmatprep.subr.mxu0 %v236
    %1187 = vmatpush1.msra.mxu0 %v235
    %1188 = vmatprep.subr.mxu0 %v240
    %1189 = vmatpush1.msra.mxu0 %v239
    %1190 = vmatprep.subr.mxu0 %v244
    %1191 = vmatpush1.msra.mxu0 %v243
    %1192 = vmatprep.subr.mxu0 %v248
    %1193 = vmatpush1.msra.mxu0 %v247
    %1194 = vmatprep.subr.mxu0 %v252
    %1195 = vmatpush1.msra.mxu0 %v251
    %1196 = vmatprep.subr.mxu0 0.0
    %1197 = vmatpush1.msra.mxu0 0.0
    %1198 = vmatprep.subr.mxu0 0.0
    %1199 = vmatpush1.msra.mxu0 0.0
    %1200 = vmatprep.subr.mxu0 0.0
    %1201 = vmatpush1.msra.mxu0 0.0
    %1202 = vmatprep.subr.mxu0 0.0
    %1203 = vmatpush1.msra.mxu0 0.0
    %1204 = vmatprep.subr.mxu0 0.0
    %1205 = vmatpush1.msra.mxu0 0.0
    %1206 = vmatprep.subr.mxu0 0.0
    %1207 = vmatpush1.msra.mxu0 0.0
    %1208 = vmatprep.subr.mxu0 0.0
    %1209 = vmatpush1.msra.mxu0 0.0
    %1210 = vmatprep.subr.mxu0 0.0
    %1211 = vmatpush1.msra.mxu0 0.0
    %1212 = vmatprep.subr.mxu0 0.0
    %1213 = vmatpush1.msra.mxu0 0.0
    %1214 = vmatprep.subr.mxu0 0.0
    %1215 = vmatpush1.msra.mxu0 0.0
    %1216 = vmatprep.subr.mxu0 0.0
    %1217 = vmatpush1.msra.mxu0 0.0
    %1218 = vmatprep.subr.mxu0 0.0
    %1219 = vmatpush1.msra.mxu0 0.0
    %1220 = vmatprep.subr.mxu0 0.0
    %1221 = vmatpush1.msra.mxu0 0.0
    %1222 = vmatprep.subr.mxu0 0.0
    %1223 = vmatpush1.msra.mxu0 0.0
    %1224 = vmatprep.subr.mxu0 0.0
    %1225 = vmatpush1.msra.mxu0 0.0
    %1226 = vmatprep.subr.mxu0 0.0
    %1227 = vmatpush1.msra.mxu0 0.0
    %1228 = vmatprep.mubr.f32.mxu0 0.0
    %1229 = vmatmul.mubr.f32.gmra.mrb[0].mxu0 %v1163
    %v1230 = vpop.f32.mrb[0].mxu0
    %v1231 = vadd.f32 0.0, %v1230
    %v1232 = vpop.f32.mrb[0].mxu0
    %v1233 = vadd.f32 0.0, %v1232
    %1234 = vdwg.mxu0
    %1235 = vmatprep.subr.mxu0 %v194
    %1236 = vmatpush1.msra.mxu0 %v193
    %1237 = vmatprep.subr.mxu0 %v198
    %1238 = vmatpush1.msra.mxu0 %v197
    %1239 = vmatprep.subr.mxu0 %v202
    %1240 = vmatpush1.msra.mxu0 %v201
    %1241 = vmatprep.subr.mxu0 %v206
    %1242 = vmatpush1.msra.mxu0 %v205
    %1243 = vmatprep.subr.mxu0 %v210
    %1244 = vmatpush1.msra.mxu0 %v209
    %1245 = vmatprep.subr.mxu0 %v214
    %1246 = vmatpush1.msra.mxu0 %v213
    %1247 = vmatprep.subr.mxu0 %v218
    %1248 = vmatpush1.msra.mxu0 %v217
    %1249 = vmatprep.subr.mxu0 %v222
    %1250 = vmatpush1.msra.mxu0 %v221
    %1251 = vmatprep.subr.mxu0 %v226
    %1252 = vmatpush1.msra.mxu0 %v225
    %1253 = vmatprep.subr.mxu0 %v230
    %1254 = vmatpush1.msra.mxu0 %v229
    %1255 = vmatprep.subr.mxu0 %v234
    %1256 = vmatpush1.msra.mxu0 %v233
    %1257 = vmatprep.subr.mxu0 %v238
    %1258 = vmatpush1.msra.mxu0 %v237
    %1259 = vmatprep.subr.mxu0 %v242
    %1260 = vmatpush1.msra.mxu0 %v241
    %1261 = vmatprep.subr.mxu0 %v246
    %1262 = vmatpush1.msra.mxu0 %v245
    %1263 = vmatprep.subr.mxu0 %v250
    %1264 = vmatpush1.msra.mxu0 %v249
    %1265 = vmatprep.subr.mxu0 %v254
    %1266 = vmatpush1.msra.mxu0 %v253
    %1267 = vmatprep.subr.mxu0 0.0
    %1268 = vmatpush1.msra.mxu0 0.0
    %1269 = vmatprep.subr.mxu0 0.0
    %1270 = vmatpush1.msra.mxu0 0.0
    %1271 = vmatprep.subr.mxu0 0.0
    %1272 = vmatpush1.msra.mxu0 0.0
    %1273 = vmatprep.subr.mxu0 0.0
    %1274 = vmatpush1.msra.mxu0 0.0
    %1275 = vmatprep.subr.mxu0 0.0
    %1276 = vmatpush1.msra.mxu0 0.0
    %1277 = vmatprep.subr.mxu0 0.0
    %1278 = vmatpush1.msra.mxu0 0.0
    %1279 = vmatprep.subr.mxu0 0.0
    %1280 = vmatpush1.msra.mxu0 0.0
    %1281 = vmatprep.subr.mxu0 0.0
    %1282 = vmatpush1.msra.mxu0 0.0
    %1283 = vmatprep.subr.mxu0 0.0
    %1284 = vmatpush1.msra.mxu0 0.0
    %1285 = vmatprep.subr.mxu0 0.0
    %1286 = vmatpush1.msra.mxu0 0.0
    %1287 = vmatprep.subr.mxu0 0.0
    %1288 = vmatpush1.msra.mxu0 0.0
    %1289 = vmatprep.subr.mxu0 0.0
    %1290 = vmatpush1.msra.mxu0 0.0
    %1291 = vmatprep.subr.mxu0 0.0
    %1292 = vmatpush1.msra.mxu0 0.0
    %1293 = vmatprep.subr.mxu0 0.0
    %1294 = vmatpush1.msra.mxu0 0.0
    %1295 = vmatprep.subr.mxu0 0.0
    %1296 = vmatpush1.msra.mxu0 0.0
    %1297 = vmatprep.subr.mxu0 0.0
    %1298 = vmatpush1.msra.mxu0 0.0
    %1299 = vmatprep.mubr.f32.mxu0 0.0
    %1300 = vmatmul.mubr.f32.gmra.mrb[0].mxu0 %v1163
    %v1301 = vpop.f32.mrb[0].mxu0
    %v1302 = vadd.f32 0.0, %v1301
    %v1303 = vpop.f32.mrb[0].mxu0
    %v1304 = vadd.f32 0.0, %v1303
    %1305 = vdwg.mxu0
    %v1306 = vadd.f32 %v1159, %v1231
    %v1307 = vadd.f32 %v1160, %v1233
    %v1308 = vadd.f32 %v1161, %v1302
    %v1309 = vadd.f32 %v1162, %v1304
    %v1310 = vxor.u32 %v1306, 2147483648
    %v1311 = vmul.f32 %v1310, 1.442695
    %v1312 = vpow.pop %v1311
    %v1313 = vadd.f32 %v1312, 1.0
    %v1314 = vrcp.pop %v1313
    %v1315 = vmul.f32 1.0, %v1314
    %v1316 = vxor.u32 %v1307, 2147483648
    %v1317 = vmul.f32 %v1316, 1.442695
    %v1318 = vpow.pop %v1317
    %v1319 = vadd.f32 %v1318, 1.0
    %v1320 = vrcp.pop %v1319
    %v1321 = vmul.f32 1.0, %v1320
    %v1322 = vtanh.pop %v1308
    %v1323 = vxor.u32 %v1309, 2147483648
    %v1324 = vmul.f32 %v1323, 1.442695
    %v1325 = vpow.pop %v1324
    %v1326 = vadd.f32 %v1325, 1.0
    %v1327 = vrcp.pop %v1326
    %v1328 = vmul.f32 1.0, %v1327
    %v1329 = vld [vmem:[#allocation4] sm:$0xff]
    %v1330 = vmul.f32 %v1321, %v1329
    %v1331 = vmul.f32 %v1315, %v1322
    %v1332 = vadd.f32 %v1330, %v1331
    %v1333 = vtanh.pop %v1332
    %v1334 = vmul.f32 %v1328, %v1333
    %1335 = vst [vmem:[#allocation3] sm:$0xff] %v1334
    %1336 = vst [vmem:[#allocation4] sm:$0xff] %v1332
    %s1337 = scalar_lea.vmem [#allocation5], 40
    %1338 = vst [vmem:[%s1337] sm:$0xff] %v1334
    %s1339 = scalar_lea.vmem %s0, 192
    %v1340 = vld [vmem:[%s1339] sm:$0xff]
    %v1341 = vld [vmem:[%s1339 + $0x8] sm:$0xff]
    %v1342 = vld [vmem:[%s1339 + $0x10] sm:$0xff]
    %v1343 = vld [vmem:[%s1339 + $0x18] sm:$0xff]
    %v1344 = vld [vmem:[#allocation3] sm:$0xff]
    %1345 = vmatprep.subr.mxu0 %v192
    %1346 = vmatpush1.msra.mxu0 %v191
    %1347 = vmatprep.subr.mxu0 %v196
    %1348 = vmatpush1.msra.mxu0 %v195
    %1349 = vmatprep.subr.mxu0 %v200
    %1350 = vmatpush1.msra.mxu0 %v199
    %1351 = vmatprep.subr.mxu0 %v204
    %1352 = vmatpush1.msra.mxu0 %v203
    %1353 = vmatprep.subr.mxu0 %v208
    %1354 = vmatpush1.msra.mxu0 %v207
    %1355 = vmatprep.subr.mxu0 %v212
    %1356 = vmatpush1.msra.mxu0 %v211
    %1357 = vmatprep.subr.mxu0 %v216
    %1358 = vmatpush1.msra.mxu0 %v215
    %1359 = vmatprep.subr.mxu0 %v220
    %1360 = vmatpush1.msra.mxu0 %v219
    %1361 = vmatprep.subr.mxu0 %v224
    %1362 = vmatpush1.msra.mxu0 %v223
    %1363 = vmatprep.subr.mxu0 %v228
    %1364 = vmatpush1.msra.mxu0 %v227
    %1365 = vmatprep.subr.mxu0 %v232
    %1366 = vmatpush1.msra.mxu0 %v231
    %1367 = vmatprep.subr.mxu0 %v236
    %1368 = vmatpush1.msra.mxu0 %v235
    %1369 = vmatprep.subr.mxu0 %v240
    %1370 = vmatpush1.msra.mxu0 %v239
    %1371 = vmatprep.subr.mxu0 %v244
    %1372 = vmatpush1.msra.mxu0 %v243
    %1373 = vmatprep.subr.mxu0 %v248
    %1374 = vmatpush1.msra.mxu0 %v247
    %1375 = vmatprep.subr.mxu0 %v252
    %1376 = vmatpush1.msra.mxu0 %v251
    %1377 = vmatprep.subr.mxu0 0.0
    %1378 = vmatpush1.msra.mxu0 0.0
    %1379 = vmatprep.subr.mxu0 0.0
    %1380 = vmatpush1.msra.mxu0 0.0
    %1381 = vmatprep.subr.mxu0 0.0
    %1382 = vmatpush1.msra.mxu0 0.0
    %1383 = vmatprep.subr.mxu0 0.0
    %1384 = vmatpush1.msra.mxu0 0.0
    %1385 = vmatprep.subr.mxu0 0.0
    %1386 = vmatpush1.msra.mxu0 0.0
    %1387 = vmatprep.subr.mxu0 0.0
    %1388 = vmatpush1.msra.mxu0 0.0
    %1389 = vmatprep.subr.mxu0 0.0
    %1390 = vmatpush1.msra.mxu0 0.0
    %1391 = vmatprep.subr.mxu0 0.0
    %1392 = vmatpush1.msra.mxu0 0.0
    %1393 = vmatprep.subr.mxu0 0.0
    %1394 = vmatpush1.msra.mxu0 0.0
    %1395 = vmatprep.subr.mxu0 0.0
    %1396 = vmatpush1.msra.mxu0 0.0
    %1397 = vmatprep.subr.mxu0 0.0
    %1398 = vmatpush1.msra.mxu0 0.0
    %1399 = vmatprep.subr.mxu0 0.0
    %1400 = vmatpush1.msra.mxu0 0.0
    %1401 = vmatprep.subr.mxu0 0.0
    %1402 = vmatpush1.msra.mxu0 0.0
    %1403 = vmatprep.subr.mxu0 0.0
    %1404 = vmatpush1.msra.mxu0 0.0
    %1405 = vmatprep.subr.mxu0 0.0
    %1406 = vmatpush1.msra.mxu0 0.0
    %1407 = vmatprep.subr.mxu0 0.0
    %1408 = vmatpush1.msra.mxu0 0.0
    %1409 = vmatprep.mubr.f32.mxu0 0.0
    %1410 = vmatmul.mubr.f32.gmra.mrb[0].mxu0 %v1344
    %v1411 = vpop.f32.mrb[0].mxu0
    %v1412 = vadd.f32 0.0, %v1411
    %v1413 = vpop.f32.mrb[0].mxu0
    %v1414 = vadd.f32 0.0, %v1413
    %1415 = vdwg.mxu0
    %1416 = vmatprep.subr.mxu0 %v194
    %1417 = vmatpush1.msra.mxu0 %v193
    %1418 = vmatprep.subr.mxu0 %v198
    %1419 = vmatpush1.msra.mxu0 %v197
    %1420 = vmatprep.subr.mxu0 %v202
    %1421 = vmatpush1.msra.mxu0 %v201
    %1422 = vmatprep.subr.mxu0 %v206
    %1423 = vmatpush1.msra.mxu0 %v205
    %1424 = vmatprep.subr.mxu0 %v210
    %1425 = vmatpush1.msra.mxu0 %v209
    %1426 = vmatprep.subr.mxu0 %v214
    %1427 = vmatpush1.msra.mxu0 %v213
    %1428 = vmatprep.subr.mxu0 %v218
    %1429 = vmatpush1.msra.mxu0 %v217
    %1430 = vmatprep.subr.mxu0 %v222
    %1431 = vmatpush1.msra.mxu0 %v221
    %1432 = vmatprep.subr.mxu0 %v226
    %1433 = vmatpush1.msra.mxu0 %v225
    %1434 = vmatprep.subr.mxu0 %v230
    %1435 = vmatpush1.msra.mxu0 %v229
    %1436 = vmatprep.subr.mxu0 %v234
    %1437 = vmatpush1.msra.mxu0 %v233
    %1438 = vmatprep.subr.mxu0 %v238
    %1439 = vmatpush1.msra.mxu0 %v237
    %1440 = vmatprep.subr.mxu0 %v242
    %1441 = vmatpush1.msra.mxu0 %v241
    %1442 = vmatprep.subr.mxu0 %v246
    %1443 = vmatpush1.msra.mxu0 %v245
    %1444 = vmatprep.subr.mxu0 %v250
    %1445 = vmatpush1.msra.mxu0 %v249
    %1446 = vmatprep.subr.mxu0 %v254
    %1447 = vmatpush1.msra.mxu0 %v253
    %1448 = vmatprep.subr.mxu0 0.0
    %1449 = vmatpush1.msra.mxu0 0.0
    %1450 = vmatprep.subr.mxu0 0.0
    %1451 = vmatpush1.msra.mxu0 0.0
    %1452 = vmatprep.subr.mxu0 0.0
    %1453 = vmatpush1.msra.mxu0 0.0
    %1454 = vmatprep.subr.mxu0 0.0
    %1455 = vmatpush1.msra.mxu0 0.0
    %1456 = vmatprep.subr.mxu0 0.0
    %1457 = vmatpush1.msra.mxu0 0.0
    %1458 = vmatprep.subr.mxu0 0.0
    %1459 = vmatpush1.msra.mxu0 0.0
    %1460 = vmatprep.subr.mxu0 0.0
    %1461 = vmatpush1.msra.mxu0 0.0
    %1462 = vmatprep.subr.mxu0 0.0
    %1463 = vmatpush1.msra.mxu0 0.0
    %1464 = vmatprep.subr.mxu0 0.0
    %1465 = vmatpush1.msra.mxu0 0.0
    %1466 = vmatprep.subr.mxu0 0.0
    %1467 = vmatpush1.msra.mxu0 0.0
    %1468 = vmatprep.subr.mxu0 0.0
    %1469 = vmatpush1.msra.mxu0 0.0
    %1470 = vmatprep.subr.mxu0 0.0
    %1471 = vmatpush1.msra.mxu0 0.0
    %1472 = vmatprep.subr.mxu0 0.0
    %1473 = vmatpush1.msra.mxu0 0.0
    %1474 = vmatprep.subr.mxu0 0.0
    %1475 = vmatpush1.msra.mxu0 0.0
    %1476 = vmatprep.subr.mxu0 0.0
    %1477 = vmatpush1.msra.mxu0 0.0
    %1478 = vmatprep.subr.mxu0 0.0
    %1479 = vmatpush1.msra.mxu0 0.0
    %1480 = vmatprep.mubr.f32.mxu0 0.0
    %1481 = vmatmul.mubr.f32.gmra.mrb[0].mxu0 %v1344
    %v1482 = vpop.f32.mrb[0].mxu0
    %v1483 = vadd.f32 0.0, %v1482
    %v1484 = vpop.f32.mrb[0].mxu0
    %v1485 = vadd.f32 0.0, %v1484
    %1486 = vdwg.mxu0
    %v1487 = vadd.f32 %v1340, %v1412
    %v1488 = vadd.f32 %v1341, %v1414
    %v1489 = vadd.f32 %v1342, %v1483
    %v1490 = vadd.f32 %v1343, %v1485
    %v1491 = vxor.u32 %v1487, 2147483648
    %v1492 = vmul.f32 %v1491, 1.442695
    %v1493 = vpow.pop %v1492
    %v1494 = vadd.f32 %v1493, 1.0
    %v1495 = vrcp.pop %v1494
    %v1496 = vmul.f32 1.0, %v1495
    %v1497 = vxor.u32 %v1488, 2147483648
    %v1498 = vmul.f32 %v1497, 1.442695
    %v1499 = vpow.pop %v1498
    %v1500 = vadd.f32 %v1499, 1.0
    %v1501 = vrcp.pop %v1500
    %v1502 = vmul.f32 1.0, %v1501
    %v1503 = vtanh.pop %v1489
    %v1504 = vxor.u32 %v1490, 2147483648
    %v1505 = vmul.f32 %v1504, 1.442695
    %v1506 = vpow.pop %v1505
    %v1507 = vadd.f32 %v1506, 1.0
    %v1508 = vrcp.pop %v1507
    %v1509 = vmul.f32 1.0, %v1508
    %v1510 = vld [vmem:[#allocation4] sm:$0xff]
    %v1511 = vmul.f32 %v1502, %v1510
    %v1512 = vmul.f32 %v1496, %v1503
    %v1513 = vadd.f32 %v1511, %v1512
    %v1514 = vtanh.pop %v1513
    %v1515 = vmul.f32 %v1509, %v1514
    %1516 = vst [vmem:[#allocation3] sm:$0xff] %v1515
    %1517 = vst [vmem:[#allocation4] sm:$0xff] %v1513
    %s1518 = scalar_lea.vmem [#allocation5], 48
    %1519 = vst [vmem:[%s1518] sm:$0xff] %v1515
    %s1520 = scalar_lea.vmem %s0, 224
    %v1521 = vld [vmem:[%s1520] sm:$0xff]
    %v1522 = vld [vmem:[%s1520 + $0x8] sm:$0xff]
    %v1523 = vld [vmem:[%s1520 + $0x10] sm:$0xff]
    %v1524 = vld [vmem:[%s1520 + $0x18] sm:$0xff]
    %v1525 = vld [vmem:[#allocation3] sm:$0xff]
    %1526 = vmatprep.subr.mxu0 %v192
    %1527 = vmatpush1.msra.mxu0 %v191
    %1528 = vmatprep.subr.mxu0 %v196
    %1529 = vmatpush1.msra.mxu0 %v195
    %1530 = vmatprep.subr.mxu0 %v200
    %1531 = vmatpush1.msra.mxu0 %v199
    %1532 = vmatprep.subr.mxu0 %v204
    %1533 = vmatpush1.msra.mxu0 %v203
    %1534 = vmatprep.subr.mxu0 %v208
    %1535 = vmatpush1.msra.mxu0 %v207
    %1536 = vmatprep.subr.mxu0 %v212
    %1537 = vmatpush1.msra.mxu0 %v211
    %1538 = vmatprep.subr.mxu0 %v216
    %1539 = vmatpush1.msra.mxu0 %v215
    %1540 = vmatprep.subr.mxu0 %v220
    %1541 = vmatpush1.msra.mxu0 %v219
    %1542 = vmatprep.subr.mxu0 %v224
    %1543 = vmatpush1.msra.mxu0 %v223
    %1544 = vmatprep.subr.mxu0 %v228
    %1545 = vmatpush1.msra.mxu0 %v227
    %1546 = vmatprep.subr.mxu0 %v232
    %1547 = vmatpush1.msra.mxu0 %v231
    %1548 = vmatprep.subr.mxu0 %v236
    %1549 = vmatpush1.msra.mxu0 %v235
    %1550 = vmatprep.subr.mxu0 %v240
    %1551 = vmatpush1.msra.mxu0 %v239
    %1552 = vmatprep.subr.mxu0 %v244
    %1553 = vmatpush1.msra.mxu0 %v243
    %1554 = vmatprep.subr.mxu0 %v248
    %1555 = vmatpush1.msra.mxu0 %v247
    %1556 = vmatprep.subr.mxu0 %v252
    %1557 = vmatpush1.msra.mxu0 %v251
    %1558 = vmatprep.subr.mxu0 0.0
    %1559 = vmatpush1.msra.mxu0 0.0
    %1560 = vmatprep.subr.mxu0 0.0
    %1561 = vmatpush1.msra.mxu0 0.0
    %1562 = vmatprep.subr.mxu0 0.0
    %1563 = vmatpush1.msra.mxu0 0.0
    %1564 = vmatprep.subr.mxu0 0.0
    %1565 = vmatpush1.msra.mxu0 0.0
    %1566 = vmatprep.subr.mxu0 0.0
    %1567 = vmatpush1.msra.mxu0 0.0
    %1568 = vmatprep.subr.mxu0 0.0
    %1569 = vmatpush1.msra.mxu0 0.0
    %1570 = vmatprep.subr.mxu0 0.0
    %1571 = vmatpush1.msra.mxu0 0.0
    %1572 = vmatprep.subr.mxu0 0.0
    %1573 = vmatpush1.msra.mxu0 0.0
    %1574 = vmatprep.subr.mxu0 0.0
    %1575 = vmatpush1.msra.mxu0 0.0
    %1576 = vmatprep.subr.mxu0 0.0
    %1577 = vmatpush1.msra.mxu0 0.0
    %1578 = vmatprep.subr.mxu0 0.0
    %1579 = vmatpush1.msra.mxu0 0.0
    %1580 = vmatprep.subr.mxu0 0.0
    %1581 = vmatpush1.msra.mxu0 0.0
    %1582 = vmatprep.subr.mxu0 0.0
    %1583 = vmatpush1.msra.mxu0 0.0
    %1584 = vmatprep.subr.mxu0 0.0
    %1585 = vmatpush1.msra.mxu0 0.0
    %1586 = vmatprep.subr.mxu0 0.0
    %1587 = vmatpush1.msra.mxu0 0.0
    %1588 = vmatprep.subr.mxu0 0.0
    %1589 = vmatpush1.msra.mxu0 0.0
    %1590 = vmatprep.mubr.f32.mxu0 0.0
    %1591 = vmatmul.mubr.f32.gmra.mrb[0].mxu0 %v1525
    %v1592 = vpop.f32.mrb[0].mxu0
    %v1593 = vadd.f32 0.0, %v1592
    %v1594 = vpop.f32.mrb[0].mxu0
    %v1595 = vadd.f32 0.0, %v1594
    %1596 = vdwg.mxu0
    %1597 = vmatprep.subr.mxu0 %v194
    %1598 = vmatpush1.msra.mxu0 %v193
    %1599 = vmatprep.subr.mxu0 %v198
    %1600 = vmatpush1.msra.mxu0 %v197
    %1601 = vmatprep.subr.mxu0 %v202
    %1602 = vmatpush1.msra.mxu0 %v201
    %1603 = vmatprep.subr.mxu0 %v206
    %1604 = vmatpush1.msra.mxu0 %v205
    %1605 = vmatprep.subr.mxu0 %v210
    %1606 = vmatpush1.msra.mxu0 %v209
    %1607 = vmatprep.subr.mxu0 %v214
    %1608 = vmatpush1.msra.mxu0 %v213
    %1609 = vmatprep.subr.mxu0 %v218
    %1610 = vmatpush1.msra.mxu0 %v217
    %1611 = vmatprep.subr.mxu0 %v222
    %1612 = vmatpush1.msra.mxu0 %v221
    %1613 = vmatprep.subr.mxu0 %v226
    %1614 = vmatpush1.msra.mxu0 %v225
    %1615 = vmatprep.subr.mxu0 %v230
    %1616 = vmatpush1.msra.mxu0 %v229
    %1617 = vmatprep.subr.mxu0 %v234
    %1618 = vmatpush1.msra.mxu0 %v233
    %1619 = vmatprep.subr.mxu0 %v238
    %1620 = vmatpush1.msra.mxu0 %v237
    %1621 = vmatprep.subr.mxu0 %v242
    %1622 = vmatpush1.msra.mxu0 %v241
    %1623 = vmatprep.subr.mxu0 %v246
    %1624 = vmatpush1.msra.mxu0 %v245
    %1625 = vmatprep.subr.mxu0 %v250
    %1626 = vmatpush1.msra.mxu0 %v249
    %1627 = vmatprep.subr.mxu0 %v254
    %1628 = vmatpush1.msra.mxu0 %v253
    %1629 = vmatprep.subr.mxu0 0.0
    %1630 = vmatpush1.msra.mxu0 0.0
    %1631 = vmatprep.subr.mxu0 0.0
    %1632 = vmatpush1.msra.mxu0 0.0
    %1633 = vmatprep.subr.mxu0 0.0
    %1634 = vmatpush1.msra.mxu0 0.0
    %1635 = vmatprep.subr.mxu0 0.0
    %1636 = vmatpush1.msra.mxu0 0.0
    %1637 = vmatprep.subr.mxu0 0.0
    %1638 = vmatpush1.msra.mxu0 0.0
    %1639 = vmatprep.subr.mxu0 0.0
    %1640 = vmatpush1.msra.mxu0 0.0
    %1641 = vmatprep.subr.mxu0 0.0
    %1642 = vmatpush1.msra.mxu0 0.0
    %1643 = vmatprep.subr.mxu0 0.0
    %1644 = vmatpush1.msra.mxu0 0.0
    %1645 = vmatprep.subr.mxu0 0.0
    %1646 = vmatpush1.msra.mxu0 0.0
    %1647 = vmatprep.subr.mxu0 0.0
    %1648 = vmatpush1.msra.mxu0 0.0
    %1649 = vmatprep.subr.mxu0 0.0
    %1650 = vmatpush1.msra.mxu0 0.0
    %1651 = vmatprep.subr.mxu0 0.0
    %1652 = vmatpush1.msra.mxu0 0.0
    %1653 = vmatprep.subr.mxu0 0.0
    %1654 = vmatpush1.msra.mxu0 0.0
    %1655 = vmatprep.subr.mxu0 0.0
    %1656 = vmatpush1.msra.mxu0 0.0
    %1657 = vmatprep.subr.mxu0 0.0
    %1658 = vmatpush1.msra.mxu0 0.0
    %1659 = vmatprep.subr.mxu0 0.0
    %1660 = vmatpush1.msra.mxu0 0.0
    %1661 = vmatprep.mubr.f32.mxu0 0.0
    %1662 = vmatmul.mubr.f32.gmra.mrb[0].mxu0 %v1525
    %v1663 = vpop.f32.mrb[0].mxu0
    %v1664 = vadd.f32 0.0, %v1663
    %v1665 = vpop.f32.mrb[0].mxu0
    %v1666 = vadd.f32 0.0, %v1665
    %1667 = vdwg.mxu0
    %v1668 = vadd.f32 %v1521, %v1593
    %v1669 = vadd.f32 %v1522, %v1595
    %v1670 = vadd.f32 %v1523, %v1664
    %v1671 = vadd.f32 %v1524, %v1666
    %v1672 = vxor.u32 %v1668, 2147483648
    %v1673 = vmul.f32 %v1672, 1.442695
    %v1674 = vpow.pop %v1673
    %v1675 = vadd.f32 %v1674, 1.0
    %v1676 = vrcp.pop %v1675
    %v1677 = vmul.f32 1.0, %v1676
    %v1678 = vxor.u32 %v1669, 2147483648
    %v1679 = vmul.f32 %v1678, 1.442695
    %v1680 = vpow.pop %v1679
    %v1681 = vadd.f32 %v1680, 1.0
    %v1682 = vrcp.pop %v1681
    %v1683 = vmul.f32 1.0, %v1682
    %v1684 = vtanh.pop %v1670
    %v1685 = vxor.u32 %v1671, 2147483648
    %v1686 = vmul.f32 %v1685, 1.442695
    %v1687 = vpow.pop %v1686
    %v1688 = vadd.f32 %v1687, 1.0
    %v1689 = vrcp.pop %v1688
    %v1690 = vmul.f32 1.0, %v1689
    %v1691 = vld [vmem:[#allocation4] sm:$0xff]
    %v1692 = vmul.f32 %v1683, %v1691
    %v1693 = vmul.f32 %v1677, %v1684
    %v1694 = vadd.f32 %v1692, %v1693
    %v1695 = vtanh.pop %v1694
    %v1696 = vmul.f32 %v1690, %v1695
    %1697 = vst [vmem:[#allocation3] sm:$0xff] %v1696
    %1698 = vst [vmem:[#allocation4] sm:$0xff] %v1694
    %s1699 = scalar_lea.vmem [#allocation5], 56
    %1700 = vst [vmem:[%s1699] sm:$0xff] %v1696
    // Predicated region
    $region45: #{encoder_forward.7} parent=1 // pred_check
      %p1701 = pneg %p13
    $region46: #{encoder_forward.7} parent=1 // pred_check_branch
      %1703 = sbr.rel (%p1701) target = $region48
    $region47: #{encoder_forward.7} parent=1 // pred_region
      %v1704 = vld [vmem:[#allocation3] sm:$0xff]
      %1705 = vst [vmem:[%s3] sm:$0xff] %v1704
      %v1706 = vld [vmem:[#allocation4] sm:$0xff]
      %1707 = vst [vmem:[%s4] sm:$0xff] %v1706
    $region48: #{encoder_forward.7} parent=1 // pred_fallthru
      _
    // Predicated region
    $region49: #{encoder_forward.7} parent=1 // pred_check
      _
    $region50: #{encoder_forward.7} parent=1 // pred_check_branch
      %1709 = sbr.rel (0) target = $region52
    $region51: #{encoder_forward.7} parent=1 // pred_region
      %s1711 = ssub.s32 1024, 1024
      %1712 = vsyncadd [#allocation6], %s1711
      %s1713 = sshll.u32 [#allocation5], 4
      %s1714 = int_to_ptr.vmem [resolvable:$true] %s1713
      %1719 = dma.vmem_to_hbm [thread:$0]  %s1714, 1024, %s2, [#allocation6], 128, 128, 8
    $region52: #{encoder_forward.7} parent=1 // pred_fallthru
      _
    // Predicated region
    $region53: #{encoder_forward.7} parent=1 // pred_check
      _
    $region54: #{encoder_forward.7} parent=1 // pred_check_branch
      %1721 = sbr.rel (0) target = $region56
    $region55: #{encoder_forward.7} parent=1 // pred_region
      _
    $region56: #{encoder_forward.7} parent=1 // pred_fallthru
      _
    // Predicated region
    $region57: #{encoder_forward.7} parent=1 // pred_check
      _
    $region58: #{encoder_forward.7} parent=1 // pred_check_branch
      %1723 = sbr.rel (0) target = $region60
    $region59: #{encoder_forward.7} parent=1 // pred_region
      _
    $region60: #{encoder_forward.7} parent=1 // pred_fallthru
      _
    // Predicated region
    $region61: #{encoder_forward.7} parent=1 // pred_check
      _
    $region62: #{encoder_forward.7} parent=1 // pred_check_branch
      %1725 = sbr.rel (0) target = $region64
    $region63: #{encoder_forward.7} parent=1 // pred_region
      %1726 = dma.done [#allocation6], 1024
    $region64: #{encoder_forward.7} parent=1 // pred_fallthru
      _
    // Predicated region
    $region65: #{encoder_forward.7} parent=1 // pred_check
      _
    $region66: #{encoder_forward.7} parent=1 // pred_check_branch
      %1728 = sbr.rel (0) target = $region68
    $region67: #{encoder_forward.7} parent=1 // pred_region
      _
    $region68: #{encoder_forward.7} parent=1 // pred_fallthru
      _
    // Predicated region
    $region69: #{encoder_forward.7} parent=1 // pred_check
      _
    $region70: #{encoder_forward.7} parent=1 // pred_check_branch
      %1730 = sbr.rel (0) target = $region72
    $region71: #{encoder_forward.7} parent=1 // pred_region
      _
    $region72: #{encoder_forward.7} parent=1 // pred_fallthru
      _
    %1731 = vsyncpa [#allocation6], 1

</llo_original>
